<compile_context>
chip_gen: v5e
topology: v5e:2x2
jax: 0.10.0
libtpu: 0.0.40
codegen_flags: <defaults>
</compile_context>

<pallas_src>
import jax
import jax.numpy as jnp
from jax import lax
from jax.experimental import pallas as pl
from jax.experimental.pallas import tpu as pltpu

_LANES = 128      # samples per lane row
_SUBLANES = 8     # row-count padding multiple
_NBINS = 30       # np.histogram(..., bins=30)
_NBINS_PAD = 32   # padded bin axis (bins 30/31 are never hit -> contribute 0)
_NSTAT = 8        # per-sample statistic rows fed to the MXU


def _ratio_kernel(n_ref, event_ref, time_ref, pred_ref, out_ref):
    # n_ref : (1,) f32 SMEM -- true (unpadded) sample count N.
    n_tot = n_ref[0]

    event = event_ref[...]                    # (S, 128); padded tail = -1.0
    time = time_ref[...]                      # (S, 128); padded tail = 0.0
    s_rows = event_ref.shape[0]

    # Sentinel padding (-1.0) makes both masks false on the padded tail, so
    # no iota validity mask is needed.
    cen_b = event == 0.0
    cen = jnp.where(cen_b, 1.0, 0.0)
    cen_t = cen * time

    # -------- calculate_tau: histogram range over censored times ------------
    BIG = jnp.float32(1e30)
    t_min = jnp.min(jnp.where(cen_b, time, BIG), keepdims=True)    # (1, 1)
    t_max = jnp.max(jnp.where(cen_b, time, -BIG), keepdims=True)   # (1, 1)
    degen = t_max == t_min                    # np.histogram degenerate-range fix
    lo = jnp.where(degen, t_min - 0.5, t_min)
    hi = jnp.where(degen, t_max + 0.5, t_max)
    width = (hi - lo) / jnp.float32(_NBINS)
    # Hoisted reciprocal: one (1,1) divide instead of a per-element EUP divide.
    inv_width = 1.0 / width
    # NOTE: with zero censored samples lo/width are garbage (but finite), so
    # the bin indices below are garbage-but-valid in [0, 29]; everything that
    # consumes them is multiplied by cen == 0 and the final result is gated on
    # n_cen == 0, matching the reference.

    # LinearRegression(fit_intercept=False) denominator: sum(cen * t^2).
    sum_t2 = jnp.sum(cen_t * time, keepdims=True)                  # (1, 1)

    # -------- histogram + masked totals on the MXU --------------------------
    # Per lane row r (128 samples):
    #   stats  : (_NSTAT, 128)     masked per-sample statistics
    #   onehot : (_NBINS_PAD, 128) bin membership
    #   binned[m, k] += stats @ onehotT   (two small MXU dots per row)
    # Summing the binned result over k also recovers the plain masked totals,
    # because every sample lands in exactly one (clipped) bin -- this fuses
    # all the standalone cross-lane reductions of the old kernel into the
    # matmul.
    #
    # Statistic rows:
    #   0: cen          -> per-bin histogram counts / n_cen
    #   1: cen * t      -> per-digitize-bin censored-time sums (regression)
    #   2: unc          -> n_unc
    #   3: unc * t      -> sum of uncensored times (tau penalty)
    #   4: unc * d^2    -> MSE numerator (uncensored)
    #   5: unc * |d|    -> L1 numerator (uncensored)
    #   6: change       -> n_change
    #   7: change * d^2 -> MSE numerator (changed censored)
    m_iota = lax.broadcasted_iota(jnp.int32, (_NSTAT, 1), 0)       # (8, 1)
    k_iota = lax.broadcasted_iota(jnp.int32, (_NBINS_PAD, 1), 0)   # (32, 1)
    dot_dims = (((1,), (1,)), ((), ()))       # contract the 128 sample lanes

    def row_step(r, carry):
        acc_hb, acc_sel = carry
        ev = event_ref[pl.ds(r, 1), :]        # (1, 128)
        t = time_ref[pl.ds(r, 1), :]
        p = pred_ref[pl.ds(r, 1), :]

        unc_r = jnp.where(ev == 1.0, 1.0, 0.0)
        cen_r = jnp.where(ev == 0.0, 1.0, 0.0)
        cen_t_r = cen_r * t
        diff = t - p
        d2 = diff * diff
        change_r = cen_r * jnp.where(p < t, 1.0, 0.0)

        # Uniform bins -> arithmetic digitize (no (bins, N) edge grids).
        # NOTE: may differ from np.digitize/np.histogram by one bin for times
        # landing exactly on an edge (linspace edges are not bit-identical to
        # (t - lo) * inv_width); acceptable for a loss.
        u = (t - lo) * inv_width
        # np.digitize(t, edges, right=True) == #edges strictly < t == ceil(u);
        # reference then takes clip(dig, 1, 30) - 1        -> bin in [0, 29].
        sel_r = (jnp.clip(jnp.ceil(u), 1.0, 30.0) - 1.0).astype(jnp.int32)
        # np.histogram bin: floor(u), last bin right-closed -> clip to 29.
        hb_r = jnp.clip(jnp.floor(u), 0.0, 29.0).astype(jnp.int32)

        oh_hb = jnp.where(k_iota == hb_r, 1.0, 0.0)        # (32, 128) f32
        oh_sel = jnp.where(k_iota == sel_r, 1.0, 0.0)      # (32, 128) f32

        def put(m, v):                        # place a (1,128) row at stat m
            return jnp.where(m_iota == m, v, 0.0)

        stats = (put(0, cen_r) + put(1, cen_t_r) + put(2, unc_r)
                 + put(3, unc_r * t) + put(4, unc_r * d2)
                 + put(5, unc_r * jnp.abs(diff))
                 + put(6, change_r) + put(7, change_r * d2))   # (8, 128)

        acc_hb = acc_hb + lax.dot_general(
            stats, oh_hb, dot_dims, preferred_element_type=jnp.float32)
        acc_sel = acc_sel + lax.dot_general(
            stats, oh_sel, dot_dims, preferred_element_type=jnp.float32)
        return acc_hb, acc_sel

    init = (jnp.zeros((_NSTAT, _NBINS_PAD), jnp.float32),
            jnp.zeros((_NSTAT, _NBINS_PAD), jnp.float32))
    binned_hb, binned_sel = lax.fori_loop(0, s_rows, row_step, init,
                                          unroll=s_rows <= 16)

    counts = binned_hb[0:1, :]                # (1, 32) censored histogram counts
    wsum = binned_sel[1:2, :]                 # (1, 32) digitize-binned censored t
    totals = jnp.sum(binned_hb, axis=1, keepdims=True)             # (8, 1)
    n_cen = totals[0:1, :]
    n_unc = totals[2:3, :]
    sum_unc_t = totals[3:4, :]
    sum_unc_d2 = totals[4:5, :]
    sum_unc_l1 = totals[5:6, :]
    n_change = totals[6:7, :]
    sum_change_d2 = totals[7:8, :]

    # -------- zero-intercept regression -> tau ------------------------------
    # sum_i cen_i * t_i * num_i == sum_k counts[k] * wsum[k]
    sum_tn = jnp.sum(counts * wsum, keepdims=True)                 # (1, 1)
    slope = jnp.where(sum_t2 > 0.0,
                      sum_tn / jnp.where(sum_t2 > 0.0, sum_t2, 1.0), 0.0)
    inv_slope = 1.0 / jnp.where(slope == 0.0, 1.0, slope)
    tau = jnp.where(n_cen == 0.0, jnp.float32(1e20),
                    jnp.where(slope == 0.0, 0.0, inv_slope))

    # -------- ratio_loss ------------------------------------------------------
    inv_n_unc = 1.0 / jnp.maximum(n_unc, 1.0)
    mean_unc_t = sum_unc_t * inv_n_unc
    mse_unc = sum_unc_d2 * inv_n_unc
    l1_unc = sum_unc_l1 * inv_n_unc
    tau_penalty = jnp.where(tau > 0.0,
                            mean_unc_t / jnp.where(tau > 0.0, tau, 1.0), 0.0)
    loss_unc = jnp.where(n_unc > 0.0,
                         (mse_unc + l1_unc + tau_penalty) * 0.001, 0.0)

    mse_change = sum_change_d2 / jnp.maximum(n_change, 1.0)
    loss_cen = loss_unc + jnp.where(n_change > 0.0, mse_change * 0.5, 0.0)

    not_changed = n_cen - n_change
    denom = n_tot - not_changed
    loss_scaled = jnp.where(denom != 0.0,
                            loss_cen * n_tot / jnp.where(denom != 0.0, denom, 1.0),
                            loss_cen)

    # No censored samples -> reference returns the uncensored term unscaled.
    out_ref[...] = jnp.where(n_cen == 0.0, loss_unc, loss_scaled).astype(jnp.float32)


def _ratio_loss_impl(t_pred, y_true):
    event = y_true[:, 0].astype(jnp.float32)
    time = y_true[:, 1].astype(jnp.float32)
    pred = jnp.reshape(t_pred.astype(jnp.float32), (-1,))

    n = event.shape[0]
    s_rows = max(1, -(-n // _LANES))                   # ceil(n / 128)
    s_rows = -(-s_rows // _SUBLANES) * _SUBLANES       # sublane-align rows
    padded = s_rows * _LANES

    def pack(x, fill):
        return jnp.pad(x, (0, padded - n),
                       constant_values=fill).reshape(s_rows, _LANES)

    # Event sentinel -1.0 -> padded samples are neither censored nor
    # uncensored; only the true count n (via SMEM) is needed in the kernel.
    n_arr = jnp.full((1,), n, dtype=jnp.float32)

    # ~60 B of live VMEM per padded sample (3 inputs + a handful of dense f32
    # temporaries); request it explicitly with headroom so large batches do
    # not trip the 16 MiB (v5e) / 32 MiB (v6e/v7x) scoped default.
    vmem_limit = int(min(100 * 1024 * 1024, 8 * 1024 * 1024 + padded * 128))

    out = pl.pallas_call(
        _ratio_kernel,
        out_shape=jax.ShapeDtypeStruct((1, 1), jnp.float32),
        in_specs=[
            pl.BlockSpec(memory_space=pltpu.MemorySpace.SMEM),   # n (scalar)
            pl.BlockSpec(memory_space=pltpu.MemorySpace.VMEM),   # event
            pl.BlockSpec(memory_space=pltpu.MemorySpace.VMEM),   # time
            pl.BlockSpec(memory_space=pltpu.MemorySpace.VMEM),   # pred
        ],
        out_specs=pl.BlockSpec(memory_space=pltpu.MemorySpace.VMEM),
        compiler_params=pltpu.CompilerParams(vmem_limit_bytes=vmem_limit),
    )(n_arr, pack(event, -1.0), pack(time, 0.0), pack(pred, 0.0))
    return out[0, 0]


# jit so the column slices / pad / reshape fuse around the pallas_call.
ratio_loss_pallas = jax.jit(_ratio_loss_impl)


if __name__ == "__main__":
    key = jax.random.PRNGKey(0)
    k1, k2, k3 = jax.random.split(key, 3)

    N = 16
    event = (jax.random.uniform(k1, (N,)) > 0.5).astype(jnp.float32)  # mixed censored/uncensored
    tte = jax.random.uniform(k2, (N,), minval=0.1, maxval=10.0)
    y_true = jnp.stack([event, tte], axis=1)                          # (N, 2)
    t_pred = jax.random.uniform(k3, (N, 1), minval=0.1, maxval=10.0)  # (N, 1)

    loss = ratio_loss_pallas(t_pred, y_true)
    jax.block_until_ready(loss)
    print("KERNEL_OK")
</pallas_src>

<mosaic_0001>
module attributes {stable_mosaic.version = 11 : i64} {
  func.func @_ratio_kernel(%arg0: memref<1xf32, #tpu.memory_space<smem>>, %arg1: memref<8x128xf32, #tpu.memory_space<vmem>>, %arg2: memref<8x128xf32, #tpu.memory_space<vmem>>, %arg3: memref<8x128xf32, #tpu.memory_space<vmem>>, %arg4: memref<1x1xf32, #tpu.memory_space<vmem>>) attributes {dimension_semantics = [], scalar_prefetch = 0 : i64, scratch_operands = 0 : i64, tpu.core_type = #tpu.core_type<tc>} {
    %c0 = arith.constant 0 : index
    %0 = memref.load %arg0[%c0] : memref<1xf32, #tpu.memory_space<smem>>
    %c0_0 = arith.constant 0 : index
    %c0_1 = arith.constant 0 : index
    %1 = vector.load %arg1[%c0_0, %c0_1] : memref<8x128xf32, #tpu.memory_space<vmem>>, vector<8x128xf32>
    %c0_2 = arith.constant 0 : index
    %c0_3 = arith.constant 0 : index
    %2 = vector.load %arg2[%c0_2, %c0_3] : memref<8x128xf32, #tpu.memory_space<vmem>>, vector<8x128xf32>
    %cst = arith.constant 0.000000e+00 : f32
    %3 = vector.broadcast %cst : f32 to vector<8x128xf32>
    %4 = arith.cmpf oeq, %1, %3 : vector<8x128xf32>
    %cst_4 = arith.constant 1.000000e+00 : f32
    %cst_5 = arith.constant 0.000000e+00 : f32
    %5 = vector.broadcast %cst_4 : f32 to vector<8x128xf32>
    %6 = vector.broadcast %cst_5 : f32 to vector<8x128xf32>
    %7 = arith.select %4, %5, %6 : vector<8x128xi1>, vector<8x128xf32>
    %8 = arith.mulf %7, %2 : vector<8x128xf32>
    %cst_6 = arith.constant 1.000000e+30 : f32
    %9 = vector.broadcast %cst_6 : f32 to vector<8x128xf32>
    %10 = arith.select %4, %2, %9 : vector<8x128xi1>, vector<8x128xf32>
    %11 = vector.shape_cast %10 : vector<8x128xf32> to vector<1x8x128xf32>
    %cst_7 = arith.constant dense<0x7F800000> : vector<1xf32>
    %12 = vector.multi_reduction <minimumf>, %11, %cst_7 [1, 2] : vector<1x8x128xf32> to vector<1xf32>
    %13 = vector.shape_cast %12 : vector<1xf32> to vector<1x1x1xf32>
    %14 = vector.extract %13[0, 0, 0] : f32 from vector<1x1x1xf32>
    %15 = vector.broadcast %14 : f32 to vector<1x1xf32>
    %cst_8 = arith.constant 0.000000e+00 : f32
    %cst_9 = arith.constant 1.000000e+30 : f32
    %16 = arith.subf %cst_8, %cst_9 : f32
    %17 = vector.broadcast %16 : f32 to vector<8x128xf32>
    %18 = arith.select %4, %2, %17 : vector<8x128xi1>, vector<8x128xf32>
    %19 = vector.shape_cast %18 : vector<8x128xf32> to vector<1x8x128xf32>
    %cst_10 = arith.constant dense<0xFF800000> : vector<1xf32>
    %20 = vector.multi_reduction <maximumf>, %19, %cst_10 [1, 2] : vector<1x8x128xf32> to vector<1xf32>
    %21 = vector.shape_cast %20 : vector<1xf32> to vector<1x1x1xf32>
    %22 = vector.extract %21[0, 0, 0] : f32 from vector<1x1x1xf32>
    %23 = vector.broadcast %22 : f32 to vector<1x1xf32>
    %24 = arith.cmpf oeq, %23, %15 : vector<1x1xf32>
    %cst_11 = arith.constant 5.000000e-01 : f32
    %25 = vector.broadcast %cst_11 : f32 to vector<1x1xf32>
    %26 = arith.subf %15, %25 : vector<1x1xf32>
    %27 = arith.select %24, %26, %15 : vector<1x1xi1>, vector<1x1xf32>
    %cst_12 = arith.constant 5.000000e-01 : f32
    %28 = vector.broadcast %cst_12 : f32 to vector<1x1xf32>
    %29 = arith.addf %23, %28 : vector<1x1xf32>
    %30 = arith.select %24, %29, %23 : vector<1x1xi1>, vector<1x1xf32>
    %31 = arith.subf %30, %27 : vector<1x1xf32>
    %cst_13 = arith.constant 3.000000e+01 : f32
    %32 = vector.broadcast %cst_13 : f32 to vector<1x1xf32>
    %33 = arith.divf %31, %32 : vector<1x1xf32>
    %cst_14 = arith.constant 1.000000e+00 : f32
    %34 = vector.broadcast %cst_14 : f32 to vector<1x1xf32>
    %35 = arith.divf %34, %33 : vector<1x1xf32>
    %36 = arith.mulf %8, %2 : vector<8x128xf32>
    %37 = vector.shape_cast %36 : vector<8x128xf32> to vector<1x8x128xf32>
    %cst_15 = arith.constant dense<0.000000e+00> : vector<1xf32>
    %38 = vector.multi_reduction <add>, %37, %cst_15 [1, 2] : vector<1x8x128xf32> to vector<1xf32>
    %39 = vector.shape_cast %38 : vector<1xf32> to vector<1x1x1xf32>
    %40 = vector.extract %39[0, 0, 0] : f32 from vector<1x1x1xf32>
    %41 = vector.broadcast %40 : f32 to vector<1x1xf32>
    %42 = tpu.iota {dimensions = array<i32: 0>} : vector<8x1xi32>
    %43 = tpu.iota {dimensions = array<i32: 0>} : vector<32x1xi32>
    %cst_16 = arith.constant 0.000000e+00 : f32
    %44 = vector.broadcast %cst_16 : f32 to vector<8x32xf32>
    %cst_17 = arith.constant 0.000000e+00 : f32
    %45 = vector.broadcast %cst_17 : f32 to vector<8x32xf32>
    %c0_i32 = arith.constant 0 : i32
    %46 = arith.index_cast %c0_i32 : i32 to index
    %c0_18 = arith.constant 0 : index
    %47 = vector.load %arg1[%46, %c0_18] : memref<8x128xf32, #tpu.memory_space<vmem>>, vector<1x128xf32>
    %48 = arith.index_cast %c0_i32 : i32 to index
    %c0_19 = arith.constant 0 : index
    %49 = vector.load %arg2[%48, %c0_19] : memref<8x128xf32, #tpu.memory_space<vmem>>, vector<1x128xf32>
    %50 = arith.index_cast %c0_i32 : i32 to index
    %c0_20 = arith.constant 0 : index
    %51 = vector.load %arg3[%50, %c0_20] : memref<8x128xf32, #tpu.memory_space<vmem>>, vector<1x128xf32>
    %cst_21 = arith.constant 1.000000e+00 : f32
    %52 = vector.broadcast %cst_21 : f32 to vector<1x128xf32>
    %53 = arith.cmpf oeq, %47, %52 : vector<1x128xf32>
    %cst_22 = arith.constant 1.000000e+00 : f32
    %cst_23 = arith.constant 0.000000e+00 : f32
    %54 = vector.broadcast %cst_22 : f32 to vector<1x128xf32>
    %55 = vector.broadcast %cst_23 : f32 to vector<1x128xf32>
    %56 = arith.select %53, %54, %55 : vector<1x128xi1>, vector<1x128xf32>
    %cst_24 = arith.constant 0.000000e+00 : f32
    %57 = vector.broadcast %cst_24 : f32 to vector<1x128xf32>
    %58 = arith.cmpf oeq, %47, %57 : vector<1x128xf32>
    %cst_25 = arith.constant 1.000000e+00 : f32
    %cst_26 = arith.constant 0.000000e+00 : f32
    %59 = vector.broadcast %cst_25 : f32 to vector<1x128xf32>
    %60 = vector.broadcast %cst_26 : f32 to vector<1x128xf32>
    %61 = arith.select %58, %59, %60 : vector<1x128xi1>, vector<1x128xf32>
    %62 = arith.mulf %61, %49 : vector<1x128xf32>
    %63 = arith.subf %49, %51 : vector<1x128xf32>
    %64 = arith.mulf %63, %63 : vector<1x128xf32>
    %65 = arith.cmpf olt, %51, %49 : vector<1x128xf32>
    %cst_27 = arith.constant 1.000000e+00 : f32
    %cst_28 = arith.constant 0.000000e+00 : f32
    %66 = vector.broadcast %cst_27 : f32 to vector<1x128xf32>
    %67 = vector.broadcast %cst_28 : f32 to vector<1x128xf32>
    %68 = arith.select %65, %66, %67 : vector<1x128xi1>, vector<1x128xf32>
    %69 = arith.mulf %61, %68 : vector<1x128xf32>
    %70 = vector.broadcast %27 : vector<1x1xf32> to vector<1x128xf32>
    %71 = arith.subf %49, %70 : vector<1x128xf32>
    %72 = vector.broadcast %35 : vector<1x1xf32> to vector<1x128xf32>
    %73 = arith.mulf %71, %72 : vector<1x128xf32>
    %74 = math.ceil %73 : vector<1x128xf32>
    %cst_29 = arith.constant 1.000000e+00 : f32
    %cst_30 = arith.constant 3.000000e+01 : f32
    %75 = vector.broadcast %cst_29 : f32 to vector<1x128xf32>
    %76 = arith.maximumf %75, %74 : vector<1x128xf32>
    %77 = vector.broadcast %cst_30 : f32 to vector<1x128xf32>
    %78 = arith.minimumf %77, %76 : vector<1x128xf32>
    %cst_31 = arith.constant 1.000000e+00 : f32
    %79 = vector.broadcast %cst_31 : f32 to vector<1x128xf32>
    %80 = arith.subf %78, %79 : vector<1x128xf32>
    %81 = arith.fptosi %80 : vector<1x128xf32> to vector<1x128xi32>
    %82 = math.floor %73 : vector<1x128xf32>
    %cst_32 = arith.constant 0.000000e+00 : f32
    %cst_33 = arith.constant 2.900000e+01 : f32
    %83 = vector.broadcast %cst_32 : f32 to vector<1x128xf32>
    %84 = arith.maximumf %83, %82 : vector<1x128xf32>
    %85 = vector.broadcast %cst_33 : f32 to vector<1x128xf32>
    %86 = arith.minimumf %85, %84 : vector<1x128xf32>
    %87 = arith.fptosi %86 : vector<1x128xf32> to vector<1x128xi32>
    %88 = vector.broadcast %43 : vector<32x1xi32> to vector<32x128xi32>
    %89 = vector.broadcast %87 : vector<1x128xi32> to vector<32x128xi32>
    %90 = arith.cmpi eq, %88, %89 : vector<32x128xi32>
    %cst_34 = arith.constant 1.000000e+00 : f32
    %cst_35 = arith.constant 0.000000e+00 : f32
    %91 = vector.broadcast %cst_34 : f32 to vector<32x128xf32>
    %92 = vector.broadcast %cst_35 : f32 to vector<32x128xf32>
    %93 = arith.select %90, %91, %92 : vector<32x128xi1>, vector<32x128xf32>
    %94 = vector.broadcast %43 : vector<32x1xi32> to vector<32x128xi32>
    %95 = vector.broadcast %81 : vector<1x128xi32> to vector<32x128xi32>
    %96 = arith.cmpi eq, %94, %95 : vector<32x128xi32>
    %cst_36 = arith.constant 1.000000e+00 : f32
    %cst_37 = arith.constant 0.000000e+00 : f32
    %97 = vector.broadcast %cst_36 : f32 to vector<32x128xf32>
    %98 = vector.broadcast %cst_37 : f32 to vector<32x128xf32>
    %99 = arith.select %96, %97, %98 : vector<32x128xi1>, vector<32x128xf32>
    %c0_i32_38 = arith.constant 0 : i32
    %100 = vector.broadcast %c0_i32_38 : i32 to vector<8x1xi32>
    %101 = arith.cmpi eq, %42, %100 : vector<8x1xi32>
    %cst_39 = arith.constant 0.000000e+00 : f32
    %102 = vector.shape_cast %101 : vector<8x1xi1> to vector<8x1xi1>
    %103 = vector.broadcast %102 : vector<8x1xi1> to vector<8x128xi1>
    %104 = vector.shape_cast %61 : vector<1x128xf32> to vector<1x128xf32>
    %105 = vector.broadcast %104 : vector<1x128xf32> to vector<8x128xf32>
    %106 = vector.broadcast %cst_39 : f32 to vector<8x128xf32>
    %107 = arith.select %103, %105, %106 : vector<8x128xi1>, vector<8x128xf32>
    %c1_i32 = arith.constant 1 : i32
    %108 = vector.broadcast %c1_i32 : i32 to vector<8x1xi32>
    %109 = arith.cmpi eq, %42, %108 : vector<8x1xi32>
    %cst_40 = arith.constant 0.000000e+00 : f32
    %110 = vector.shape_cast %109 : vector<8x1xi1> to vector<8x1xi1>
    %111 = vector.broadcast %110 : vector<8x1xi1> to vector<8x128xi1>
    %112 = vector.shape_cast %62 : vector<1x128xf32> to vector<1x128xf32>
    %113 = vector.broadcast %112 : vector<1x128xf32> to vector<8x128xf32>
    %114 = vector.broadcast %cst_40 : f32 to vector<8x128xf32>
    %115 = arith.select %111, %113, %114 : vector<8x128xi1>, vector<8x128xf32>
    %116 = arith.addf %107, %115 : vector<8x128xf32>
    %c2_i32 = arith.constant 2 : i32
    %117 = vector.broadcast %c2_i32 : i32 to vector<8x1xi32>
    %118 = arith.cmpi eq, %42, %117 : vector<8x1xi32>
    %cst_41 = arith.constant 0.000000e+00 : f32
    %119 = vector.shape_cast %118 : vector<8x1xi1> to vector<8x1xi1>
    %120 = vector.broadcast %119 : vector<8x1xi1> to vector<8x128xi1>
    %121 = vector.shape_cast %56 : vector<1x128xf32> to vector<1x128xf32>
    %122 = vector.broadcast %121 : vector<1x128xf32> to vector<8x128xf32>
    %123 = vector.broadcast %cst_41 : f32 to vector<8x128xf32>
    %124 = arith.select %120, %122, %123 : vector<8x128xi1>, vector<8x128xf32>
    %125 = arith.addf %116, %124 : vector<8x128xf32>
    %126 = arith.mulf %56, %49 : vector<1x128xf32>
    %c3_i32 = arith.constant 3 : i32
    %127 = vector.broadcast %c3_i32 : i32 to vector<8x1xi32>
    %128 = arith.cmpi eq, %42, %127 : vector<8x1xi32>
    %cst_42 = arith.constant 0.000000e+00 : f32
    %129 = vector.shape_cast %128 : vector<8x1xi1> to vector<8x1xi1>
    %130 = vector.broadcast %129 : vector<8x1xi1> to vector<8x128xi1>
    %131 = vector.shape_cast %126 : vector<1x128xf32> to vector<1x128xf32>
    %132 = vector.broadcast %131 : vector<1x128xf32> to vector<8x128xf32>
    %133 = vector.broadcast %cst_42 : f32 to vector<8x128xf32>
    %134 = arith.select %130, %132, %133 : vector<8x128xi1>, vector<8x128xf32>
    %135 = arith.addf %125, %134 : vector<8x128xf32>
    %136 = arith.mulf %56, %64 : vector<1x128xf32>
    %c4_i32 = arith.constant 4 : i32
    %137 = vector.broadcast %c4_i32 : i32 to vector<8x1xi32>
    %138 = arith.cmpi eq, %42, %137 : vector<8x1xi32>
    %cst_43 = arith.constant 0.000000e+00 : f32
    %139 = vector.shape_cast %138 : vector<8x1xi1> to vector<8x1xi1>
    %140 = vector.broadcast %139 : vector<8x1xi1> to vector<8x128xi1>
    %141 = vector.shape_cast %136 : vector<1x128xf32> to vector<1x128xf32>
    %142 = vector.broadcast %141 : vector<1x128xf32> to vector<8x128xf32>
    %143 = vector.broadcast %cst_43 : f32 to vector<8x128xf32>
    %144 = arith.select %140, %142, %143 : vector<8x128xi1>, vector<8x128xf32>
    %145 = arith.addf %135, %144 : vector<8x128xf32>
    %146 = math.absf %63 : vector<1x128xf32>
    %147 = arith.mulf %56, %146 : vector<1x128xf32>
    %c5_i32 = arith.constant 5 : i32
    %148 = vector.broadcast %c5_i32 : i32 to vector<8x1xi32>
    %149 = arith.cmpi eq, %42, %148 : vector<8x1xi32>
    %cst_44 = arith.constant 0.000000e+00 : f32
    %150 = vector.shape_cast %149 : vector<8x1xi1> to vector<8x1xi1>
    %151 = vector.broadcast %150 : vector<8x1xi1> to vector<8x128xi1>
    %152 = vector.shape_cast %147 : vector<1x128xf32> to vector<1x128xf32>
    %153 = vector.broadcast %152 : vector<1x128xf32> to vector<8x128xf32>
    %154 = vector.broadcast %cst_44 : f32 to vector<8x128xf32>
    %155 = arith.select %151, %153, %154 : vector<8x128xi1>, vector<8x128xf32>
    %156 = arith.addf %145, %155 : vector<8x128xf32>
    %c6_i32 = arith.constant 6 : i32
    %157 = vector.broadcast %c6_i32 : i32 to vector<8x1xi32>
    %158 = arith.cmpi eq, %42, %157 : vector<8x1xi32>
    %cst_45 = arith.constant 0.000000e+00 : f32
    %159 = vector.shape_cast %158 : vector<8x1xi1> to vector<8x1xi1>
    %160 = vector.broadcast %159 : vector<8x1xi1> to vector<8x128xi1>
    %161 = vector.shape_cast %69 : vector<1x128xf32> to vector<1x128xf32>
    %162 = vector.broadcast %161 : vector<1x128xf32> to vector<8x128xf32>
    %163 = vector.broadcast %cst_45 : f32 to vector<8x128xf32>
    %164 = arith.select %160, %162, %163 : vector<8x128xi1>, vector<8x128xf32>
    %165 = arith.addf %156, %164 : vector<8x128xf32>
    %166 = arith.mulf %69, %64 : vector<1x128xf32>
    %c7_i32 = arith.constant 7 : i32
    %167 = vector.broadcast %c7_i32 : i32 to vector<8x1xi32>
    %168 = arith.cmpi eq, %42, %167 : vector<8x1xi32>
    %cst_46 = arith.constant 0.000000e+00 : f32
    %169 = vector.shape_cast %168 : vector<8x1xi1> to vector<8x1xi1>
    %170 = vector.broadcast %169 : vector<8x1xi1> to vector<8x128xi1>
    %171 = vector.shape_cast %166 : vector<1x128xf32> to vector<1x128xf32>
    %172 = vector.broadcast %171 : vector<1x128xf32> to vector<8x128xf32>
    %173 = vector.broadcast %cst_46 : f32 to vector<8x128xf32>
    %174 = arith.select %170, %172, %173 : vector<8x128xi1>, vector<8x128xf32>
    %175 = arith.addf %165, %174 : vector<8x128xf32>
    %cst_47 = arith.constant dense<0.000000e+00> : vector<8x32xf32>
    %176 = tpu.matmul %175, %93, %cst_47 {dimension_numbers = #tpu.dot_dimension_numbers<[1], [1], [0], [0], [0, 0, 1, 0], [], []>} : vector<8x128xf32>, vector<32x128xf32>, vector<8x32xf32> -> vector<8x32xf32>
    %177 = arith.addf %44, %176 : vector<8x32xf32>
    %cst_48 = arith.constant dense<0.000000e+00> : vector<8x32xf32>
    %178 = tpu.matmul %175, %99, %cst_48 {dimension_numbers = #tpu.dot_dimension_numbers<[1], [1], [0], [0], [0, 0, 1, 0], [], []>} : vector<8x128xf32>, vector<32x128xf32>, vector<8x32xf32> -> vector<8x32xf32>
    %179 = arith.addf %45, %178 : vector<8x32xf32>
    %c1_i32_49 = arith.constant 1 : i32
    %180 = arith.index_cast %c1_i32_49 : i32 to index
    %c0_50 = arith.constant 0 : index
    %181 = vector.load %arg1[%180, %c0_50] : memref<8x128xf32, #tpu.memory_space<vmem>>, vector<1x128xf32>
    %182 = arith.index_cast %c1_i32_49 : i32 to index
    %c0_51 = arith.constant 0 : index
    %183 = vector.load %arg2[%182, %c0_51] : memref<8x128xf32, #tpu.memory_space<vmem>>, vector<1x128xf32>
    %184 = arith.index_cast %c1_i32_49 : i32 to index
    %c0_52 = arith.constant 0 : index
    %185 = vector.load %arg3[%184, %c0_52] : memref<8x128xf32, #tpu.memory_space<vmem>>, vector<1x128xf32>
    %cst_53 = arith.constant 1.000000e+00 : f32
    %186 = vector.broadcast %cst_53 : f32 to vector<1x128xf32>
    %187 = arith.cmpf oeq, %181, %186 : vector<1x128xf32>
    %cst_54 = arith.constant 1.000000e+00 : f32
    %cst_55 = arith.constant 0.000000e+00 : f32
    %188 = vector.broadcast %cst_54 : f32 to vector<1x128xf32>
    %189 = vector.broadcast %cst_55 : f32 to vector<1x128xf32>
    %190 = arith.select %187, %188, %189 : vector<1x128xi1>, vector<1x128xf32>
    %cst_56 = arith.constant 0.000000e+00 : f32
    %191 = vector.broadcast %cst_56 : f32 to vector<1x128xf32>
    %192 = arith.cmpf oeq, %181, %191 : vector<1x128xf32>
    %cst_57 = arith.constant 1.000000e+00 : f32
    %cst_58 = arith.constant 0.000000e+00 : f32
    %193 = vector.broadcast %cst_57 : f32 to vector<1x128xf32>
    %194 = vector.broadcast %cst_58 : f32 to vector<1x128xf32>
    %195 = arith.select %192, %193, %194 : vector<1x128xi1>, vector<1x128xf32>
    %196 = arith.mulf %195, %183 : vector<1x128xf32>
    %197 = arith.subf %183, %185 : vector<1x128xf32>
    %198 = arith.mulf %197, %197 : vector<1x128xf32>
    %199 = arith.cmpf olt, %185, %183 : vector<1x128xf32>
    %cst_59 = arith.constant 1.000000e+00 : f32
    %cst_60 = arith.constant 0.000000e+00 : f32
    %200 = vector.broadcast %cst_59 : f32 to vector<1x128xf32>
    %201 = vector.broadcast %cst_60 : f32 to vector<1x128xf32>
    %202 = arith.select %199, %200, %201 : vector<1x128xi1>, vector<1x128xf32>
    %203 = arith.mulf %195, %202 : vector<1x128xf32>
    %204 = vector.broadcast %27 : vector<1x1xf32> to vector<1x128xf32>
    %205 = arith.subf %183, %204 : vector<1x128xf32>
    %206 = vector.broadcast %35 : vector<1x1xf32> to vector<1x128xf32>
    %207 = arith.mulf %205, %206 : vector<1x128xf32>
    %208 = math.ceil %207 : vector<1x128xf32>
    %cst_61 = arith.constant 1.000000e+00 : f32
    %cst_62 = arith.constant 3.000000e+01 : f32
    %209 = vector.broadcast %cst_61 : f32 to vector<1x128xf32>
    %210 = arith.maximumf %209, %208 : vector<1x128xf32>
    %211 = vector.broadcast %cst_62 : f32 to vector<1x128xf32>
    %212 = arith.minimumf %211, %210 : vector<1x128xf32>
    %cst_63 = arith.constant 1.000000e+00 : f32
    %213 = vector.broadcast %cst_63 : f32 to vector<1x128xf32>
    %214 = arith.subf %212, %213 : vector<1x128xf32>
    %215 = arith.fptosi %214 : vector<1x128xf32> to vector<1x128xi32>
    %216 = math.floor %207 : vector<1x128xf32>
    %cst_64 = arith.constant 0.000000e+00 : f32
    %cst_65 = arith.constant 2.900000e+01 : f32
    %217 = vector.broadcast %cst_64 : f32 to vector<1x128xf32>
    %218 = arith.maximumf %217, %216 : vector<1x128xf32>
    %219 = vector.broadcast %cst_65 : f32 to vector<1x128xf32>
    %220 = arith.minimumf %219, %218 : vector<1x128xf32>
    %221 = arith.fptosi %220 : vector<1x128xf32> to vector<1x128xi32>
    %222 = vector.broadcast %43 : vector<32x1xi32> to vector<32x128xi32>
    %223 = vector.broadcast %221 : vector<1x128xi32> to vector<32x128xi32>
    %224 = arith.cmpi eq, %222, %223 : vector<32x128xi32>
    %cst_66 = arith.constant 1.000000e+00 : f32
    %cst_67 = arith.constant 0.000000e+00 : f32
    %225 = vector.broadcast %cst_66 : f32 to vector<32x128xf32>
    %226 = vector.broadcast %cst_67 : f32 to vector<32x128xf32>
    %227 = arith.select %224, %225, %226 : vector<32x128xi1>, vector<32x128xf32>
    %228 = vector.broadcast %43 : vector<32x1xi32> to vector<32x128xi32>
    %229 = vector.broadcast %215 : vector<1x128xi32> to vector<32x128xi32>
    %230 = arith.cmpi eq, %228, %229 : vector<32x128xi32>
    %cst_68 = arith.constant 1.000000e+00 : f32
    %cst_69 = arith.constant 0.000000e+00 : f32
    %231 = vector.broadcast %cst_68 : f32 to vector<32x128xf32>
    %232 = vector.broadcast %cst_69 : f32 to vector<32x128xf32>
    %233 = arith.select %230, %231, %232 : vector<32x128xi1>, vector<32x128xf32>
    %c0_i32_70 = arith.constant 0 : i32
    %234 = vector.broadcast %c0_i32_70 : i32 to vector<8x1xi32>
    %235 = arith.cmpi eq, %42, %234 : vector<8x1xi32>
    %cst_71 = arith.constant 0.000000e+00 : f32
    %236 = vector.shape_cast %235 : vector<8x1xi1> to vector<8x1xi1>
    %237 = vector.broadcast %236 : vector<8x1xi1> to vector<8x128xi1>
    %238 = vector.shape_cast %195 : vector<1x128xf32> to vector<1x128xf32>
    %239 = vector.broadcast %238 : vector<1x128xf32> to vector<8x128xf32>
    %240 = vector.broadcast %cst_71 : f32 to vector<8x128xf32>
    %241 = arith.select %237, %239, %240 : vector<8x128xi1>, vector<8x128xf32>
    %c1_i32_72 = arith.constant 1 : i32
    %242 = vector.broadcast %c1_i32_72 : i32 to vector<8x1xi32>
    %243 = arith.cmpi eq, %42, %242 : vector<8x1xi32>
    %cst_73 = arith.constant 0.000000e+00 : f32
    %244 = vector.shape_cast %243 : vector<8x1xi1> to vector<8x1xi1>
    %245 = vector.broadcast %244 : vector<8x1xi1> to vector<8x128xi1>
    %246 = vector.shape_cast %196 : vector<1x128xf32> to vector<1x128xf32>
    %247 = vector.broadcast %246 : vector<1x128xf32> to vector<8x128xf32>
    %248 = vector.broadcast %cst_73 : f32 to vector<8x128xf32>
    %249 = arith.select %245, %247, %248 : vector<8x128xi1>, vector<8x128xf32>
    %250 = arith.addf %241, %249 : vector<8x128xf32>
    %c2_i32_74 = arith.constant 2 : i32
    %251 = vector.broadcast %c2_i32_74 : i32 to vector<8x1xi32>
    %252 = arith.cmpi eq, %42, %251 : vector<8x1xi32>
    %cst_75 = arith.constant 0.000000e+00 : f32
    %253 = vector.shape_cast %252 : vector<8x1xi1> to vector<8x1xi1>
    %254 = vector.broadcast %253 : vector<8x1xi1> to vector<8x128xi1>
    %255 = vector.shape_cast %190 : vector<1x128xf32> to vector<1x128xf32>
    %256 = vector.broadcast %255 : vector<1x128xf32> to vector<8x128xf32>
    %257 = vector.broadcast %cst_75 : f32 to vector<8x128xf32>
    %258 = arith.select %254, %256, %257 : vector<8x128xi1>, vector<8x128xf32>
    %259 = arith.addf %250, %258 : vector<8x128xf32>
    %260 = arith.mulf %190, %183 : vector<1x128xf32>
    %c3_i32_76 = arith.constant 3 : i32
    %261 = vector.broadcast %c3_i32_76 : i32 to vector<8x1xi32>
    %262 = arith.cmpi eq, %42, %261 : vector<8x1xi32>
    %cst_77 = arith.constant 0.000000e+00 : f32
    %263 = vector.shape_cast %262 : vector<8x1xi1> to vector<8x1xi1>
    %264 = vector.broadcast %263 : vector<8x1xi1> to vector<8x128xi1>
    %265 = vector.shape_cast %260 : vector<1x128xf32> to vector<1x128xf32>
    %266 = vector.broadcast %265 : vector<1x128xf32> to vector<8x128xf32>
    %267 = vector.broadcast %cst_77 : f32 to vector<8x128xf32>
    %268 = arith.select %264, %266, %267 : vector<8x128xi1>, vector<8x128xf32>
    %269 = arith.addf %259, %268 : vector<8x128xf32>
    %270 = arith.mulf %190, %198 : vector<1x128xf32>
    %c4_i32_78 = arith.constant 4 : i32
    %271 = vector.broadcast %c4_i32_78 : i32 to vector<8x1xi32>
    %272 = arith.cmpi eq, %42, %271 : vector<8x1xi32>
    %cst_79 = arith.constant 0.000000e+00 : f32
    %273 = vector.shape_cast %272 : vector<8x1xi1> to vector<8x1xi1>
    %274 = vector.broadcast %273 : vector<8x1xi1> to vector<8x128xi1>
    %275 = vector.shape_cast %270 : vector<1x128xf32> to vector<1x128xf32>
    %276 = vector.broadcast %275 : vector<1x128xf32> to vector<8x128xf32>
    %277 = vector.broadcast %cst_79 : f32 to vector<8x128xf32>
    %278 = arith.select %274, %276, %277 : vector<8x128xi1>, vector<8x128xf32>
    %279 = arith.addf %269, %278 : vector<8x128xf32>
    %280 = math.absf %197 : vector<1x128xf32>
    %281 = arith.mulf %190, %280 : vector<1x128xf32>
    %c5_i32_80 = arith.constant 5 : i32
    %282 = vector.broadcast %c5_i32_80 : i32 to vector<8x1xi32>
    %283 = arith.cmpi eq, %42, %282 : vector<8x1xi32>
    %cst_81 = arith.constant 0.000000e+00 : f32
    %284 = vector.shape_cast %283 : vector<8x1xi1> to vector<8x1xi1>
    %285 = vector.broadcast %284 : vector<8x1xi1> to vector<8x128xi1>
    %286 = vector.shape_cast %281 : vector<1x128xf32> to vector<1x128xf32>
    %287 = vector.broadcast %286 : vector<1x128xf32> to vector<8x128xf32>
    %288 = vector.broadcast %cst_81 : f32 to vector<8x128xf32>
    %289 = arith.select %285, %287, %288 : vector<8x128xi1>, vector<8x128xf32>
    %290 = arith.addf %279, %289 : vector<8x128xf32>
    %c6_i32_82 = arith.constant 6 : i32
    %291 = vector.broadcast %c6_i32_82 : i32 to vector<8x1xi32>
    %292 = arith.cmpi eq, %42, %291 : vector<8x1xi32>
    %cst_83 = arith.constant 0.000000e+00 : f32
    %293 = vector.shape_cast %292 : vector<8x1xi1> to vector<8x1xi1>
    %294 = vector.broadcast %293 : vector<8x1xi1> to vector<8x128xi1>
    %295 = vector.shape_cast %203 : vector<1x128xf32> to vector<1x128xf32>
    %296 = vector.broadcast %295 : vector<1x128xf32> to vector<8x128xf32>
    %297 = vector.broadcast %cst_83 : f32 to vector<8x128xf32>
    %298 = arith.select %294, %296, %297 : vector<8x128xi1>, vector<8x128xf32>
    %299 = arith.addf %290, %298 : vector<8x128xf32>
    %300 = arith.mulf %203, %198 : vector<1x128xf32>
    %c7_i32_84 = arith.constant 7 : i32
    %301 = vector.broadcast %c7_i32_84 : i32 to vector<8x1xi32>
    %302 = arith.cmpi eq, %42, %301 : vector<8x1xi32>
    %cst_85 = arith.constant 0.000000e+00 : f32
    %303 = vector.shape_cast %302 : vector<8x1xi1> to vector<8x1xi1>
    %304 = vector.broadcast %303 : vector<8x1xi1> to vector<8x128xi1>
    %305 = vector.shape_cast %300 : vector<1x128xf32> to vector<1x128xf32>
    %306 = vector.broadcast %305 : vector<1x128xf32> to vector<8x128xf32>
    %307 = vector.broadcast %cst_85 : f32 to vector<8x128xf32>
    %308 = arith.select %304, %306, %307 : vector<8x128xi1>, vector<8x128xf32>
    %309 = arith.addf %299, %308 : vector<8x128xf32>
    %cst_86 = arith.constant dense<0.000000e+00> : vector<8x32xf32>
    %310 = tpu.matmul %309, %227, %cst_86 {dimension_numbers = #tpu.dot_dimension_numbers<[1], [1], [0], [0], [0, 0, 1, 0], [], []>} : vector<8x128xf32>, vector<32x128xf32>, vector<8x32xf32> -> vector<8x32xf32>
    %311 = arith.addf %177, %310 : vector<8x32xf32>
    %cst_87 = arith.constant dense<0.000000e+00> : vector<8x32xf32>
    %312 = tpu.matmul %309, %233, %cst_87 {dimension_numbers = #tpu.dot_dimension_numbers<[1], [1], [0], [0], [0, 0, 1, 0], [], []>} : vector<8x128xf32>, vector<32x128xf32>, vector<8x32xf32> -> vector<8x32xf32>
    %313 = arith.addf %179, %312 : vector<8x32xf32>
    %c2_i32_88 = arith.constant 2 : i32
    %314 = arith.index_cast %c2_i32_88 : i32 to index
    %c0_89 = arith.constant 0 : index
    %315 = vector.load %arg1[%314, %c0_89] : memref<8x128xf32, #tpu.memory_space<vmem>>, vector<1x128xf32>
    %316 = arith.index_cast %c2_i32_88 : i32 to index
    %c0_90 = arith.constant 0 : index
    %317 = vector.load %arg2[%316, %c0_90] : memref<8x128xf32, #tpu.memory_space<vmem>>, vector<1x128xf32>
    %318 = arith.index_cast %c2_i32_88 : i32 to index
    %c0_91 = arith.constant 0 : index
    %319 = vector.load %arg3[%318, %c0_91] : memref<8x128xf32, #tpu.memory_space<vmem>>, vector<1x128xf32>
    %cst_92 = arith.constant 1.000000e+00 : f32
    %320 = vector.broadcast %cst_92 : f32 to vector<1x128xf32>
    %321 = arith.cmpf oeq, %315, %320 : vector<1x128xf32>
    %cst_93 = arith.constant 1.000000e+00 : f32
    %cst_94 = arith.constant 0.000000e+00 : f32
    %322 = vector.broadcast %cst_93 : f32 to vector<1x128xf32>
    %323 = vector.broadcast %cst_94 : f32 to vector<1x128xf32>
    %324 = arith.select %321, %322, %323 : vector<1x128xi1>, vector<1x128xf32>
    %cst_95 = arith.constant 0.000000e+00 : f32
    %325 = vector.broadcast %cst_95 : f32 to vector<1x128xf32>
    %326 = arith.cmpf oeq, %315, %325 : vector<1x128xf32>
    %cst_96 = arith.constant 1.000000e+00 : f32
    %cst_97 = arith.constant 0.000000e+00 : f32
    %327 = vector.broadcast %cst_96 : f32 to vector<1x128xf32>
    %328 = vector.broadcast %cst_97 : f32 to vector<1x128xf32>
    %329 = arith.select %326, %327, %328 : vector<1x128xi1>, vector<1x128xf32>
    %330 = arith.mulf %329, %317 : vector<1x128xf32>
    %331 = arith.subf %317, %319 : vector<1x128xf32>
    %332 = arith.mulf %331, %331 : vector<1x128xf32>
    %333 = arith.cmpf olt, %319, %317 : vector<1x128xf32>
    %cst_98 = arith.constant 1.000000e+00 : f32
    %cst_99 = arith.constant 0.000000e+00 : f32
    %334 = vector.broadcast %cst_98 : f32 to vector<1x128xf32>
    %335 = vector.broadcast %cst_99 : f32 to vector<1x128xf32>
    %336 = arith.select %333, %334, %335 : vector<1x128xi1>, vector<1x128xf32>
    %337 = arith.mulf %329, %336 : vector<1x128xf32>
    %338 = vector.broadcast %27 : vector<1x1xf32> to vector<1x128xf32>
    %339 = arith.subf %317, %338 : vector<1x128xf32>
    %340 = vector.broadcast %35 : vector<1x1xf32> to vector<1x128xf32>
    %341 = arith.mulf %339, %340 : vector<1x128xf32>
    %342 = math.ceil %341 : vector<1x128xf32>
    %cst_100 = arith.constant 1.000000e+00 : f32
    %cst_101 = arith.constant 3.000000e+01 : f32
    %343 = vector.broadcast %cst_100 : f32 to vector<1x128xf32>
    %344 = arith.maximumf %343, %342 : vector<1x128xf32>
    %345 = vector.broadcast %cst_101 : f32 to vector<1x128xf32>
    %346 = arith.minimumf %345, %344 : vector<1x128xf32>
    %cst_102 = arith.constant 1.000000e+00 : f32
    %347 = vector.broadcast %cst_102 : f32 to vector<1x128xf32>
    %348 = arith.subf %346, %347 : vector<1x128xf32>
    %349 = arith.fptosi %348 : vector<1x128xf32> to vector<1x128xi32>
    %350 = math.floor %341 : vector<1x128xf32>
    %cst_103 = arith.constant 0.000000e+00 : f32
    %cst_104 = arith.constant 2.900000e+01 : f32
    %351 = vector.broadcast %cst_103 : f32 to vector<1x128xf32>
    %352 = arith.maximumf %351, %350 : vector<1x128xf32>
    %353 = vector.broadcast %cst_104 : f32 to vector<1x128xf32>
    %354 = arith.minimumf %353, %352 : vector<1x128xf32>
    %355 = arith.fptosi %354 : vector<1x128xf32> to vector<1x128xi32>
    %356 = vector.broadcast %43 : vector<32x1xi32> to vector<32x128xi32>
    %357 = vector.broadcast %355 : vector<1x128xi32> to vector<32x128xi32>
    %358 = arith.cmpi eq, %356, %357 : vector<32x128xi32>
    %cst_105 = arith.constant 1.000000e+00 : f32
    %cst_106 = arith.constant 0.000000e+00 : f32
    %359 = vector.broadcast %cst_105 : f32 to vector<32x128xf32>
    %360 = vector.broadcast %cst_106 : f32 to vector<32x128xf32>
    %361 = arith.select %358, %359, %360 : vector<32x128xi1>, vector<32x128xf32>
    %362 = vector.broadcast %43 : vector<32x1xi32> to vector<32x128xi32>
    %363 = vector.broadcast %349 : vector<1x128xi32> to vector<32x128xi32>
    %364 = arith.cmpi eq, %362, %363 : vector<32x128xi32>
    %cst_107 = arith.constant 1.000000e+00 : f32
    %cst_108 = arith.constant 0.000000e+00 : f32
    %365 = vector.broadcast %cst_107 : f32 to vector<32x128xf32>
    %366 = vector.broadcast %cst_108 : f32 to vector<32x128xf32>
    %367 = arith.select %364, %365, %366 : vector<32x128xi1>, vector<32x128xf32>
    %c0_i32_109 = arith.constant 0 : i32
    %368 = vector.broadcast %c0_i32_109 : i32 to vector<8x1xi32>
    %369 = arith.cmpi eq, %42, %368 : vector<8x1xi32>
    %cst_110 = arith.constant 0.000000e+00 : f32
    %370 = vector.shape_cast %369 : vector<8x1xi1> to vector<8x1xi1>
    %371 = vector.broadcast %370 : vector<8x1xi1> to vector<8x128xi1>
    %372 = vector.shape_cast %329 : vector<1x128xf32> to vector<1x128xf32>
    %373 = vector.broadcast %372 : vector<1x128xf32> to vector<8x128xf32>
    %374 = vector.broadcast %cst_110 : f32 to vector<8x128xf32>
    %375 = arith.select %371, %373, %374 : vector<8x128xi1>, vector<8x128xf32>
    %c1_i32_111 = arith.constant 1 : i32
    %376 = vector.broadcast %c1_i32_111 : i32 to vector<8x1xi32>
    %377 = arith.cmpi eq, %42, %376 : vector<8x1xi32>
    %cst_112 = arith.constant 0.000000e+00 : f32
    %378 = vector.shape_cast %377 : vector<8x1xi1> to vector<8x1xi1>
    %379 = vector.broadcast %378 : vector<8x1xi1> to vector<8x128xi1>
    %380 = vector.shape_cast %330 : vector<1x128xf32> to vector<1x128xf32>
    %381 = vector.broadcast %380 : vector<1x128xf32> to vector<8x128xf32>
    %382 = vector.broadcast %cst_112 : f32 to vector<8x128xf32>
    %383 = arith.select %379, %381, %382 : vector<8x128xi1>, vector<8x128xf32>
    %384 = arith.addf %375, %383 : vector<8x128xf32>
    %c2_i32_113 = arith.constant 2 : i32
    %385 = vector.broadcast %c2_i32_113 : i32 to vector<8x1xi32>
    %386 = arith.cmpi eq, %42, %385 : vector<8x1xi32>
    %cst_114 = arith.constant 0.000000e+00 : f32
    %387 = vector.shape_cast %386 : vector<8x1xi1> to vector<8x1xi1>
    %388 = vector.broadcast %387 : vector<8x1xi1> to vector<8x128xi1>
    %389 = vector.shape_cast %324 : vector<1x128xf32> to vector<1x128xf32>
    %390 = vector.broadcast %389 : vector<1x128xf32> to vector<8x128xf32>
    %391 = vector.broadcast %cst_114 : f32 to vector<8x128xf32>
    %392 = arith.select %388, %390, %391 : vector<8x128xi1>, vector<8x128xf32>
    %393 = arith.addf %384, %392 : vector<8x128xf32>
    %394 = arith.mulf %324, %317 : vector<1x128xf32>
    %c3_i32_115 = arith.constant 3 : i32
    %395 = vector.broadcast %c3_i32_115 : i32 to vector<8x1xi32>
    %396 = arith.cmpi eq, %42, %395 : vector<8x1xi32>
    %cst_116 = arith.constant 0.000000e+00 : f32
    %397 = vector.shape_cast %396 : vector<8x1xi1> to vector<8x1xi1>
    %398 = vector.broadcast %397 : vector<8x1xi1> to vector<8x128xi1>
    %399 = vector.shape_cast %394 : vector<1x128xf32> to vector<1x128xf32>
    %400 = vector.broadcast %399 : vector<1x128xf32> to vector<8x128xf32>
    %401 = vector.broadcast %cst_116 : f32 to vector<8x128xf32>
    %402 = arith.select %398, %400, %401 : vector<8x128xi1>, vector<8x128xf32>
    %403 = arith.addf %393, %402 : vector<8x128xf32>
    %404 = arith.mulf %324, %332 : vector<1x128xf32>
    %c4_i32_117 = arith.constant 4 : i32
    %405 = vector.broadcast %c4_i32_117 : i32 to vector<8x1xi32>
    %406 = arith.cmpi eq, %42, %405 : vector<8x1xi32>
    %cst_118 = arith.constant 0.000000e+00 : f32
    %407 = vector.shape_cast %406 : vector<8x1xi1> to vector<8x1xi1>
    %408 = vector.broadcast %407 : vector<8x1xi1> to vector<8x128xi1>
    %409 = vector.shape_cast %404 : vector<1x128xf32> to vector<1x128xf32>
    %410 = vector.broadcast %409 : vector<1x128xf32> to vector<8x128xf32>
    %411 = vector.broadcast %cst_118 : f32 to vector<8x128xf32>
    %412 = arith.select %408, %410, %411 : vector<8x128xi1>, vector<8x128xf32>
    %413 = arith.addf %403, %412 : vector<8x128xf32>
    %414 = math.absf %331 : vector<1x128xf32>
    %415 = arith.mulf %324, %414 : vector<1x128xf32>
    %c5_i32_119 = arith.constant 5 : i32
    %416 = vector.broadcast %c5_i32_119 : i32 to vector<8x1xi32>
    %417 = arith.cmpi eq, %42, %416 : vector<8x1xi32>
    %cst_120 = arith.constant 0.000000e+00 : f32
    %418 = vector.shape_cast %417 : vector<8x1xi1> to vector<8x1xi1>
    %419 = vector.broadcast %418 : vector<8x1xi1> to vector<8x128xi1>
    %420 = vector.shape_cast %415 : vector<1x128xf32> to vector<1x128xf32>
    %421 = vector.broadcast %420 : vector<1x128xf32> to vector<8x128xf32>
    %422 = vector.broadcast %cst_120 : f32 to vector<8x128xf32>
    %423 = arith.select %419, %421, %422 : vector<8x128xi1>, vector<8x128xf32>
    %424 = arith.addf %413, %423 : vector<8x128xf32>
    %c6_i32_121 = arith.constant 6 : i32
    %425 = vector.broadcast %c6_i32_121 : i32 to vector<8x1xi32>
    %426 = arith.cmpi eq, %42, %425 : vector<8x1xi32>
    %cst_122 = arith.constant 0.000000e+00 : f32
    %427 = vector.shape_cast %426 : vector<8x1xi1> to vector<8x1xi1>
    %428 = vector.broadcast %427 : vector<8x1xi1> to vector<8x128xi1>
    %429 = vector.shape_cast %337 : vector<1x128xf32> to vector<1x128xf32>
    %430 = vector.broadcast %429 : vector<1x128xf32> to vector<8x128xf32>
    %431 = vector.broadcast %cst_122 : f32 to vector<8x128xf32>
    %432 = arith.select %428, %430, %431 : vector<8x128xi1>, vector<8x128xf32>
    %433 = arith.addf %424, %432 : vector<8x128xf32>
    %434 = arith.mulf %337, %332 : vector<1x128xf32>
    %c7_i32_123 = arith.constant 7 : i32
    %435 = vector.broadcast %c7_i32_123 : i32 to vector<8x1xi32>
    %436 = arith.cmpi eq, %42, %435 : vector<8x1xi32>
    %cst_124 = arith.constant 0.000000e+00 : f32
    %437 = vector.shape_cast %436 : vector<8x1xi1> to vector<8x1xi1>
    %438 = vector.broadcast %437 : vector<8x1xi1> to vector<8x128xi1>
    %439 = vector.shape_cast %434 : vector<1x128xf32> to vector<1x128xf32>
    %440 = vector.broadcast %439 : vector<1x128xf32> to vector<8x128xf32>
    %441 = vector.broadcast %cst_124 : f32 to vector<8x128xf32>
    %442 = arith.select %438, %440, %441 : vector<8x128xi1>, vector<8x128xf32>
    %443 = arith.addf %433, %442 : vector<8x128xf32>
    %cst_125 = arith.constant dense<0.000000e+00> : vector<8x32xf32>
    %444 = tpu.matmul %443, %361, %cst_125 {dimension_numbers = #tpu.dot_dimension_numbers<[1], [1], [0], [0], [0, 0, 1, 0], [], []>} : vector<8x128xf32>, vector<32x128xf32>, vector<8x32xf32> -> vector<8x32xf32>
    %445 = arith.addf %311, %444 : vector<8x32xf32>
    %cst_126 = arith.constant dense<0.000000e+00> : vector<8x32xf32>
    %446 = tpu.matmul %443, %367, %cst_126 {dimension_numbers = #tpu.dot_dimension_numbers<[1], [1], [0], [0], [0, 0, 1, 0], [], []>} : vector<8x128xf32>, vector<32x128xf32>, vector<8x32xf32> -> vector<8x32xf32>
    %447 = arith.addf %313, %446 : vector<8x32xf32>
    %c3_i32_127 = arith.constant 3 : i32
    %448 = arith.index_cast %c3_i32_127 : i32 to index
    %c0_128 = arith.constant 0 : index
    %449 = vector.load %arg1[%448, %c0_128] : memref<8x128xf32, #tpu.memory_space<vmem>>, vector<1x128xf32>
    %450 = arith.index_cast %c3_i32_127 : i32 to index
    %c0_129 = arith.constant 0 : index
    %451 = vector.load %arg2[%450, %c0_129] : memref<8x128xf32, #tpu.memory_space<vmem>>, vector<1x128xf32>
    %452 = arith.index_cast %c3_i32_127 : i32 to index
    %c0_130 = arith.constant 0 : index
    %453 = vector.load %arg3[%452, %c0_130] : memref<8x128xf32, #tpu.memory_space<vmem>>, vector<1x128xf32>
    %cst_131 = arith.constant 1.000000e+00 : f32
    %454 = vector.broadcast %cst_131 : f32 to vector<1x128xf32>
    %455 = arith.cmpf oeq, %449, %454 : vector<1x128xf32>
    %cst_132 = arith.constant 1.000000e+00 : f32
    %cst_133 = arith.constant 0.000000e+00 : f32
    %456 = vector.broadcast %cst_132 : f32 to vector<1x128xf32>
    %457 = vector.broadcast %cst_133 : f32 to vector<1x128xf32>
    %458 = arith.select %455, %456, %457 : vector<1x128xi1>, vector<1x128xf32>
    %cst_134 = arith.constant 0.000000e+00 : f32
    %459 = vector.broadcast %cst_134 : f32 to vector<1x128xf32>
    %460 = arith.cmpf oeq, %449, %459 : vector<1x128xf32>
    %cst_135 = arith.constant 1.000000e+00 : f32
    %cst_136 = arith.constant 0.000000e+00 : f32
    %461 = vector.broadcast %cst_135 : f32 to vector<1x128xf32>
    %462 = vector.broadcast %cst_136 : f32 to vector<1x128xf32>
    %463 = arith.select %460, %461, %462 : vector<1x128xi1>, vector<1x128xf32>
    %464 = arith.mulf %463, %451 : vector<1x128xf32>
    %465 = arith.subf %451, %453 : vector<1x128xf32>
    %466 = arith.mulf %465, %465 : vector<1x128xf32>
    %467 = arith.cmpf olt, %453, %451 : vector<1x128xf32>
    %cst_137 = arith.constant 1.000000e+00 : f32
    %cst_138 = arith.constant 0.000000e+00 : f32
    %468 = vector.broadcast %cst_137 : f32 to vector<1x128xf32>
    %469 = vector.broadcast %cst_138 : f32 to vector<1x128xf32>
    %470 = arith.select %467, %468, %469 : vector<1x128xi1>, vector<1x128xf32>
    %471 = arith.mulf %463, %470 : vector<1x128xf32>
    %472 = vector.broadcast %27 : vector<1x1xf32> to vector<1x128xf32>
    %473 = arith.subf %451, %472 : vector<1x128xf32>
    %474 = vector.broadcast %35 : vector<1x1xf32> to vector<1x128xf32>
    %475 = arith.mulf %473, %474 : vector<1x128xf32>
    %476 = math.ceil %475 : vector<1x128xf32>
    %cst_139 = arith.constant 1.000000e+00 : f32
    %cst_140 = arith.constant 3.000000e+01 : f32
    %477 = vector.broadcast %cst_139 : f32 to vector<1x128xf32>
    %478 = arith.maximumf %477, %476 : vector<1x128xf32>
    %479 = vector.broadcast %cst_140 : f32 to vector<1x128xf32>
    %480 = arith.minimumf %479, %478 : vector<1x128xf32>
    %cst_141 = arith.constant 1.000000e+00 : f32
    %481 = vector.broadcast %cst_141 : f32 to vector<1x128xf32>
    %482 = arith.subf %480, %481 : vector<1x128xf32>
    %483 = arith.fptosi %482 : vector<1x128xf32> to vector<1x128xi32>
    %484 = math.floor %475 : vector<1x128xf32>
    %cst_142 = arith.constant 0.000000e+00 : f32
    %cst_143 = arith.constant 2.900000e+01 : f32
    %485 = vector.broadcast %cst_142 : f32 to vector<1x128xf32>
    %486 = arith.maximumf %485, %484 : vector<1x128xf32>
    %487 = vector.broadcast %cst_143 : f32 to vector<1x128xf32>
    %488 = arith.minimumf %487, %486 : vector<1x128xf32>
    %489 = arith.fptosi %488 : vector<1x128xf32> to vector<1x128xi32>
    %490 = vector.broadcast %43 : vector<32x1xi32> to vector<32x128xi32>
    %491 = vector.broadcast %489 : vector<1x128xi32> to vector<32x128xi32>
    %492 = arith.cmpi eq, %490, %491 : vector<32x128xi32>
    %cst_144 = arith.constant 1.000000e+00 : f32
    %cst_145 = arith.constant 0.000000e+00 : f32
    %493 = vector.broadcast %cst_144 : f32 to vector<32x128xf32>
    %494 = vector.broadcast %cst_145 : f32 to vector<32x128xf32>
    %495 = arith.select %492, %493, %494 : vector<32x128xi1>, vector<32x128xf32>
    %496 = vector.broadcast %43 : vector<32x1xi32> to vector<32x128xi32>
    %497 = vector.broadcast %483 : vector<1x128xi32> to vector<32x128xi32>
    %498 = arith.cmpi eq, %496, %497 : vector<32x128xi32>
    %cst_146 = arith.constant 1.000000e+00 : f32
    %cst_147 = arith.constant 0.000000e+00 : f32
    %499 = vector.broadcast %cst_146 : f32 to vector<32x128xf32>
    %500 = vector.broadcast %cst_147 : f32 to vector<32x128xf32>
    %501 = arith.select %498, %499, %500 : vector<32x128xi1>, vector<32x128xf32>
    %c0_i32_148 = arith.constant 0 : i32
    %502 = vector.broadcast %c0_i32_148 : i32 to vector<8x1xi32>
    %503 = arith.cmpi eq, %42, %502 : vector<8x1xi32>
    %cst_149 = arith.constant 0.000000e+00 : f32
    %504 = vector.shape_cast %503 : vector<8x1xi1> to vector<8x1xi1>
    %505 = vector.broadcast %504 : vector<8x1xi1> to vector<8x128xi1>
    %506 = vector.shape_cast %463 : vector<1x128xf32> to vector<1x128xf32>
    %507 = vector.broadcast %506 : vector<1x128xf32> to vector<8x128xf32>
    %508 = vector.broadcast %cst_149 : f32 to vector<8x128xf32>
    %509 = arith.select %505, %507, %508 : vector<8x128xi1>, vector<8x128xf32>
    %c1_i32_150 = arith.constant 1 : i32
    %510 = vector.broadcast %c1_i32_150 : i32 to vector<8x1xi32>
    %511 = arith.cmpi eq, %42, %510 : vector<8x1xi32>
    %cst_151 = arith.constant 0.000000e+00 : f32
    %512 = vector.shape_cast %511 : vector<8x1xi1> to vector<8x1xi1>
    %513 = vector.broadcast %512 : vector<8x1xi1> to vector<8x128xi1>
    %514 = vector.shape_cast %464 : vector<1x128xf32> to vector<1x128xf32>
    %515 = vector.broadcast %514 : vector<1x128xf32> to vector<8x128xf32>
    %516 = vector.broadcast %cst_151 : f32 to vector<8x128xf32>
    %517 = arith.select %513, %515, %516 : vector<8x128xi1>, vector<8x128xf32>
    %518 = arith.addf %509, %517 : vector<8x128xf32>
    %c2_i32_152 = arith.constant 2 : i32
    %519 = vector.broadcast %c2_i32_152 : i32 to vector<8x1xi32>
    %520 = arith.cmpi eq, %42, %519 : vector<8x1xi32>
    %cst_153 = arith.constant 0.000000e+00 : f32
    %521 = vector.shape_cast %520 : vector<8x1xi1> to vector<8x1xi1>
    %522 = vector.broadcast %521 : vector<8x1xi1> to vector<8x128xi1>
    %523 = vector.shape_cast %458 : vector<1x128xf32> to vector<1x128xf32>
    %524 = vector.broadcast %523 : vector<1x128xf32> to vector<8x128xf32>
    %525 = vector.broadcast %cst_153 : f32 to vector<8x128xf32>
    %526 = arith.select %522, %524, %525 : vector<8x128xi1>, vector<8x128xf32>
    %527 = arith.addf %518, %526 : vector<8x128xf32>
    %528 = arith.mulf %458, %451 : vector<1x128xf32>
    %c3_i32_154 = arith.constant 3 : i32
    %529 = vector.broadcast %c3_i32_154 : i32 to vector<8x1xi32>
    %530 = arith.cmpi eq, %42, %529 : vector<8x1xi32>
    %cst_155 = arith.constant 0.000000e+00 : f32
    %531 = vector.shape_cast %530 : vector<8x1xi1> to vector<8x1xi1>
    %532 = vector.broadcast %531 : vector<8x1xi1> to vector<8x128xi1>
    %533 = vector.shape_cast %528 : vector<1x128xf32> to vector<1x128xf32>
    %534 = vector.broadcast %533 : vector<1x128xf32> to vector<8x128xf32>
    %535 = vector.broadcast %cst_155 : f32 to vector<8x128xf32>
    %536 = arith.select %532, %534, %535 : vector<8x128xi1>, vector<8x128xf32>
    %537 = arith.addf %527, %536 : vector<8x128xf32>
    %538 = arith.mulf %458, %466 : vector<1x128xf32>
    %c4_i32_156 = arith.constant 4 : i32
    %539 = vector.broadcast %c4_i32_156 : i32 to vector<8x1xi32>
    %540 = arith.cmpi eq, %42, %539 : vector<8x1xi32>
    %cst_157 = arith.constant 0.000000e+00 : f32
    %541 = vector.shape_cast %540 : vector<8x1xi1> to vector<8x1xi1>
    %542 = vector.broadcast %541 : vector<8x1xi1> to vector<8x128xi1>
    %543 = vector.shape_cast %538 : vector<1x128xf32> to vector<1x128xf32>
    %544 = vector.broadcast %543 : vector<1x128xf32> to vector<8x128xf32>
    %545 = vector.broadcast %cst_157 : f32 to vector<8x128xf32>
    %546 = arith.select %542, %544, %545 : vector<8x128xi1>, vector<8x128xf32>
    %547 = arith.addf %537, %546 : vector<8x128xf32>
    %548 = math.absf %465 : vector<1x128xf32>
    %549 = arith.mulf %458, %548 : vector<1x128xf32>
    %c5_i32_158 = arith.constant 5 : i32
    %550 = vector.broadcast %c5_i32_158 : i32 to vector<8x1xi32>
    %551 = arith.cmpi eq, %42, %550 : vector<8x1xi32>
    %cst_159 = arith.constant 0.000000e+00 : f32
    %552 = vector.shape_cast %551 : vector<8x1xi1> to vector<8x1xi1>
    %553 = vector.broadcast %552 : vector<8x1xi1> to vector<8x128xi1>
    %554 = vector.shape_cast %549 : vector<1x128xf32> to vector<1x128xf32>
    %555 = vector.broadcast %554 : vector<1x128xf32> to vector<8x128xf32>
    %556 = vector.broadcast %cst_159 : f32 to vector<8x128xf32>
    %557 = arith.select %553, %555, %556 : vector<8x128xi1>, vector<8x128xf32>
    %558 = arith.addf %547, %557 : vector<8x128xf32>
    %c6_i32_160 = arith.constant 6 : i32
    %559 = vector.broadcast %c6_i32_160 : i32 to vector<8x1xi32>
    %560 = arith.cmpi eq, %42, %559 : vector<8x1xi32>
    %cst_161 = arith.constant 0.000000e+00 : f32
    %561 = vector.shape_cast %560 : vector<8x1xi1> to vector<8x1xi1>
    %562 = vector.broadcast %561 : vector<8x1xi1> to vector<8x128xi1>
    %563 = vector.shape_cast %471 : vector<1x128xf32> to vector<1x128xf32>
    %564 = vector.broadcast %563 : vector<1x128xf32> to vector<8x128xf32>
    %565 = vector.broadcast %cst_161 : f32 to vector<8x128xf32>
    %566 = arith.select %562, %564, %565 : vector<8x128xi1>, vector<8x128xf32>
    %567 = arith.addf %558, %566 : vector<8x128xf32>
    %568 = arith.mulf %471, %466 : vector<1x128xf32>
    %c7_i32_162 = arith.constant 7 : i32
    %569 = vector.broadcast %c7_i32_162 : i32 to vector<8x1xi32>
    %570 = arith.cmpi eq, %42, %569 : vector<8x1xi32>
    %cst_163 = arith.constant 0.000000e+00 : f32
    %571 = vector.shape_cast %570 : vector<8x1xi1> to vector<8x1xi1>
    %572 = vector.broadcast %571 : vector<8x1xi1> to vector<8x128xi1>
    %573 = vector.shape_cast %568 : vector<1x128xf32> to vector<1x128xf32>
    %574 = vector.broadcast %573 : vector<1x128xf32> to vector<8x128xf32>
    %575 = vector.broadcast %cst_163 : f32 to vector<8x128xf32>
    %576 = arith.select %572, %574, %575 : vector<8x128xi1>, vector<8x128xf32>
    %577 = arith.addf %567, %576 : vector<8x128xf32>
    %cst_164 = arith.constant dense<0.000000e+00> : vector<8x32xf32>
    %578 = tpu.matmul %577, %495, %cst_164 {dimension_numbers = #tpu.dot_dimension_numbers<[1], [1], [0], [0], [0, 0, 1, 0], [], []>} : vector<8x128xf32>, vector<32x128xf32>, vector<8x32xf32> -> vector<8x32xf32>
    %579 = arith.addf %445, %578 : vector<8x32xf32>
    %cst_165 = arith.constant dense<0.000000e+00> : vector<8x32xf32>
    %580 = tpu.matmul %577, %501, %cst_165 {dimension_numbers = #tpu.dot_dimension_numbers<[1], [1], [0], [0], [0, 0, 1, 0], [], []>} : vector<8x128xf32>, vector<32x128xf32>, vector<8x32xf32> -> vector<8x32xf32>
    %581 = arith.addf %447, %580 : vector<8x32xf32>
    %c4_i32_166 = arith.constant 4 : i32
    %582 = arith.index_cast %c4_i32_166 : i32 to index
    %c0_167 = arith.constant 0 : index
    %583 = vector.load %arg1[%582, %c0_167] : memref<8x128xf32, #tpu.memory_space<vmem>>, vector<1x128xf32>
    %584 = arith.index_cast %c4_i32_166 : i32 to index
    %c0_168 = arith.constant 0 : index
    %585 = vector.load %arg2[%584, %c0_168] : memref<8x128xf32, #tpu.memory_space<vmem>>, vector<1x128xf32>
    %586 = arith.index_cast %c4_i32_166 : i32 to index
    %c0_169 = arith.constant 0 : index
    %587 = vector.load %arg3[%586, %c0_169] : memref<8x128xf32, #tpu.memory_space<vmem>>, vector<1x128xf32>
    %cst_170 = arith.constant 1.000000e+00 : f32
    %588 = vector.broadcast %cst_170 : f32 to vector<1x128xf32>
    %589 = arith.cmpf oeq, %583, %588 : vector<1x128xf32>
    %cst_171 = arith.constant 1.000000e+00 : f32
    %cst_172 = arith.constant 0.000000e+00 : f32
    %590 = vector.broadcast %cst_171 : f32 to vector<1x128xf32>
    %591 = vector.broadcast %cst_172 : f32 to vector<1x128xf32>
    %592 = arith.select %589, %590, %591 : vector<1x128xi1>, vector<1x128xf32>
    %cst_173 = arith.constant 0.000000e+00 : f32
    %593 = vector.broadcast %cst_173 : f32 to vector<1x128xf32>
    %594 = arith.cmpf oeq, %583, %593 : vector<1x128xf32>
    %cst_174 = arith.constant 1.000000e+00 : f32
    %cst_175 = arith.constant 0.000000e+00 : f32
    %595 = vector.broadcast %cst_174 : f32 to vector<1x128xf32>
    %596 = vector.broadcast %cst_175 : f32 to vector<1x128xf32>
    %597 = arith.select %594, %595, %596 : vector<1x128xi1>, vector<1x128xf32>
    %598 = arith.mulf %597, %585 : vector<1x128xf32>
    %599 = arith.subf %585, %587 : vector<1x128xf32>
    %600 = arith.mulf %599, %599 : vector<1x128xf32>
    %601 = arith.cmpf olt, %587, %585 : vector<1x128xf32>
    %cst_176 = arith.constant 1.000000e+00 : f32
    %cst_177 = arith.constant 0.000000e+00 : f32
    %602 = vector.broadcast %cst_176 : f32 to vector<1x128xf32>
    %603 = vector.broadcast %cst_177 : f32 to vector<1x128xf32>
    %604 = arith.select %601, %602, %603 : vector<1x128xi1>, vector<1x128xf32>
    %605 = arith.mulf %597, %604 : vector<1x128xf32>
    %606 = vector.broadcast %27 : vector<1x1xf32> to vector<1x128xf32>
    %607 = arith.subf %585, %606 : vector<1x128xf32>
    %608 = vector.broadcast %35 : vector<1x1xf32> to vector<1x128xf32>
    %609 = arith.mulf %607, %608 : vector<1x128xf32>
    %610 = math.ceil %609 : vector<1x128xf32>
    %cst_178 = arith.constant 1.000000e+00 : f32
    %cst_179 = arith.constant 3.000000e+01 : f32
    %611 = vector.broadcast %cst_178 : f32 to vector<1x128xf32>
    %612 = arith.maximumf %611, %610 : vector<1x128xf32>
    %613 = vector.broadcast %cst_179 : f32 to vector<1x128xf32>
    %614 = arith.minimumf %613, %612 : vector<1x128xf32>
    %cst_180 = arith.constant 1.000000e+00 : f32
    %615 = vector.broadcast %cst_180 : f32 to vector<1x128xf32>
    %616 = arith.subf %614, %615 : vector<1x128xf32>
    %617 = arith.fptosi %616 : vector<1x128xf32> to vector<1x128xi32>
    %618 = math.floor %609 : vector<1x128xf32>
    %cst_181 = arith.constant 0.000000e+00 : f32
    %cst_182 = arith.constant 2.900000e+01 : f32
    %619 = vector.broadcast %cst_181 : f32 to vector<1x128xf32>
    %620 = arith.maximumf %619, %618 : vector<1x128xf32>
    %621 = vector.broadcast %cst_182 : f32 to vector<1x128xf32>
    %622 = arith.minimumf %621, %620 : vector<1x128xf32>
    %623 = arith.fptosi %622 : vector<1x128xf32> to vector<1x128xi32>
    %624 = vector.broadcast %43 : vector<32x1xi32> to vector<32x128xi32>
    %625 = vector.broadcast %623 : vector<1x128xi32> to vector<32x128xi32>
    %626 = arith.cmpi eq, %624, %625 : vector<32x128xi32>
    %cst_183 = arith.constant 1.000000e+00 : f32
    %cst_184 = arith.constant 0.000000e+00 : f32
    %627 = vector.broadcast %cst_183 : f32 to vector<32x128xf32>
    %628 = vector.broadcast %cst_184 : f32 to vector<32x128xf32>
    %629 = arith.select %626, %627, %628 : vector<32x128xi1>, vector<32x128xf32>
    %630 = vector.broadcast %43 : vector<32x1xi32> to vector<32x128xi32>
    %631 = vector.broadcast %617 : vector<1x128xi32> to vector<32x128xi32>
    %632 = arith.cmpi eq, %630, %631 : vector<32x128xi32>
    %cst_185 = arith.constant 1.000000e+00 : f32
    %cst_186 = arith.constant 0.000000e+00 : f32
    %633 = vector.broadcast %cst_185 : f32 to vector<32x128xf32>
    %634 = vector.broadcast %cst_186 : f32 to vector<32x128xf32>
    %635 = arith.select %632, %633, %634 : vector<32x128xi1>, vector<32x128xf32>
    %c0_i32_187 = arith.constant 0 : i32
    %636 = vector.broadcast %c0_i32_187 : i32 to vector<8x1xi32>
    %637 = arith.cmpi eq, %42, %636 : vector<8x1xi32>
    %cst_188 = arith.constant 0.000000e+00 : f32
    %638 = vector.shape_cast %637 : vector<8x1xi1> to vector<8x1xi1>
    %639 = vector.broadcast %638 : vector<8x1xi1> to vector<8x128xi1>
    %640 = vector.shape_cast %597 : vector<1x128xf32> to vector<1x128xf32>
    %641 = vector.broadcast %640 : vector<1x128xf32> to vector<8x128xf32>
    %642 = vector.broadcast %cst_188 : f32 to vector<8x128xf32>
    %643 = arith.select %639, %641, %642 : vector<8x128xi1>, vector<8x128xf32>
    %c1_i32_189 = arith.constant 1 : i32
    %644 = vector.broadcast %c1_i32_189 : i32 to vector<8x1xi32>
    %645 = arith.cmpi eq, %42, %644 : vector<8x1xi32>
    %cst_190 = arith.constant 0.000000e+00 : f32
    %646 = vector.shape_cast %645 : vector<8x1xi1> to vector<8x1xi1>
    %647 = vector.broadcast %646 : vector<8x1xi1> to vector<8x128xi1>
    %648 = vector.shape_cast %598 : vector<1x128xf32> to vector<1x128xf32>
    %649 = vector.broadcast %648 : vector<1x128xf32> to vector<8x128xf32>
    %650 = vector.broadcast %cst_190 : f32 to vector<8x128xf32>
    %651 = arith.select %647, %649, %650 : vector<8x128xi1>, vector<8x128xf32>
    %652 = arith.addf %643, %651 : vector<8x128xf32>
    %c2_i32_191 = arith.constant 2 : i32
    %653 = vector.broadcast %c2_i32_191 : i32 to vector<8x1xi32>
    %654 = arith.cmpi eq, %42, %653 : vector<8x1xi32>
    %cst_192 = arith.constant 0.000000e+00 : f32
    %655 = vector.shape_cast %654 : vector<8x1xi1> to vector<8x1xi1>
    %656 = vector.broadcast %655 : vector<8x1xi1> to vector<8x128xi1>
    %657 = vector.shape_cast %592 : vector<1x128xf32> to vector<1x128xf32>
    %658 = vector.broadcast %657 : vector<1x128xf32> to vector<8x128xf32>
    %659 = vector.broadcast %cst_192 : f32 to vector<8x128xf32>
    %660 = arith.select %656, %658, %659 : vector<8x128xi1>, vector<8x128xf32>
    %661 = arith.addf %652, %660 : vector<8x128xf32>
    %662 = arith.mulf %592, %585 : vector<1x128xf32>
    %c3_i32_193 = arith.constant 3 : i32
    %663 = vector.broadcast %c3_i32_193 : i32 to vector<8x1xi32>
    %664 = arith.cmpi eq, %42, %663 : vector<8x1xi32>
    %cst_194 = arith.constant 0.000000e+00 : f32
    %665 = vector.shape_cast %664 : vector<8x1xi1> to vector<8x1xi1>
    %666 = vector.broadcast %665 : vector<8x1xi1> to vector<8x128xi1>
    %667 = vector.shape_cast %662 : vector<1x128xf32> to vector<1x128xf32>
    %668 = vector.broadcast %667 : vector<1x128xf32> to vector<8x128xf32>
    %669 = vector.broadcast %cst_194 : f32 to vector<8x128xf32>
    %670 = arith.select %666, %668, %669 : vector<8x128xi1>, vector<8x128xf32>
    %671 = arith.addf %661, %670 : vector<8x128xf32>
    %672 = arith.mulf %592, %600 : vector<1x128xf32>
    %c4_i32_195 = arith.constant 4 : i32
    %673 = vector.broadcast %c4_i32_195 : i32 to vector<8x1xi32>
    %674 = arith.cmpi eq, %42, %673 : vector<8x1xi32>
    %cst_196 = arith.constant 0.000000e+00 : f32
    %675 = vector.shape_cast %674 : vector<8x1xi1> to vector<8x1xi1>
    %676 = vector.broadcast %675 : vector<8x1xi1> to vector<8x128xi1>
    %677 = vector.shape_cast %672 : vector<1x128xf32> to vector<1x128xf32>
    %678 = vector.broadcast %677 : vector<1x128xf32> to vector<8x128xf32>
    %679 = vector.broadcast %cst_196 : f32 to vector<8x128xf32>
    %680 = arith.select %676, %678, %679 : vector<8x128xi1>, vector<8x128xf32>
    %681 = arith.addf %671, %680 : vector<8x128xf32>
    %682 = math.absf %599 : vector<1x128xf32>
    %683 = arith.mulf %592, %682 : vector<1x128xf32>
    %c5_i32_197 = arith.constant 5 : i32
    %684 = vector.broadcast %c5_i32_197 : i32 to vector<8x1xi32>
    %685 = arith.cmpi eq, %42, %684 : vector<8x1xi32>
    %cst_198 = arith.constant 0.000000e+00 : f32
    %686 = vector.shape_cast %685 : vector<8x1xi1> to vector<8x1xi1>
    %687 = vector.broadcast %686 : vector<8x1xi1> to vector<8x128xi1>
    %688 = vector.shape_cast %683 : vector<1x128xf32> to vector<1x128xf32>
    %689 = vector.broadcast %688 : vector<1x128xf32> to vector<8x128xf32>
    %690 = vector.broadcast %cst_198 : f32 to vector<8x128xf32>
    %691 = arith.select %687, %689, %690 : vector<8x128xi1>, vector<8x128xf32>
    %692 = arith.addf %681, %691 : vector<8x128xf32>
    %c6_i32_199 = arith.constant 6 : i32
    %693 = vector.broadcast %c6_i32_199 : i32 to vector<8x1xi32>
    %694 = arith.cmpi eq, %42, %693 : vector<8x1xi32>
    %cst_200 = arith.constant 0.000000e+00 : f32
    %695 = vector.shape_cast %694 : vector<8x1xi1> to vector<8x1xi1>
    %696 = vector.broadcast %695 : vector<8x1xi1> to vector<8x128xi1>
    %697 = vector.shape_cast %605 : vector<1x128xf32> to vector<1x128xf32>
    %698 = vector.broadcast %697 : vector<1x128xf32> to vector<8x128xf32>
    %699 = vector.broadcast %cst_200 : f32 to vector<8x128xf32>
    %700 = arith.select %696, %698, %699 : vector<8x128xi1>, vector<8x128xf32>
    %701 = arith.addf %692, %700 : vector<8x128xf32>
    %702 = arith.mulf %605, %600 : vector<1x128xf32>
    %c7_i32_201 = arith.constant 7 : i32
    %703 = vector.broadcast %c7_i32_201 : i32 to vector<8x1xi32>
    %704 = arith.cmpi eq, %42, %703 : vector<8x1xi32>
    %cst_202 = arith.constant 0.000000e+00 : f32
    %705 = vector.shape_cast %704 : vector<8x1xi1> to vector<8x1xi1>
    %706 = vector.broadcast %705 : vector<8x1xi1> to vector<8x128xi1>
    %707 = vector.shape_cast %702 : vector<1x128xf32> to vector<1x128xf32>
    %708 = vector.broadcast %707 : vector<1x128xf32> to vector<8x128xf32>
    %709 = vector.broadcast %cst_202 : f32 to vector<8x128xf32>
    %710 = arith.select %706, %708, %709 : vector<8x128xi1>, vector<8x128xf32>
    %711 = arith.addf %701, %710 : vector<8x128xf32>
    %cst_203 = arith.constant dense<0.000000e+00> : vector<8x32xf32>
    %712 = tpu.matmul %711, %629, %cst_203 {dimension_numbers = #tpu.dot_dimension_numbers<[1], [1], [0], [0], [0, 0, 1, 0], [], []>} : vector<8x128xf32>, vector<32x128xf32>, vector<8x32xf32> -> vector<8x32xf32>
    %713 = arith.addf %579, %712 : vector<8x32xf32>
    %cst_204 = arith.constant dense<0.000000e+00> : vector<8x32xf32>
    %714 = tpu.matmul %711, %635, %cst_204 {dimension_numbers = #tpu.dot_dimension_numbers<[1], [1], [0], [0], [0, 0, 1, 0], [], []>} : vector<8x128xf32>, vector<32x128xf32>, vector<8x32xf32> -> vector<8x32xf32>
    %715 = arith.addf %581, %714 : vector<8x32xf32>
    %c5_i32_205 = arith.constant 5 : i32
    %716 = arith.index_cast %c5_i32_205 : i32 to index
    %c0_206 = arith.constant 0 : index
    %717 = vector.load %arg1[%716, %c0_206] : memref<8x128xf32, #tpu.memory_space<vmem>>, vector<1x128xf32>
    %718 = arith.index_cast %c5_i32_205 : i32 to index
    %c0_207 = arith.constant 0 : index
    %719 = vector.load %arg2[%718, %c0_207] : memref<8x128xf32, #tpu.memory_space<vmem>>, vector<1x128xf32>
    %720 = arith.index_cast %c5_i32_205 : i32 to index
    %c0_208 = arith.constant 0 : index
    %721 = vector.load %arg3[%720, %c0_208] : memref<8x128xf32, #tpu.memory_space<vmem>>, vector<1x128xf32>
    %cst_209 = arith.constant 1.000000e+00 : f32
    %722 = vector.broadcast %cst_209 : f32 to vector<1x128xf32>
    %723 = arith.cmpf oeq, %717, %722 : vector<1x128xf32>
    %cst_210 = arith.constant 1.000000e+00 : f32
    %cst_211 = arith.constant 0.000000e+00 : f32
    %724 = vector.broadcast %cst_210 : f32 to vector<1x128xf32>
    %725 = vector.broadcast %cst_211 : f32 to vector<1x128xf32>
    %726 = arith.select %723, %724, %725 : vector<1x128xi1>, vector<1x128xf32>
    %cst_212 = arith.constant 0.000000e+00 : f32
    %727 = vector.broadcast %cst_212 : f32 to vector<1x128xf32>
    %728 = arith.cmpf oeq, %717, %727 : vector<1x128xf32>
    %cst_213 = arith.constant 1.000000e+00 : f32
    %cst_214 = arith.constant 0.000000e+00 : f32
    %729 = vector.broadcast %cst_213 : f32 to vector<1x128xf32>
    %730 = vector.broadcast %cst_214 : f32 to vector<1x128xf32>
    %731 = arith.select %728, %729, %730 : vector<1x128xi1>, vector<1x128xf32>
    %732 = arith.mulf %731, %719 : vector<1x128xf32>
    %733 = arith.subf %719, %721 : vector<1x128xf32>
    %734 = arith.mulf %733, %733 : vector<1x128xf32>
    %735 = arith.cmpf olt, %721, %719 : vector<1x128xf32>
    %cst_215 = arith.constant 1.000000e+00 : f32
    %cst_216 = arith.constant 0.000000e+00 : f32
    %736 = vector.broadcast %cst_215 : f32 to vector<1x128xf32>
    %737 = vector.broadcast %cst_216 : f32 to vector<1x128xf32>
    %738 = arith.select %735, %736, %737 : vector<1x128xi1>, vector<1x128xf32>
    %739 = arith.mulf %731, %738 : vector<1x128xf32>
    %740 = vector.broadcast %27 : vector<1x1xf32> to vector<1x128xf32>
    %741 = arith.subf %719, %740 : vector<1x128xf32>
    %742 = vector.broadcast %35 : vector<1x1xf32> to vector<1x128xf32>
    %743 = arith.mulf %741, %742 : vector<1x128xf32>
    %744 = math.ceil %743 : vector<1x128xf32>
    %cst_217 = arith.constant 1.000000e+00 : f32
    %cst_218 = arith.constant 3.000000e+01 : f32
    %745 = vector.broadcast %cst_217 : f32 to vector<1x128xf32>
    %746 = arith.maximumf %745, %744 : vector<1x128xf32>
    %747 = vector.broadcast %cst_218 : f32 to vector<1x128xf32>
    %748 = arith.minimumf %747, %746 : vector<1x128xf32>
    %cst_219 = arith.constant 1.000000e+00 : f32
    %749 = vector.broadcast %cst_219 : f32 to vector<1x128xf32>
    %750 = arith.subf %748, %749 : vector<1x128xf32>
    %751 = arith.fptosi %750 : vector<1x128xf32> to vector<1x128xi32>
    %752 = math.floor %743 : vector<1x128xf32>
    %cst_220 = arith.constant 0.000000e+00 : f32
    %cst_221 = arith.constant 2.900000e+01 : f32
    %753 = vector.broadcast %cst_220 : f32 to vector<1x128xf32>
    %754 = arith.maximumf %753, %752 : vector<1x128xf32>
    %755 = vector.broadcast %cst_221 : f32 to vector<1x128xf32>
    %756 = arith.minimumf %755, %754 : vector<1x128xf32>
    %757 = arith.fptosi %756 : vector<1x128xf32> to vector<1x128xi32>
    %758 = vector.broadcast %43 : vector<32x1xi32> to vector<32x128xi32>
    %759 = vector.broadcast %757 : vector<1x128xi32> to vector<32x128xi32>
    %760 = arith.cmpi eq, %758, %759 : vector<32x128xi32>
    %cst_222 = arith.constant 1.000000e+00 : f32
    %cst_223 = arith.constant 0.000000e+00 : f32
    %761 = vector.broadcast %cst_222 : f32 to vector<32x128xf32>
    %762 = vector.broadcast %cst_223 : f32 to vector<32x128xf32>
    %763 = arith.select %760, %761, %762 : vector<32x128xi1>, vector<32x128xf32>
    %764 = vector.broadcast %43 : vector<32x1xi32> to vector<32x128xi32>
    %765 = vector.broadcast %751 : vector<1x128xi32> to vector<32x128xi32>
    %766 = arith.cmpi eq, %764, %765 : vector<32x128xi32>
    %cst_224 = arith.constant 1.000000e+00 : f32
    %cst_225 = arith.constant 0.000000e+00 : f32
    %767 = vector.broadcast %cst_224 : f32 to vector<32x128xf32>
    %768 = vector.broadcast %cst_225 : f32 to vector<32x128xf32>
    %769 = arith.select %766, %767, %768 : vector<32x128xi1>, vector<32x128xf32>
    %c0_i32_226 = arith.constant 0 : i32
    %770 = vector.broadcast %c0_i32_226 : i32 to vector<8x1xi32>
    %771 = arith.cmpi eq, %42, %770 : vector<8x1xi32>
    %cst_227 = arith.constant 0.000000e+00 : f32
    %772 = vector.shape_cast %771 : vector<8x1xi1> to vector<8x1xi1>
    %773 = vector.broadcast %772 : vector<8x1xi1> to vector<8x128xi1>
    %774 = vector.shape_cast %731 : vector<1x128xf32> to vector<1x128xf32>
    %775 = vector.broadcast %774 : vector<1x128xf32> to vector<8x128xf32>
    %776 = vector.broadcast %cst_227 : f32 to vector<8x128xf32>
    %777 = arith.select %773, %775, %776 : vector<8x128xi1>, vector<8x128xf32>
    %c1_i32_228 = arith.constant 1 : i32
    %778 = vector.broadcast %c1_i32_228 : i32 to vector<8x1xi32>
    %779 = arith.cmpi eq, %42, %778 : vector<8x1xi32>
    %cst_229 = arith.constant 0.000000e+00 : f32
    %780 = vector.shape_cast %779 : vector<8x1xi1> to vector<8x1xi1>
    %781 = vector.broadcast %780 : vector<8x1xi1> to vector<8x128xi1>
    %782 = vector.shape_cast %732 : vector<1x128xf32> to vector<1x128xf32>
    %783 = vector.broadcast %782 : vector<1x128xf32> to vector<8x128xf32>
    %784 = vector.broadcast %cst_229 : f32 to vector<8x128xf32>
    %785 = arith.select %781, %783, %784 : vector<8x128xi1>, vector<8x128xf32>
    %786 = arith.addf %777, %785 : vector<8x128xf32>
    %c2_i32_230 = arith.constant 2 : i32
    %787 = vector.broadcast %c2_i32_230 : i32 to vector<8x1xi32>
    %788 = arith.cmpi eq, %42, %787 : vector<8x1xi32>
    %cst_231 = arith.constant 0.000000e+00 : f32
    %789 = vector.shape_cast %788 : vector<8x1xi1> to vector<8x1xi1>
    %790 = vector.broadcast %789 : vector<8x1xi1> to vector<8x128xi1>
    %791 = vector.shape_cast %726 : vector<1x128xf32> to vector<1x128xf32>
    %792 = vector.broadcast %791 : vector<1x128xf32> to vector<8x128xf32>
    %793 = vector.broadcast %cst_231 : f32 to vector<8x128xf32>
    %794 = arith.select %790, %792, %793 : vector<8x128xi1>, vector<8x128xf32>
    %795 = arith.addf %786, %794 : vector<8x128xf32>
    %796 = arith.mulf %726, %719 : vector<1x128xf32>
    %c3_i32_232 = arith.constant 3 : i32
    %797 = vector.broadcast %c3_i32_232 : i32 to vector<8x1xi32>
    %798 = arith.cmpi eq, %42, %797 : vector<8x1xi32>
    %cst_233 = arith.constant 0.000000e+00 : f32
    %799 = vector.shape_cast %798 : vector<8x1xi1> to vector<8x1xi1>
    %800 = vector.broadcast %799 : vector<8x1xi1> to vector<8x128xi1>
    %801 = vector.shape_cast %796 : vector<1x128xf32> to vector<1x128xf32>
    %802 = vector.broadcast %801 : vector<1x128xf32> to vector<8x128xf32>
    %803 = vector.broadcast %cst_233 : f32 to vector<8x128xf32>
    %804 = arith.select %800, %802, %803 : vector<8x128xi1>, vector<8x128xf32>
    %805 = arith.addf %795, %804 : vector<8x128xf32>
    %806 = arith.mulf %726, %734 : vector<1x128xf32>
    %c4_i32_234 = arith.constant 4 : i32
    %807 = vector.broadcast %c4_i32_234 : i32 to vector<8x1xi32>
    %808 = arith.cmpi eq, %42, %807 : vector<8x1xi32>
    %cst_235 = arith.constant 0.000000e+00 : f32
    %809 = vector.shape_cast %808 : vector<8x1xi1> to vector<8x1xi1>
    %810 = vector.broadcast %809 : vector<8x1xi1> to vector<8x128xi1>
    %811 = vector.shape_cast %806 : vector<1x128xf32> to vector<1x128xf32>
    %812 = vector.broadcast %811 : vector<1x128xf32> to vector<8x128xf32>
    %813 = vector.broadcast %cst_235 : f32 to vector<8x128xf32>
    %814 = arith.select %810, %812, %813 : vector<8x128xi1>, vector<8x128xf32>
    %815 = arith.addf %805, %814 : vector<8x128xf32>
    %816 = math.absf %733 : vector<1x128xf32>
    %817 = arith.mulf %726, %816 : vector<1x128xf32>
    %c5_i32_236 = arith.constant 5 : i32
    %818 = vector.broadcast %c5_i32_236 : i32 to vector<8x1xi32>
    %819 = arith.cmpi eq, %42, %818 : vector<8x1xi32>
    %cst_237 = arith.constant 0.000000e+00 : f32
    %820 = vector.shape_cast %819 : vector<8x1xi1> to vector<8x1xi1>
    %821 = vector.broadcast %820 : vector<8x1xi1> to vector<8x128xi1>
    %822 = vector.shape_cast %817 : vector<1x128xf32> to vector<1x128xf32>
    %823 = vector.broadcast %822 : vector<1x128xf32> to vector<8x128xf32>
    %824 = vector.broadcast %cst_237 : f32 to vector<8x128xf32>
    %825 = arith.select %821, %823, %824 : vector<8x128xi1>, vector<8x128xf32>
    %826 = arith.addf %815, %825 : vector<8x128xf32>
    %c6_i32_238 = arith.constant 6 : i32
    %827 = vector.broadcast %c6_i32_238 : i32 to vector<8x1xi32>
    %828 = arith.cmpi eq, %42, %827 : vector<8x1xi32>
    %cst_239 = arith.constant 0.000000e+00 : f32
    %829 = vector.shape_cast %828 : vector<8x1xi1> to vector<8x1xi1>
    %830 = vector.broadcast %829 : vector<8x1xi1> to vector<8x128xi1>
    %831 = vector.shape_cast %739 : vector<1x128xf32> to vector<1x128xf32>
    %832 = vector.broadcast %831 : vector<1x128xf32> to vector<8x128xf32>
    %833 = vector.broadcast %cst_239 : f32 to vector<8x128xf32>
    %834 = arith.select %830, %832, %833 : vector<8x128xi1>, vector<8x128xf32>
    %835 = arith.addf %826, %834 : vector<8x128xf32>
    %836 = arith.mulf %739, %734 : vector<1x128xf32>
    %c7_i32_240 = arith.constant 7 : i32
    %837 = vector.broadcast %c7_i32_240 : i32 to vector<8x1xi32>
    %838 = arith.cmpi eq, %42, %837 : vector<8x1xi32>
    %cst_241 = arith.constant 0.000000e+00 : f32
    %839 = vector.shape_cast %838 : vector<8x1xi1> to vector<8x1xi1>
    %840 = vector.broadcast %839 : vector<8x1xi1> to vector<8x128xi1>
    %841 = vector.shape_cast %836 : vector<1x128xf32> to vector<1x128xf32>
    %842 = vector.broadcast %841 : vector<1x128xf32> to vector<8x128xf32>
    %843 = vector.broadcast %cst_241 : f32 to vector<8x128xf32>
    %844 = arith.select %840, %842, %843 : vector<8x128xi1>, vector<8x128xf32>
    %845 = arith.addf %835, %844 : vector<8x128xf32>
    %cst_242 = arith.constant dense<0.000000e+00> : vector<8x32xf32>
    %846 = tpu.matmul %845, %763, %cst_242 {dimension_numbers = #tpu.dot_dimension_numbers<[1], [1], [0], [0], [0, 0, 1, 0], [], []>} : vector<8x128xf32>, vector<32x128xf32>, vector<8x32xf32> -> vector<8x32xf32>
    %847 = arith.addf %713, %846 : vector<8x32xf32>
    %cst_243 = arith.constant dense<0.000000e+00> : vector<8x32xf32>
    %848 = tpu.matmul %845, %769, %cst_243 {dimension_numbers = #tpu.dot_dimension_numbers<[1], [1], [0], [0], [0, 0, 1, 0], [], []>} : vector<8x128xf32>, vector<32x128xf32>, vector<8x32xf32> -> vector<8x32xf32>
    %849 = arith.addf %715, %848 : vector<8x32xf32>
    %c6_i32_244 = arith.constant 6 : i32
    %850 = arith.index_cast %c6_i32_244 : i32 to index
    %c0_245 = arith.constant 0 : index
    %851 = vector.load %arg1[%850, %c0_245] : memref<8x128xf32, #tpu.memory_space<vmem>>, vector<1x128xf32>
    %852 = arith.index_cast %c6_i32_244 : i32 to index
    %c0_246 = arith.constant 0 : index
    %853 = vector.load %arg2[%852, %c0_246] : memref<8x128xf32, #tpu.memory_space<vmem>>, vector<1x128xf32>
    %854 = arith.index_cast %c6_i32_244 : i32 to index
    %c0_247 = arith.constant 0 : index
    %855 = vector.load %arg3[%854, %c0_247] : memref<8x128xf32, #tpu.memory_space<vmem>>, vector<1x128xf32>
    %cst_248 = arith.constant 1.000000e+00 : f32
    %856 = vector.broadcast %cst_248 : f32 to vector<1x128xf32>
    %857 = arith.cmpf oeq, %851, %856 : vector<1x128xf32>
    %cst_249 = arith.constant 1.000000e+00 : f32
    %cst_250 = arith.constant 0.000000e+00 : f32
    %858 = vector.broadcast %cst_249 : f32 to vector<1x128xf32>
    %859 = vector.broadcast %cst_250 : f32 to vector<1x128xf32>
    %860 = arith.select %857, %858, %859 : vector<1x128xi1>, vector<1x128xf32>
    %cst_251 = arith.constant 0.000000e+00 : f32
    %861 = vector.broadcast %cst_251 : f32 to vector<1x128xf32>
    %862 = arith.cmpf oeq, %851, %861 : vector<1x128xf32>
    %cst_252 = arith.constant 1.000000e+00 : f32
    %cst_253 = arith.constant 0.000000e+00 : f32
    %863 = vector.broadcast %cst_252 : f32 to vector<1x128xf32>
    %864 = vector.broadcast %cst_253 : f32 to vector<1x128xf32>
    %865 = arith.select %862, %863, %864 : vector<1x128xi1>, vector<1x128xf32>
    %866 = arith.mulf %865, %853 : vector<1x128xf32>
    %867 = arith.subf %853, %855 : vector<1x128xf32>
    %868 = arith.mulf %867, %867 : vector<1x128xf32>
    %869 = arith.cmpf olt, %855, %853 : vector<1x128xf32>
    %cst_254 = arith.constant 1.000000e+00 : f32
    %cst_255 = arith.constant 0.000000e+00 : f32
    %870 = vector.broadcast %cst_254 : f32 to vector<1x128xf32>
    %871 = vector.broadcast %cst_255 : f32 to vector<1x128xf32>
    %872 = arith.select %869, %870, %871 : vector<1x128xi1>, vector<1x128xf32>
    %873 = arith.mulf %865, %872 : vector<1x128xf32>
    %874 = vector.broadcast %27 : vector<1x1xf32> to vector<1x128xf32>
    %875 = arith.subf %853, %874 : vector<1x128xf32>
    %876 = vector.broadcast %35 : vector<1x1xf32> to vector<1x128xf32>
    %877 = arith.mulf %875, %876 : vector<1x128xf32>
    %878 = math.ceil %877 : vector<1x128xf32>
    %cst_256 = arith.constant 1.000000e+00 : f32
    %cst_257 = arith.constant 3.000000e+01 : f32
    %879 = vector.broadcast %cst_256 : f32 to vector<1x128xf32>
    %880 = arith.maximumf %879, %878 : vector<1x128xf32>
    %881 = vector.broadcast %cst_257 : f32 to vector<1x128xf32>
    %882 = arith.minimumf %881, %880 : vector<1x128xf32>
    %cst_258 = arith.constant 1.000000e+00 : f32
    %883 = vector.broadcast %cst_258 : f32 to vector<1x128xf32>
    %884 = arith.subf %882, %883 : vector<1x128xf32>
    %885 = arith.fptosi %884 : vector<1x128xf32> to vector<1x128xi32>
    %886 = math.floor %877 : vector<1x128xf32>
    %cst_259 = arith.constant 0.000000e+00 : f32
    %cst_260 = arith.constant 2.900000e+01 : f32
    %887 = vector.broadcast %cst_259 : f32 to vector<1x128xf32>
    %888 = arith.maximumf %887, %886 : vector<1x128xf32>
    %889 = vector.broadcast %cst_260 : f32 to vector<1x128xf32>
    %890 = arith.minimumf %889, %888 : vector<1x128xf32>
    %891 = arith.fptosi %890 : vector<1x128xf32> to vector<1x128xi32>
    %892 = vector.broadcast %43 : vector<32x1xi32> to vector<32x128xi32>
    %893 = vector.broadcast %891 : vector<1x128xi32> to vector<32x128xi32>
    %894 = arith.cmpi eq, %892, %893 : vector<32x128xi32>
    %cst_261 = arith.constant 1.000000e+00 : f32
    %cst_262 = arith.constant 0.000000e+00 : f32
    %895 = vector.broadcast %cst_261 : f32 to vector<32x128xf32>
    %896 = vector.broadcast %cst_262 : f32 to vector<32x128xf32>
    %897 = arith.select %894, %895, %896 : vector<32x128xi1>, vector<32x128xf32>
    %898 = vector.broadcast %43 : vector<32x1xi32> to vector<32x128xi32>
    %899 = vector.broadcast %885 : vector<1x128xi32> to vector<32x128xi32>
    %900 = arith.cmpi eq, %898, %899 : vector<32x128xi32>
    %cst_263 = arith.constant 1.000000e+00 : f32
    %cst_264 = arith.constant 0.000000e+00 : f32
    %901 = vector.broadcast %cst_263 : f32 to vector<32x128xf32>
    %902 = vector.broadcast %cst_264 : f32 to vector<32x128xf32>
    %903 = arith.select %900, %901, %902 : vector<32x128xi1>, vector<32x128xf32>
    %c0_i32_265 = arith.constant 0 : i32
    %904 = vector.broadcast %c0_i32_265 : i32 to vector<8x1xi32>
    %905 = arith.cmpi eq, %42, %904 : vector<8x1xi32>
    %cst_266 = arith.constant 0.000000e+00 : f32
    %906 = vector.shape_cast %905 : vector<8x1xi1> to vector<8x1xi1>
    %907 = vector.broadcast %906 : vector<8x1xi1> to vector<8x128xi1>
    %908 = vector.shape_cast %865 : vector<1x128xf32> to vector<1x128xf32>
    %909 = vector.broadcast %908 : vector<1x128xf32> to vector<8x128xf32>
    %910 = vector.broadcast %cst_266 : f32 to vector<8x128xf32>
    %911 = arith.select %907, %909, %910 : vector<8x128xi1>, vector<8x128xf32>
    %c1_i32_267 = arith.constant 1 : i32
    %912 = vector.broadcast %c1_i32_267 : i32 to vector<8x1xi32>
    %913 = arith.cmpi eq, %42, %912 : vector<8x1xi32>
    %cst_268 = arith.constant 0.000000e+00 : f32
    %914 = vector.shape_cast %913 : vector<8x1xi1> to vector<8x1xi1>
    %915 = vector.broadcast %914 : vector<8x1xi1> to vector<8x128xi1>
    %916 = vector.shape_cast %866 : vector<1x128xf32> to vector<1x128xf32>
    %917 = vector.broadcast %916 : vector<1x128xf32> to vector<8x128xf32>
    %918 = vector.broadcast %cst_268 : f32 to vector<8x128xf32>
    %919 = arith.select %915, %917, %918 : vector<8x128xi1>, vector<8x128xf32>
    %920 = arith.addf %911, %919 : vector<8x128xf32>
    %c2_i32_269 = arith.constant 2 : i32
    %921 = vector.broadcast %c2_i32_269 : i32 to vector<8x1xi32>
    %922 = arith.cmpi eq, %42, %921 : vector<8x1xi32>
    %cst_270 = arith.constant 0.000000e+00 : f32
    %923 = vector.shape_cast %922 : vector<8x1xi1> to vector<8x1xi1>
    %924 = vector.broadcast %923 : vector<8x1xi1> to vector<8x128xi1>
    %925 = vector.shape_cast %860 : vector<1x128xf32> to vector<1x128xf32>
    %926 = vector.broadcast %925 : vector<1x128xf32> to vector<8x128xf32>
    %927 = vector.broadcast %cst_270 : f32 to vector<8x128xf32>
    %928 = arith.select %924, %926, %927 : vector<8x128xi1>, vector<8x128xf32>
    %929 = arith.addf %920, %928 : vector<8x128xf32>
    %930 = arith.mulf %860, %853 : vector<1x128xf32>
    %c3_i32_271 = arith.constant 3 : i32
    %931 = vector.broadcast %c3_i32_271 : i32 to vector<8x1xi32>
    %932 = arith.cmpi eq, %42, %931 : vector<8x1xi32>
    %cst_272 = arith.constant 0.000000e+00 : f32
    %933 = vector.shape_cast %932 : vector<8x1xi1> to vector<8x1xi1>
    %934 = vector.broadcast %933 : vector<8x1xi1> to vector<8x128xi1>
    %935 = vector.shape_cast %930 : vector<1x128xf32> to vector<1x128xf32>
    %936 = vector.broadcast %935 : vector<1x128xf32> to vector<8x128xf32>
    %937 = vector.broadcast %cst_272 : f32 to vector<8x128xf32>
    %938 = arith.select %934, %936, %937 : vector<8x128xi1>, vector<8x128xf32>
    %939 = arith.addf %929, %938 : vector<8x128xf32>
    %940 = arith.mulf %860, %868 : vector<1x128xf32>
    %c4_i32_273 = arith.constant 4 : i32
    %941 = vector.broadcast %c4_i32_273 : i32 to vector<8x1xi32>
    %942 = arith.cmpi eq, %42, %941 : vector<8x1xi32>
    %cst_274 = arith.constant 0.000000e+00 : f32
    %943 = vector.shape_cast %942 : vector<8x1xi1> to vector<8x1xi1>
    %944 = vector.broadcast %943 : vector<8x1xi1> to vector<8x128xi1>
    %945 = vector.shape_cast %940 : vector<1x128xf32> to vector<1x128xf32>
    %946 = vector.broadcast %945 : vector<1x128xf32> to vector<8x128xf32>
    %947 = vector.broadcast %cst_274 : f32 to vector<8x128xf32>
    %948 = arith.select %944, %946, %947 : vector<8x128xi1>, vector<8x128xf32>
    %949 = arith.addf %939, %948 : vector<8x128xf32>
    %950 = math.absf %867 : vector<1x128xf32>
    %951 = arith.mulf %860, %950 : vector<1x128xf32>
    %c5_i32_275 = arith.constant 5 : i32
    %952 = vector.broadcast %c5_i32_275 : i32 to vector<8x1xi32>
    %953 = arith.cmpi eq, %42, %952 : vector<8x1xi32>
    %cst_276 = arith.constant 0.000000e+00 : f32
    %954 = vector.shape_cast %953 : vector<8x1xi1> to vector<8x1xi1>
    %955 = vector.broadcast %954 : vector<8x1xi1> to vector<8x128xi1>
    %956 = vector.shape_cast %951 : vector<1x128xf32> to vector<1x128xf32>
    %957 = vector.broadcast %956 : vector<1x128xf32> to vector<8x128xf32>
    %958 = vector.broadcast %cst_276 : f32 to vector<8x128xf32>
    %959 = arith.select %955, %957, %958 : vector<8x128xi1>, vector<8x128xf32>
    %960 = arith.addf %949, %959 : vector<8x128xf32>
    %c6_i32_277 = arith.constant 6 : i32
    %961 = vector.broadcast %c6_i32_277 : i32 to vector<8x1xi32>
    %962 = arith.cmpi eq, %42, %961 : vector<8x1xi32>
    %cst_278 = arith.constant 0.000000e+00 : f32
    %963 = vector.shape_cast %962 : vector<8x1xi1> to vector<8x1xi1>
    %964 = vector.broadcast %963 : vector<8x1xi1> to vector<8x128xi1>
    %965 = vector.shape_cast %873 : vector<1x128xf32> to vector<1x128xf32>
    %966 = vector.broadcast %965 : vector<1x128xf32> to vector<8x128xf32>
    %967 = vector.broadcast %cst_278 : f32 to vector<8x128xf32>
    %968 = arith.select %964, %966, %967 : vector<8x128xi1>, vector<8x128xf32>
    %969 = arith.addf %960, %968 : vector<8x128xf32>
    %970 = arith.mulf %873, %868 : vector<1x128xf32>
    %c7_i32_279 = arith.constant 7 : i32
    %971 = vector.broadcast %c7_i32_279 : i32 to vector<8x1xi32>
    %972 = arith.cmpi eq, %42, %971 : vector<8x1xi32>
    %cst_280 = arith.constant 0.000000e+00 : f32
    %973 = vector.shape_cast %972 : vector<8x1xi1> to vector<8x1xi1>
    %974 = vector.broadcast %973 : vector<8x1xi1> to vector<8x128xi1>
    %975 = vector.shape_cast %970 : vector<1x128xf32> to vector<1x128xf32>
    %976 = vector.broadcast %975 : vector<1x128xf32> to vector<8x128xf32>
    %977 = vector.broadcast %cst_280 : f32 to vector<8x128xf32>
    %978 = arith.select %974, %976, %977 : vector<8x128xi1>, vector<8x128xf32>
    %979 = arith.addf %969, %978 : vector<8x128xf32>
    %cst_281 = arith.constant dense<0.000000e+00> : vector<8x32xf32>
    %980 = tpu.matmul %979, %897, %cst_281 {dimension_numbers = #tpu.dot_dimension_numbers<[1], [1], [0], [0], [0, 0, 1, 0], [], []>} : vector<8x128xf32>, vector<32x128xf32>, vector<8x32xf32> -> vector<8x32xf32>
    %981 = arith.addf %847, %980 : vector<8x32xf32>
    %cst_282 = arith.constant dense<0.000000e+00> : vector<8x32xf32>
    %982 = tpu.matmul %979, %903, %cst_282 {dimension_numbers = #tpu.dot_dimension_numbers<[1], [1], [0], [0], [0, 0, 1, 0], [], []>} : vector<8x128xf32>, vector<32x128xf32>, vector<8x32xf32> -> vector<8x32xf32>
    %983 = arith.addf %849, %982 : vector<8x32xf32>
    %c7_i32_283 = arith.constant 7 : i32
    %984 = arith.index_cast %c7_i32_283 : i32 to index
    %c0_284 = arith.constant 0 : index
    %985 = vector.load %arg1[%984, %c0_284] : memref<8x128xf32, #tpu.memory_space<vmem>>, vector<1x128xf32>
    %986 = arith.index_cast %c7_i32_283 : i32 to index
    %c0_285 = arith.constant 0 : index
    %987 = vector.load %arg2[%986, %c0_285] : memref<8x128xf32, #tpu.memory_space<vmem>>, vector<1x128xf32>
    %988 = arith.index_cast %c7_i32_283 : i32 to index
    %c0_286 = arith.constant 0 : index
    %989 = vector.load %arg3[%988, %c0_286] : memref<8x128xf32, #tpu.memory_space<vmem>>, vector<1x128xf32>
    %cst_287 = arith.constant 1.000000e+00 : f32
    %990 = vector.broadcast %cst_287 : f32 to vector<1x128xf32>
    %991 = arith.cmpf oeq, %985, %990 : vector<1x128xf32>
    %cst_288 = arith.constant 1.000000e+00 : f32
    %cst_289 = arith.constant 0.000000e+00 : f32
    %992 = vector.broadcast %cst_288 : f32 to vector<1x128xf32>
    %993 = vector.broadcast %cst_289 : f32 to vector<1x128xf32>
    %994 = arith.select %991, %992, %993 : vector<1x128xi1>, vector<1x128xf32>
    %cst_290 = arith.constant 0.000000e+00 : f32
    %995 = vector.broadcast %cst_290 : f32 to vector<1x128xf32>
    %996 = arith.cmpf oeq, %985, %995 : vector<1x128xf32>
    %cst_291 = arith.constant 1.000000e+00 : f32
    %cst_292 = arith.constant 0.000000e+00 : f32
    %997 = vector.broadcast %cst_291 : f32 to vector<1x128xf32>
    %998 = vector.broadcast %cst_292 : f32 to vector<1x128xf32>
    %999 = arith.select %996, %997, %998 : vector<1x128xi1>, vector<1x128xf32>
    %1000 = arith.mulf %999, %987 : vector<1x128xf32>
    %1001 = arith.subf %987, %989 : vector<1x128xf32>
    %1002 = arith.mulf %1001, %1001 : vector<1x128xf32>
    %1003 = arith.cmpf olt, %989, %987 : vector<1x128xf32>
    %cst_293 = arith.constant 1.000000e+00 : f32
    %cst_294 = arith.constant 0.000000e+00 : f32
    %1004 = vector.broadcast %cst_293 : f32 to vector<1x128xf32>
    %1005 = vector.broadcast %cst_294 : f32 to vector<1x128xf32>
    %1006 = arith.select %1003, %1004, %1005 : vector<1x128xi1>, vector<1x128xf32>
    %1007 = arith.mulf %999, %1006 : vector<1x128xf32>
    %1008 = vector.broadcast %27 : vector<1x1xf32> to vector<1x128xf32>
    %1009 = arith.subf %987, %1008 : vector<1x128xf32>
    %1010 = vector.broadcast %35 : vector<1x1xf32> to vector<1x128xf32>
    %1011 = arith.mulf %1009, %1010 : vector<1x128xf32>
    %1012 = math.ceil %1011 : vector<1x128xf32>
    %cst_295 = arith.constant 1.000000e+00 : f32
    %cst_296 = arith.constant 3.000000e+01 : f32
    %1013 = vector.broadcast %cst_295 : f32 to vector<1x128xf32>
    %1014 = arith.maximumf %1013, %1012 : vector<1x128xf32>
    %1015 = vector.broadcast %cst_296 : f32 to vector<1x128xf32>
    %1016 = arith.minimumf %1015, %1014 : vector<1x128xf32>
    %cst_297 = arith.constant 1.000000e+00 : f32
    %1017 = vector.broadcast %cst_297 : f32 to vector<1x128xf32>
    %1018 = arith.subf %1016, %1017 : vector<1x128xf32>
    %1019 = arith.fptosi %1018 : vector<1x128xf32> to vector<1x128xi32>
    %1020 = math.floor %1011 : vector<1x128xf32>
    %cst_298 = arith.constant 0.000000e+00 : f32
    %cst_299 = arith.constant 2.900000e+01 : f32
    %1021 = vector.broadcast %cst_298 : f32 to vector<1x128xf32>
    %1022 = arith.maximumf %1021, %1020 : vector<1x128xf32>
    %1023 = vector.broadcast %cst_299 : f32 to vector<1x128xf32>
    %1024 = arith.minimumf %1023, %1022 : vector<1x128xf32>
    %1025 = arith.fptosi %1024 : vector<1x128xf32> to vector<1x128xi32>
    %1026 = vector.broadcast %43 : vector<32x1xi32> to vector<32x128xi32>
    %1027 = vector.broadcast %1025 : vector<1x128xi32> to vector<32x128xi32>
    %1028 = arith.cmpi eq, %1026, %1027 : vector<32x128xi32>
    %cst_300 = arith.constant 1.000000e+00 : f32
    %cst_301 = arith.constant 0.000000e+00 : f32
    %1029 = vector.broadcast %cst_300 : f32 to vector<32x128xf32>
    %1030 = vector.broadcast %cst_301 : f32 to vector<32x128xf32>
    %1031 = arith.select %1028, %1029, %1030 : vector<32x128xi1>, vector<32x128xf32>
    %1032 = vector.broadcast %43 : vector<32x1xi32> to vector<32x128xi32>
    %1033 = vector.broadcast %1019 : vector<1x128xi32> to vector<32x128xi32>
    %1034 = arith.cmpi eq, %1032, %1033 : vector<32x128xi32>
    %cst_302 = arith.constant 1.000000e+00 : f32
    %cst_303 = arith.constant 0.000000e+00 : f32
    %1035 = vector.broadcast %cst_302 : f32 to vector<32x128xf32>
    %1036 = vector.broadcast %cst_303 : f32 to vector<32x128xf32>
    %1037 = arith.select %1034, %1035, %1036 : vector<32x128xi1>, vector<32x128xf32>
    %c0_i32_304 = arith.constant 0 : i32
    %1038 = vector.broadcast %c0_i32_304 : i32 to vector<8x1xi32>
    %1039 = arith.cmpi eq, %42, %1038 : vector<8x1xi32>
    %cst_305 = arith.constant 0.000000e+00 : f32
    %1040 = vector.shape_cast %1039 : vector<8x1xi1> to vector<8x1xi1>
    %1041 = vector.broadcast %1040 : vector<8x1xi1> to vector<8x128xi1>
    %1042 = vector.shape_cast %999 : vector<1x128xf32> to vector<1x128xf32>
    %1043 = vector.broadcast %1042 : vector<1x128xf32> to vector<8x128xf32>
    %1044 = vector.broadcast %cst_305 : f32 to vector<8x128xf32>
    %1045 = arith.select %1041, %1043, %1044 : vector<8x128xi1>, vector<8x128xf32>
    %c1_i32_306 = arith.constant 1 : i32
    %1046 = vector.broadcast %c1_i32_306 : i32 to vector<8x1xi32>
    %1047 = arith.cmpi eq, %42, %1046 : vector<8x1xi32>
    %cst_307 = arith.constant 0.000000e+00 : f32
    %1048 = vector.shape_cast %1047 : vector<8x1xi1> to vector<8x1xi1>
    %1049 = vector.broadcast %1048 : vector<8x1xi1> to vector<8x128xi1>
    %1050 = vector.shape_cast %1000 : vector<1x128xf32> to vector<1x128xf32>
    %1051 = vector.broadcast %1050 : vector<1x128xf32> to vector<8x128xf32>
    %1052 = vector.broadcast %cst_307 : f32 to vector<8x128xf32>
    %1053 = arith.select %1049, %1051, %1052 : vector<8x128xi1>, vector<8x128xf32>
    %1054 = arith.addf %1045, %1053 : vector<8x128xf32>
    %c2_i32_308 = arith.constant 2 : i32
    %1055 = vector.broadcast %c2_i32_308 : i32 to vector<8x1xi32>
    %1056 = arith.cmpi eq, %42, %1055 : vector<8x1xi32>
    %cst_309 = arith.constant 0.000000e+00 : f32
    %1057 = vector.shape_cast %1056 : vector<8x1xi1> to vector<8x1xi1>
    %1058 = vector.broadcast %1057 : vector<8x1xi1> to vector<8x128xi1>
    %1059 = vector.shape_cast %994 : vector<1x128xf32> to vector<1x128xf32>
    %1060 = vector.broadcast %1059 : vector<1x128xf32> to vector<8x128xf32>
    %1061 = vector.broadcast %cst_309 : f32 to vector<8x128xf32>
    %1062 = arith.select %1058, %1060, %1061 : vector<8x128xi1>, vector<8x128xf32>
    %1063 = arith.addf %1054, %1062 : vector<8x128xf32>
    %1064 = arith.mulf %994, %987 : vector<1x128xf32>
    %c3_i32_310 = arith.constant 3 : i32
    %1065 = vector.broadcast %c3_i32_310 : i32 to vector<8x1xi32>
    %1066 = arith.cmpi eq, %42, %1065 : vector<8x1xi32>
    %cst_311 = arith.constant 0.000000e+00 : f32
    %1067 = vector.shape_cast %1066 : vector<8x1xi1> to vector<8x1xi1>
    %1068 = vector.broadcast %1067 : vector<8x1xi1> to vector<8x128xi1>
    %1069 = vector.shape_cast %1064 : vector<1x128xf32> to vector<1x128xf32>
    %1070 = vector.broadcast %1069 : vector<1x128xf32> to vector<8x128xf32>
    %1071 = vector.broadcast %cst_311 : f32 to vector<8x128xf32>
    %1072 = arith.select %1068, %1070, %1071 : vector<8x128xi1>, vector<8x128xf32>
    %1073 = arith.addf %1063, %1072 : vector<8x128xf32>
    %1074 = arith.mulf %994, %1002 : vector<1x128xf32>
    %c4_i32_312 = arith.constant 4 : i32
    %1075 = vector.broadcast %c4_i32_312 : i32 to vector<8x1xi32>
    %1076 = arith.cmpi eq, %42, %1075 : vector<8x1xi32>
    %cst_313 = arith.constant 0.000000e+00 : f32
    %1077 = vector.shape_cast %1076 : vector<8x1xi1> to vector<8x1xi1>
    %1078 = vector.broadcast %1077 : vector<8x1xi1> to vector<8x128xi1>
    %1079 = vector.shape_cast %1074 : vector<1x128xf32> to vector<1x128xf32>
    %1080 = vector.broadcast %1079 : vector<1x128xf32> to vector<8x128xf32>
    %1081 = vector.broadcast %cst_313 : f32 to vector<8x128xf32>
    %1082 = arith.select %1078, %1080, %1081 : vector<8x128xi1>, vector<8x128xf32>
    %1083 = arith.addf %1073, %1082 : vector<8x128xf32>
    %1084 = math.absf %1001 : vector<1x128xf32>
    %1085 = arith.mulf %994, %1084 : vector<1x128xf32>
    %c5_i32_314 = arith.constant 5 : i32
    %1086 = vector.broadcast %c5_i32_314 : i32 to vector<8x1xi32>
    %1087 = arith.cmpi eq, %42, %1086 : vector<8x1xi32>
    %cst_315 = arith.constant 0.000000e+00 : f32
    %1088 = vector.shape_cast %1087 : vector<8x1xi1> to vector<8x1xi1>
    %1089 = vector.broadcast %1088 : vector<8x1xi1> to vector<8x128xi1>
    %1090 = vector.shape_cast %1085 : vector<1x128xf32> to vector<1x128xf32>
    %1091 = vector.broadcast %1090 : vector<1x128xf32> to vector<8x128xf32>
    %1092 = vector.broadcast %cst_315 : f32 to vector<8x128xf32>
    %1093 = arith.select %1089, %1091, %1092 : vector<8x128xi1>, vector<8x128xf32>
    %1094 = arith.addf %1083, %1093 : vector<8x128xf32>
    %c6_i32_316 = arith.constant 6 : i32
    %1095 = vector.broadcast %c6_i32_316 : i32 to vector<8x1xi32>
    %1096 = arith.cmpi eq, %42, %1095 : vector<8x1xi32>
    %cst_317 = arith.constant 0.000000e+00 : f32
    %1097 = vector.shape_cast %1096 : vector<8x1xi1> to vector<8x1xi1>
    %1098 = vector.broadcast %1097 : vector<8x1xi1> to vector<8x128xi1>
    %1099 = vector.shape_cast %1007 : vector<1x128xf32> to vector<1x128xf32>
    %1100 = vector.broadcast %1099 : vector<1x128xf32> to vector<8x128xf32>
    %1101 = vector.broadcast %cst_317 : f32 to vector<8x128xf32>
    %1102 = arith.select %1098, %1100, %1101 : vector<8x128xi1>, vector<8x128xf32>
    %1103 = arith.addf %1094, %1102 : vector<8x128xf32>
    %1104 = arith.mulf %1007, %1002 : vector<1x128xf32>
    %c7_i32_318 = arith.constant 7 : i32
    %1105 = vector.broadcast %c7_i32_318 : i32 to vector<8x1xi32>
    %1106 = arith.cmpi eq, %42, %1105 : vector<8x1xi32>
    %cst_319 = arith.constant 0.000000e+00 : f32
    %1107 = vector.shape_cast %1106 : vector<8x1xi1> to vector<8x1xi1>
    %1108 = vector.broadcast %1107 : vector<8x1xi1> to vector<8x128xi1>
    %1109 = vector.shape_cast %1104 : vector<1x128xf32> to vector<1x128xf32>
    %1110 = vector.broadcast %1109 : vector<1x128xf32> to vector<8x128xf32>
    %1111 = vector.broadcast %cst_319 : f32 to vector<8x128xf32>
    %1112 = arith.select %1108, %1110, %1111 : vector<8x128xi1>, vector<8x128xf32>
    %1113 = arith.addf %1103, %1112 : vector<8x128xf32>
    %cst_320 = arith.constant dense<0.000000e+00> : vector<8x32xf32>
    %1114 = tpu.matmul %1113, %1031, %cst_320 {dimension_numbers = #tpu.dot_dimension_numbers<[1], [1], [0], [0], [0, 0, 1, 0], [], []>} : vector<8x128xf32>, vector<32x128xf32>, vector<8x32xf32> -> vector<8x32xf32>
    %1115 = arith.addf %981, %1114 : vector<8x32xf32>
    %cst_321 = arith.constant dense<0.000000e+00> : vector<8x32xf32>
    %1116 = tpu.matmul %1113, %1037, %cst_321 {dimension_numbers = #tpu.dot_dimension_numbers<[1], [1], [0], [0], [0, 0, 1, 0], [], []>} : vector<8x128xf32>, vector<32x128xf32>, vector<8x32xf32> -> vector<8x32xf32>
    %1117 = arith.addf %983, %1116 : vector<8x32xf32>
    %c8_i32 = arith.constant 8 : i32
    %1118 = vector.extract_strided_slice %1115 {offsets = [0, 0], sizes = [1, 32], strides = [1, 1]} : vector<8x32xf32> to vector<1x32xf32>
    %1119 = vector.extract_strided_slice %1117 {offsets = [1, 0], sizes = [1, 32], strides = [1, 1]} : vector<8x32xf32> to vector<1x32xf32>
    %cst_322 = arith.constant dense<0.000000e+00> : vector<8xf32>
    %1120 = vector.multi_reduction <add>, %1115, %cst_322 [1] : vector<8x32xf32> to vector<8xf32>
    %1121 = vector.shape_cast %1120 : vector<8xf32> to vector<8x1xf32>
    %1122 = vector.extract_strided_slice %1121 {offsets = [0, 0], sizes = [1, 1], strides = [1, 1]} : vector<8x1xf32> to vector<1x1xf32>
    %1123 = vector.extract_strided_slice %1121 {offsets = [2, 0], sizes = [1, 1], strides = [1, 1]} : vector<8x1xf32> to vector<1x1xf32>
    %1124 = vector.extract_strided_slice %1121 {offsets = [3, 0], sizes = [1, 1], strides = [1, 1]} : vector<8x1xf32> to vector<1x1xf32>
    %1125 = vector.extract_strided_slice %1121 {offsets = [4, 0], sizes = [1, 1], strides = [1, 1]} : vector<8x1xf32> to vector<1x1xf32>
    %1126 = vector.extract_strided_slice %1121 {offsets = [5, 0], sizes = [1, 1], strides = [1, 1]} : vector<8x1xf32> to vector<1x1xf32>
    %1127 = vector.extract_strided_slice %1121 {offsets = [6, 0], sizes = [1, 1], strides = [1, 1]} : vector<8x1xf32> to vector<1x1xf32>
    %1128 = vector.extract_strided_slice %1121 {offsets = [7, 0], sizes = [1, 1], strides = [1, 1]} : vector<8x1xf32> to vector<1x1xf32>
    %1129 = arith.mulf %1118, %1119 : vector<1x32xf32>
    %1130 = vector.shape_cast %1129 : vector<1x32xf32> to vector<1x1x32xf32>
    %cst_323 = arith.constant dense<0.000000e+00> : vector<1xf32>
    %1131 = vector.multi_reduction <add>, %1130, %cst_323 [1, 2] : vector<1x1x32xf32> to vector<1xf32>
    %1132 = vector.shape_cast %1131 : vector<1xf32> to vector<1x1x1xf32>
    %1133 = vector.extract %1132[0, 0, 0] : f32 from vector<1x1x1xf32>
    %1134 = vector.broadcast %1133 : f32 to vector<1x1xf32>
    %cst_324 = arith.constant 0.000000e+00 : f32
    %1135 = vector.broadcast %cst_324 : f32 to vector<1x1xf32>
    %1136 = arith.cmpf ogt, %41, %1135 : vector<1x1xf32>
    %cst_325 = arith.constant 0.000000e+00 : f32
    %1137 = vector.broadcast %cst_325 : f32 to vector<1x1xf32>
    %1138 = arith.cmpf ogt, %41, %1137 : vector<1x1xf32>
    %cst_326 = arith.constant 1.000000e+00 : f32
    %1139 = vector.broadcast %cst_326 : f32 to vector<1x1xf32>
    %1140 = arith.select %1138, %41, %1139 : vector<1x1xi1>, vector<1x1xf32>
    %1141 = arith.divf %1134, %1140 : vector<1x1xf32>
    %cst_327 = arith.constant 0.000000e+00 : f32
    %1142 = vector.broadcast %cst_327 : f32 to vector<1x1xf32>
    %1143 = arith.select %1136, %1141, %1142 : vector<1x1xi1>, vector<1x1xf32>
    %cst_328 = arith.constant 0.000000e+00 : f32
    %1144 = vector.broadcast %cst_328 : f32 to vector<1x1xf32>
    %1145 = arith.cmpf oeq, %1143, %1144 : vector<1x1xf32>
    %cst_329 = arith.constant 1.000000e+00 : f32
    %1146 = vector.broadcast %cst_329 : f32 to vector<1x1xf32>
    %1147 = arith.select %1145, %1146, %1143 : vector<1x1xi1>, vector<1x1xf32>
    %cst_330 = arith.constant 1.000000e+00 : f32
    %1148 = vector.broadcast %cst_330 : f32 to vector<1x1xf32>
    %1149 = arith.divf %1148, %1147 : vector<1x1xf32>
    %cst_331 = arith.constant 0.000000e+00 : f32
    %1150 = vector.broadcast %cst_331 : f32 to vector<1x1xf32>
    %1151 = arith.cmpf oeq, %1122, %1150 : vector<1x1xf32>
    %cst_332 = arith.constant 0.000000e+00 : f32
    %1152 = vector.broadcast %cst_332 : f32 to vector<1x1xf32>
    %1153 = arith.cmpf oeq, %1143, %1152 : vector<1x1xf32>
    %cst_333 = arith.constant 0.000000e+00 : f32
    %1154 = vector.broadcast %cst_333 : f32 to vector<1x1xf32>
    %1155 = arith.select %1153, %1154, %1149 : vector<1x1xi1>, vector<1x1xf32>
    %cst_334 = arith.constant 1.000000e+20 : f32
    %1156 = vector.broadcast %cst_334 : f32 to vector<1x1xf32>
    %1157 = arith.select %1151, %1156, %1155 : vector<1x1xi1>, vector<1x1xf32>
    %cst_335 = arith.constant 1.000000e+00 : f32
    %1158 = vector.broadcast %cst_335 : f32 to vector<1x1xf32>
    %1159 = arith.maximumf %1123, %1158 : vector<1x1xf32>
    %cst_336 = arith.constant 1.000000e+00 : f32
    %1160 = vector.broadcast %cst_336 : f32 to vector<1x1xf32>
    %1161 = arith.divf %1160, %1159 : vector<1x1xf32>
    %1162 = arith.mulf %1124, %1161 : vector<1x1xf32>
    %1163 = arith.mulf %1125, %1161 : vector<1x1xf32>
    %1164 = arith.mulf %1126, %1161 : vector<1x1xf32>
    %cst_337 = arith.constant 0.000000e+00 : f32
    %1165 = vector.broadcast %cst_337 : f32 to vector<1x1xf32>
    %1166 = arith.cmpf ogt, %1157, %1165 : vector<1x1xf32>
    %cst_338 = arith.constant 0.000000e+00 : f32
    %1167 = vector.broadcast %cst_338 : f32 to vector<1x1xf32>
    %1168 = arith.cmpf ogt, %1157, %1167 : vector<1x1xf32>
    %cst_339 = arith.constant 1.000000e+00 : f32
    %1169 = vector.broadcast %cst_339 : f32 to vector<1x1xf32>
    %1170 = arith.select %1168, %1157, %1169 : vector<1x1xi1>, vector<1x1xf32>
    %1171 = arith.divf %1162, %1170 : vector<1x1xf32>
    %cst_340 = arith.constant 0.000000e+00 : f32
    %1172 = vector.broadcast %cst_340 : f32 to vector<1x1xf32>
    %1173 = arith.select %1166, %1171, %1172 : vector<1x1xi1>, vector<1x1xf32>
    %cst_341 = arith.constant 0.000000e+00 : f32
    %1174 = vector.broadcast %cst_341 : f32 to vector<1x1xf32>
    %1175 = arith.cmpf ogt, %1123, %1174 : vector<1x1xf32>
    %1176 = arith.addf %1163, %1164 : vector<1x1xf32>
    %1177 = arith.addf %1176, %1173 : vector<1x1xf32>
    %cst_342 = arith.constant 1.000000e-03 : f32
    %1178 = vector.broadcast %cst_342 : f32 to vector<1x1xf32>
    %1179 = arith.mulf %1177, %1178 : vector<1x1xf32>
    %cst_343 = arith.constant 0.000000e+00 : f32
    %1180 = vector.broadcast %cst_343 : f32 to vector<1x1xf32>
    %1181 = arith.select %1175, %1179, %1180 : vector<1x1xi1>, vector<1x1xf32>
    %cst_344 = arith.constant 1.000000e+00 : f32
    %1182 = vector.broadcast %cst_344 : f32 to vector<1x1xf32>
    %1183 = arith.maximumf %1127, %1182 : vector<1x1xf32>
    %1184 = arith.divf %1128, %1183 : vector<1x1xf32>
    %cst_345 = arith.constant 0.000000e+00 : f32
    %1185 = vector.broadcast %cst_345 : f32 to vector<1x1xf32>
    %1186 = arith.cmpf ogt, %1127, %1185 : vector<1x1xf32>
    %cst_346 = arith.constant 5.000000e-01 : f32
    %1187 = vector.broadcast %cst_346 : f32 to vector<1x1xf32>
    %1188 = arith.mulf %1184, %1187 : vector<1x1xf32>
    %cst_347 = arith.constant 0.000000e+00 : f32
    %1189 = vector.broadcast %cst_347 : f32 to vector<1x1xf32>
    %1190 = arith.select %1186, %1188, %1189 : vector<1x1xi1>, vector<1x1xf32>
    %1191 = arith.addf %1181, %1190 : vector<1x1xf32>
    %1192 = arith.subf %1122, %1127 : vector<1x1xf32>
    %1193 = vector.broadcast %0 : f32 to vector<1x1xf32>
    %1194 = arith.subf %1193, %1192 : vector<1x1xf32>
    %cst_348 = arith.constant 0.000000e+00 : f32
    %1195 = vector.broadcast %cst_348 : f32 to vector<1x1xf32>
    %1196 = arith.cmpf one, %1194, %1195 : vector<1x1xf32>
    %1197 = vector.broadcast %0 : f32 to vector<1x1xf32>
    %1198 = arith.mulf %1191, %1197 : vector<1x1xf32>
    %cst_349 = arith.constant 0.000000e+00 : f32
    %1199 = vector.broadcast %cst_349 : f32 to vector<1x1xf32>
    %1200 = arith.cmpf one, %1194, %1199 : vector<1x1xf32>
    %cst_350 = arith.constant 1.000000e+00 : f32
    %1201 = vector.broadcast %cst_350 : f32 to vector<1x1xf32>
    %1202 = arith.select %1200, %1194, %1201 : vector<1x1xi1>, vector<1x1xf32>
    %1203 = arith.divf %1198, %1202 : vector<1x1xf32>
    %1204 = arith.select %1196, %1203, %1191 : vector<1x1xi1>, vector<1x1xf32>
    %cst_351 = arith.constant 0.000000e+00 : f32
    %1205 = vector.broadcast %cst_351 : f32 to vector<1x1xf32>
    %1206 = arith.cmpf oeq, %1122, %1205 : vector<1x1xf32>
    %1207 = arith.select %1206, %1181, %1204 : vector<1x1xi1>, vector<1x1xf32>
    %c0_352 = arith.constant 0 : index
    %c0_353 = arith.constant 0 : index
    %1208 = vector.load %arg4[%c0_352, %c0_353] : memref<1x1xf32, #tpu.memory_space<vmem>>, vector<1x1xf32>
    tpu.vector_store %arg4[%c0_352, %c0_353], %1207 {strides = array<i32>} : memref<1x1xf32, #tpu.memory_space<vmem>>, vector<1x1xf32>,
    return
  }
}

</mosaic_0001>

<llo_original>
// kernel: _ratio_loss_impl.1
$region0: #{_ratio_loss_impl.1}
  #allocation0 [shape = 'u32[]', space=smem, size = 0x4, offset = 0x4, fixed_abs, tag = 'smem constant byte address 0x4 - core index']
  #allocation1 [shape = 'u32[72,128]{1,0:T(1,128)}', space=vmem, size = 0x9000, scoped, tag = 'internal scratch']
  #allocation2 [shape = 'f32[1]{0:T(128)S(6)}', space=smem, size = 0x200, scoped, tag = 'scoped memory for _ratio_loss_impl.1']
  %s0 = inlined_call_operand.<no memory space> [shape: f32[1], index: 0, kind: input, shape index: {}]
  %s1 = inlined_call_operand.vmem [shape: f32[8,128], index: 1, kind: input, shape index: {}]
  %s2 = inlined_call_operand.vmem [shape: f32[8,128], index: 2, kind: input, shape index: {}]
  %s3 = inlined_call_operand.vmem [shape: f32[8,128], index: 3, kind: input, shape index: {}]
  %s4 = inlined_call_operand.hbm [shape: f32[1,1], index: 4, kind: output, shape index: {}]
  %s5 = sld [smem:[#allocation0]]
  $region26: #{_ratio_loss_impl.1} parent=0
    _
  %s7 = ssub.s32 1, %s5
  %s8 = scalar_select 0, %s7, %s5
  %9 = sst [smem:[#allocation2]] %s0
  $region1: #{_ratio_loss_impl.1} parent=0
    #allocation3 [shape = 'u8[512]{0}', space=vmem, size = 0x400, scoped, tag = 'output window, operand 0, single buffered']
    #allocation4 [shape = 's32[1]{0}', space=sflag, size = 0x4, scoped, tag = 'scoped memory for _ratio_loss_impl.1']
    %10 = vsyncpa [#allocation4], 0
    // Predicated region
    $region2: #{_ratio_loss_impl.1} parent=1 // pred_check
      _
    $region3: #{_ratio_loss_impl.1} parent=1 // pred_check_branch
      %12 = sbr.rel (0) target = $region5
    $region4: #{_ratio_loss_impl.1} parent=1 // pred_region
      _
    $region5: #{_ratio_loss_impl.1} parent=1 // pred_fallthru
      _
    // Predicated region
    $region6: #{_ratio_loss_impl.1} parent=1 // pred_check
      _
    $region7: #{_ratio_loss_impl.1} parent=1 // pred_check_branch
      %14 = sbr.rel (0) target = $region9
    $region8: #{_ratio_loss_impl.1} parent=1 // pred_region
      _
    $region9: #{_ratio_loss_impl.1} parent=1 // pred_fallthru
      _
    // Predicated region
    $region10: #{_ratio_loss_impl.1} parent=1 // pred_check
      _
    $region11: #{_ratio_loss_impl.1} parent=1 // pred_check_branch
      %16 = sbr.rel (0) target = $region13
    $region12: #{_ratio_loss_impl.1} parent=1 // pred_region
      _
    $region13: #{_ratio_loss_impl.1} parent=1 // pred_fallthru
      _
    // Predicated region
    $region14: #{_ratio_loss_impl.1} parent=1 // pred_check
      _
    $region15: #{_ratio_loss_impl.1} parent=1 // pred_check_branch
      %18 = sbr.rel (0) target = $region17
    $region16: #{_ratio_loss_impl.1} parent=1 // pred_region
      _
    $region17: #{_ratio_loss_impl.1} parent=1 // pred_fallthru
      _
    %s19 = sld [smem:[#allocation2]]
    %v20 = vld [vmem:[%s1] sm:$0xff]
    %v21 = vld [vmem:[%s2] sm:$0xff]
    %vm22 = vcmp.eq.f32.partialorder %v20, 0.0
    %v23 = vsel %vm22, 1.0, 0.0
    %v24 = vmul.f32 %v23, %v21
    %v25 = vsel %vm22, %v21, 1e+30
    %26 = vmin.xlane.f32.xlu0 %v25
    %v27 = vpop.xlane.xlu0 %26
    %v28 = vrot.slane %v27, 4
    %v29 = vmin.f32 %v27, %v28
    %v30 = vrot.slane %v29, 2
    %v31 = vmin.f32 %v29, %v30
    %v32 = vrot.slane %v31, 1
    %v33 = vmin.f32 %v31, %v32
    %s34 = vtos %v33
    %v35 = vstv %s34
    %v36 = vsel %vm22, %v21, -1e+30
    %37 = vmax.xlane.f32.xlu0 %v36
    %v38 = vpop.xlane.xlu0 %37
    %v39 = vrot.slane %v38, 4
    %v40 = vmax.f32 %v38, %v39
    %v41 = vrot.slane %v40, 2
    %v42 = vmax.f32 %v40, %v41
    %v43 = vrot.slane %v42, 1
    %v44 = vmax.f32 %v42, %v43
    %s45 = vtos %v44
    %v46 = vstv %s45
    %vm47 = vcmp.eq.f32.partialorder %v46, %v35
    %v48 = vsub.f32 %v35, 0.5
    %v49 = vsel %vm47, %v48, %v35
    %v50 = vadd.f32 %v46, 0.5
    %v51 = vsel %vm47, %v50, %v46
    %v52 = vsub.f32 %v51, %v49
    %v53 = vrcp.pop 30.0
    %v54 = vmul.f32 30.0, %v53
    %v55 = vsub.f32 1.0, %v54
    %v56 = vmul.f32 %v53, %v55
    %v57 = vadd.f32 %v53, %v56
    %vm58 = vweird.f32 %v53
    %v59 = vsel %vm58, %v53, %v57
    %v60 = vmul.f32 %v52, %v59
    %v61 = vrcp.pop %v60
    %v62 = vmul.f32 %v60, %v61
    %v63 = vsub.f32 1.0, %v62
    %v64 = vmul.f32 %v61, %v63
    %v65 = vadd.f32 %v61, %v64
    %vm66 = vweird.f32 %v60
    %vm67 = vweird.f32 %v61
    %vm68 = vmor %vm66, %vm67
    %v69 = vsel %vm68, %v61, %v65
    %v70 = vand.u32 2147483647, %v60
    %vm71 = vcmp.eq.f32.partialorder %v70, 8.507059e+37
    %v72 = vand.u32 %v60, 2147483648
    %v73 = vor.u32 1.1754944e-38, %v72
    %v74 = vsel %vm71, %v73, %v69
    %v75 = vmul.f32 1.0, %v74
    %v76 = vmul.f32 %v24, %v21
    %77 = vadd.xlane.f32.xlu0 %v76
    %v78 = vpop.xlane.xlu0 %77
    %v79 = vrot.slane %v78, 4
    %v80 = vadd.f32 %v78, %v79
    %v81 = vrot.slane %v80, 2
    %v82 = vadd.f32 %v80, %v81
    %v83 = vrot.slane %v82, 1
    %v84 = vadd.f32 %v82, %v83
    %s85 = vtos %v84
    %v86 = vstv %s85
    %v87 = vlaneseq
    %v88 = vshrl.u32 %v87, 7
    %v89 = vadd.s32 %v88, 8
    %v90 = vadd.s32 %v88, 16
    %v91 = vadd.s32 %v88, 24
    %v92 = vld [vmem:[%s1] sm:$0x1]
    %v93 = vld [vmem:[%s2] sm:$0x1]
    %v94 = vld [vmem:[%s3] sm:$0x1]
    %vm95 = vcmp.eq.f32.partialorder %v92, 1.0
    %v96 = vsel %vm95, 1.0, 0.0
    %vm97 = vcmp.eq.f32.partialorder %v92, 0.0
    %v98 = vsel %vm97, 1.0, 0.0
    %v99 = vmul.f32 %v98, %v93
    %v100 = vsub.f32 %v93, %v94
    %v101 = vmul.f32 %v100, %v100
    %vm102 = vcmp.lt.f32.partialorder %v94, %v93
    %v103 = vsel %vm102, 1.0, 0.0
    %v104 = vmul.f32 %v98, %v103
    %v105 = vsub.f32 %v93, %v49
    %v106 = vmul.f32 %v105, %v75
    %v107 = vceil.f32 %v106
    %v108 = vmax.f32 %v107, 1.0
    %v109 = vmin.f32 %v108, 30.0
    %v110 = vsub.f32 %v109, 1.0
    %v111 = vcvt.f32.s32.to.zero.pseudo %v110
    %v112 = vfloor.f32 %v106
    %v113 = vmax.f32 %v112, 0.0
    %v114 = vmin.f32 %v113, 29.0
    %v115 = vcvt.f32.s32.to.zero.pseudo %v114
    %v116 = vperm.slane %v115, 0
    %vm117 = vcmp.eq.s32.totalorder %v88, %v116
    %vm118 = vcmp.eq.s32.totalorder %v89, %v116
    %vm119 = vcmp.eq.s32.totalorder %v90, %v116
    %vm120 = vcmp.eq.s32.totalorder %v91, %v116
    %v121 = vsel %vm117, 1.0, 0.0
    %v122 = vsel %vm118, 1.0, 0.0
    %v123 = vsel %vm119, 1.0, 0.0
    %v124 = vsel %vm120, 1.0, 0.0
    %v125 = vperm.slane %v111, 0
    %vm126 = vcmp.eq.s32.totalorder %v88, %v125
    %vm127 = vcmp.eq.s32.totalorder %v89, %v125
    %vm128 = vcmp.eq.s32.totalorder %v90, %v125
    %vm129 = vcmp.eq.s32.totalorder %v91, %v125
    %v130 = vsel %vm126, 1.0, 0.0
    %v131 = vsel %vm127, 1.0, 0.0
    %v132 = vsel %vm128, 1.0, 0.0
    %v133 = vsel %vm129, 1.0, 0.0
    %vm134 = vcmp.eq.s32.totalorder %v88, 0
    %v135 = vsel %vm134, 1, 0
    %vm136 = vcmp.eq.s32.totalorder %v135, 1
    %v137 = vperm.slane %v98, 0
    %v138 = vsel %vm136, %v137, 0.0
    %vm139 = vcmp.eq.s32.totalorder %v88, 1
    %v140 = vsel %vm139, 1, 0
    %vm141 = vcmp.eq.s32.totalorder %v140, 1
    %v142 = vperm.slane %v99, 0
    %v143 = vsel %vm141, %v142, 0.0
    %v144 = vadd.f32 %v138, %v143
    %vm145 = vcmp.eq.s32.totalorder %v88, 2
    %v146 = vsel %vm145, 1, 0
    %vm147 = vcmp.eq.s32.totalorder %v146, 1
    %v148 = vperm.slane %v96, 0
    %v149 = vsel %vm147, %v148, 0.0
    %v150 = vadd.f32 %v144, %v149
    %v151 = vmul.f32 %v96, %v93
    %vm152 = vcmp.eq.s32.totalorder %v88, 3
    %v153 = vsel %vm152, 1, 0
    %vm154 = vcmp.eq.s32.totalorder %v153, 1
    %v155 = vperm.slane %v151, 0
    %v156 = vsel %vm154, %v155, 0.0
    %v157 = vadd.f32 %v150, %v156
    %v158 = vmul.f32 %v96, %v101
    %vm159 = vcmp.eq.s32.totalorder %v88, 4
    %v160 = vsel %vm159, 1, 0
    %vm161 = vcmp.eq.s32.totalorder %v160, 1
    %v162 = vperm.slane %v158, 0
    %v163 = vsel %vm161, %v162, 0.0
    %v164 = vadd.f32 %v157, %v163
    %v165 = vand.u32 2147483647, %v100
    %v166 = vmul.f32 %v96, %v165
    %vm167 = vcmp.eq.s32.totalorder %v88, 5
    %v168 = vsel %vm167, 1, 0
    %vm169 = vcmp.eq.s32.totalorder %v168, 1
    %v170 = vperm.slane %v166, 0
    %v171 = vsel %vm169, %v170, 0.0
    %v172 = vadd.f32 %v164, %v171
    %vm173 = vcmp.eq.s32.totalorder %v88, 6
    %v174 = vsel %vm173, 1, 0
    %vm175 = vcmp.eq.s32.totalorder %v174, 1
    %v176 = vperm.slane %v104, 0
    %v177 = vsel %vm175, %v176, 0.0
    %v178 = vadd.f32 %v172, %v177
    %v179 = vmul.f32 %v104, %v101
    %vm180 = vcmp.eq.s32.totalorder %v88, 7
    %v181 = vsel %vm180, 1, 0
    %vm182 = vcmp.eq.s32.totalorder %v181, 1
    %v183 = vperm.slane %v179, 0
    %v184 = vsel %vm182, %v183, 0.0
    %v185 = vadd.f32 %v178, %v184
    %v186 = vld [vmem:[%s1 + $0x1] sm:$0x1]
    %v187 = vld [vmem:[%s2 + $0x1] sm:$0x1]
    %v188 = vld [vmem:[%s3 + $0x1] sm:$0x1]
    %vm189 = vcmp.eq.f32.partialorder %v186, 1.0
    %v190 = vsel %vm189, 1.0, 0.0
    %vm191 = vcmp.eq.f32.partialorder %v186, 0.0
    %v192 = vsel %vm191, 1.0, 0.0
    %v193 = vmul.f32 %v192, %v187
    %v194 = vsub.f32 %v187, %v188
    %v195 = vmul.f32 %v194, %v194
    %vm196 = vcmp.lt.f32.partialorder %v188, %v187
    %v197 = vsel %vm196, 1.0, 0.0
    %v198 = vmul.f32 %v192, %v197
    %v199 = vsub.f32 %v187, %v49
    %v200 = vmul.f32 %v199, %v75
    %v201 = vceil.f32 %v200
    %v202 = vmax.f32 %v201, 1.0
    %v203 = vmin.f32 %v202, 30.0
    %v204 = vsub.f32 %v203, 1.0
    %v205 = vcvt.f32.s32.to.zero.pseudo %v204
    %v206 = vfloor.f32 %v200
    %v207 = vmax.f32 %v206, 0.0
    %v208 = vmin.f32 %v207, 29.0
    %v209 = vcvt.f32.s32.to.zero.pseudo %v208
    %v210 = vperm.slane %v209, 0
    %vm211 = vcmp.eq.s32.totalorder %v88, %v210
    %vm212 = vcmp.eq.s32.totalorder %v89, %v210
    %vm213 = vcmp.eq.s32.totalorder %v90, %v210
    %vm214 = vcmp.eq.s32.totalorder %v91, %v210
    %v215 = vsel %vm211, 1.0, 0.0
    %v216 = vsel %vm212, 1.0, 0.0
    %v217 = vsel %vm213, 1.0, 0.0
    %v218 = vsel %vm214, 1.0, 0.0
    %v219 = vperm.slane %v205, 0
    %vm220 = vcmp.eq.s32.totalorder %v88, %v219
    %vm221 = vcmp.eq.s32.totalorder %v89, %v219
    %vm222 = vcmp.eq.s32.totalorder %v90, %v219
    %vm223 = vcmp.eq.s32.totalorder %v91, %v219
    %v224 = vsel %vm220, 1.0, 0.0
    %v225 = vsel %vm221, 1.0, 0.0
    %v226 = vsel %vm222, 1.0, 0.0
    %v227 = vsel %vm223, 1.0, 0.0
    %v228 = vperm.slane %v192, 0
    %v229 = vsel %vm136, %v228, 0.0
    %v230 = vperm.slane %v193, 0
    %v231 = vsel %vm141, %v230, 0.0
    %v232 = vadd.f32 %v229, %v231
    %v233 = vperm.slane %v190, 0
    %v234 = vsel %vm147, %v233, 0.0
    %v235 = vadd.f32 %v232, %v234
    %v236 = vmul.f32 %v190, %v187
    %v237 = vperm.slane %v236, 0
    %v238 = vsel %vm154, %v237, 0.0
    %v239 = vadd.f32 %v235, %v238
    %v240 = vmul.f32 %v190, %v195
    %v241 = vperm.slane %v240, 0
    %v242 = vsel %vm161, %v241, 0.0
    %v243 = vadd.f32 %v239, %v242
    %v244 = vand.u32 2147483647, %v194
    %v245 = vmul.f32 %v190, %v244
    %v246 = vperm.slane %v245, 0
    %v247 = vsel %vm169, %v246, 0.0
    %v248 = vadd.f32 %v243, %v247
    %v249 = vperm.slane %v198, 0
    %v250 = vsel %vm175, %v249, 0.0
    %v251 = vadd.f32 %v248, %v250
    %v252 = vmul.f32 %v198, %v195
    %v253 = vperm.slane %v252, 0
    %v254 = vsel %vm182, %v253, 0.0
    %v255 = vadd.f32 %v251, %v254
    %256 = vmatpush.xpose.msra.mxu0 0.0
    %257 = vmatpush.xpose.msra.mxu0 0.0
    %258 = vmatpush.xpose.msra.mxu0 0.0
    %259 = vmatpush.xpose.msra.mxu0 0.0
    %260 = vmatpush.xpose.msra.mxu0 0.0
    %261 = vmatpush.xpose.msra.mxu0 0.0
    %262 = vmatpush.xpose.msra.mxu0 0.0
    %263 = vmatpush.xpose.msra.mxu0 0.0
    %264 = vmatpush.xpose.msra.mxu0 0.0
    %265 = vmatpush.xpose.msra.mxu0 0.0
    %266 = vmatpush.xpose.msra.mxu0 0.0
    %267 = vmatpush.xpose.msra.mxu0 0.0
    %268 = vmatpush.xpose.msra.mxu0 %v218
    %269 = vmatpush.xpose.msra.mxu0 %v217
    %270 = vmatpush.xpose.msra.mxu0 %v216
    %271 = vmatpush.xpose.msra.mxu0 %v215
    %272 = vmatmul.f32.gmra.mxu0 %v255
    %v273 = vpop.f32.mrf.mxu0
    %v274 = vadd.f32 0.0, %v273
    %275 = vdwg.mxu0
    %276 = vmatpush.xpose.msra.mxu0 0.0
    %277 = vmatpush.xpose.msra.mxu0 0.0
    %278 = vmatpush.xpose.msra.mxu0 0.0
    %279 = vmatpush.xpose.msra.mxu0 0.0
    %280 = vmatpush.xpose.msra.mxu0 0.0
    %281 = vmatpush.xpose.msra.mxu0 0.0
    %282 = vmatpush.xpose.msra.mxu0 0.0
    %283 = vmatpush.xpose.msra.mxu0 0.0
    %284 = vmatpush.xpose.msra.mxu0 0.0
    %285 = vmatpush.xpose.msra.mxu0 0.0
    %286 = vmatpush.xpose.msra.mxu0 0.0
    %287 = vmatpush.xpose.msra.mxu0 0.0
    %288 = vmatpush.xpose.msra.mxu0 %v124
    %289 = vmatpush.xpose.msra.mxu0 %v123
    %290 = vmatpush.xpose.msra.mxu0 %v122
    %291 = vmatpush.xpose.msra.mxu0 %v121
    %292 = vmatmul.f32.gmra.mxu0 %v185
    %v293 = vpop.f32.mrf.mxu0
    %v294 = vadd.f32 %v274, %v293
    %295 = vdwg.mxu0
    %296 = vmatpush.xpose.msra.mxu0 0.0
    %297 = vmatpush.xpose.msra.mxu0 0.0
    %298 = vmatpush.xpose.msra.mxu0 0.0
    %299 = vmatpush.xpose.msra.mxu0 0.0
    %300 = vmatpush.xpose.msra.mxu0 0.0
    %301 = vmatpush.xpose.msra.mxu0 0.0
    %302 = vmatpush.xpose.msra.mxu0 0.0
    %303 = vmatpush.xpose.msra.mxu0 0.0
    %304 = vmatpush.xpose.msra.mxu0 0.0
    %305 = vmatpush.xpose.msra.mxu0 0.0
    %306 = vmatpush.xpose.msra.mxu0 0.0
    %307 = vmatpush.xpose.msra.mxu0 0.0
    %308 = vmatpush.xpose.msra.mxu0 %v227
    %309 = vmatpush.xpose.msra.mxu0 %v226
    %310 = vmatpush.xpose.msra.mxu0 %v225
    %311 = vmatpush.xpose.msra.mxu0 %v224
    %312 = vmatmul.f32.gmra.mxu0 %v255
    %v313 = vpop.f32.mrf.mxu0
    %v314 = vadd.f32 0.0, %v313
    %315 = vdwg.mxu0
    %316 = vmatpush.xpose.msra.mxu0 0.0
    %317 = vmatpush.xpose.msra.mxu0 0.0
    %318 = vmatpush.xpose.msra.mxu0 0.0
    %319 = vmatpush.xpose.msra.mxu0 0.0
    %320 = vmatpush.xpose.msra.mxu0 0.0
    %321 = vmatpush.xpose.msra.mxu0 0.0
    %322 = vmatpush.xpose.msra.mxu0 0.0
    %323 = vmatpush.xpose.msra.mxu0 0.0
    %324 = vmatpush.xpose.msra.mxu0 0.0
    %325 = vmatpush.xpose.msra.mxu0 0.0
    %326 = vmatpush.xpose.msra.mxu0 0.0
    %327 = vmatpush.xpose.msra.mxu0 0.0
    %328 = vmatpush.xpose.msra.mxu0 %v133
    %329 = vmatpush.xpose.msra.mxu0 %v132
    %330 = vmatpush.xpose.msra.mxu0 %v131
    %331 = vmatpush.xpose.msra.mxu0 %v130
    %332 = vmatmul.f32.gmra.mxu0 %v185
    %v333 = vpop.f32.mrf.mxu0
    %v334 = vadd.f32 %v314, %v333
    %335 = vdwg.mxu0
    %v336 = vld [vmem:[%s1 + $0x2] sm:$0x1]
    %v337 = vld [vmem:[%s2 + $0x2] sm:$0x1]
    %v338 = vld [vmem:[%s3 + $0x2] sm:$0x1]
    %vm339 = vcmp.eq.f32.partialorder %v336, 1.0
    %v340 = vsel %vm339, 1.0, 0.0
    %vm341 = vcmp.eq.f32.partialorder %v336, 0.0
    %v342 = vsel %vm341, 1.0, 0.0
    %v343 = vmul.f32 %v342, %v337
    %v344 = vsub.f32 %v337, %v338
    %v345 = vmul.f32 %v344, %v344
    %vm346 = vcmp.lt.f32.partialorder %v338, %v337
    %v347 = vsel %vm346, 1.0, 0.0
    %v348 = vmul.f32 %v342, %v347
    %v349 = vsub.f32 %v337, %v49
    %v350 = vmul.f32 %v349, %v75
    %v351 = vceil.f32 %v350
    %v352 = vmax.f32 %v351, 1.0
    %v353 = vmin.f32 %v352, 30.0
    %v354 = vsub.f32 %v353, 1.0
    %v355 = vcvt.f32.s32.to.zero.pseudo %v354
    %v356 = vfloor.f32 %v350
    %v357 = vmax.f32 %v356, 0.0
    %v358 = vmin.f32 %v357, 29.0
    %v359 = vcvt.f32.s32.to.zero.pseudo %v358
    %v360 = vperm.slane %v359, 0
    %vm361 = vcmp.eq.s32.totalorder %v88, %v360
    %vm362 = vcmp.eq.s32.totalorder %v89, %v360
    %vm363 = vcmp.eq.s32.totalorder %v90, %v360
    %vm364 = vcmp.eq.s32.totalorder %v91, %v360
    %v365 = vsel %vm361, 1.0, 0.0
    %v366 = vsel %vm362, 1.0, 0.0
    %v367 = vsel %vm363, 1.0, 0.0
    %v368 = vsel %vm364, 1.0, 0.0
    %v369 = vperm.slane %v355, 0
    %vm370 = vcmp.eq.s32.totalorder %v88, %v369
    %vm371 = vcmp.eq.s32.totalorder %v89, %v369
    %vm372 = vcmp.eq.s32.totalorder %v90, %v369
    %vm373 = vcmp.eq.s32.totalorder %v91, %v369
    %v374 = vsel %vm370, 1.0, 0.0
    %v375 = vsel %vm371, 1.0, 0.0
    %v376 = vsel %vm372, 1.0, 0.0
    %v377 = vsel %vm373, 1.0, 0.0
    %v378 = vperm.slane %v342, 0
    %v379 = vsel %vm136, %v378, 0.0
    %v380 = vperm.slane %v343, 0
    %v381 = vsel %vm141, %v380, 0.0
    %v382 = vadd.f32 %v379, %v381
    %v383 = vperm.slane %v340, 0
    %v384 = vsel %vm147, %v383, 0.0
    %v385 = vadd.f32 %v382, %v384
    %v386 = vmul.f32 %v340, %v337
    %v387 = vperm.slane %v386, 0
    %v388 = vsel %vm154, %v387, 0.0
    %v389 = vadd.f32 %v385, %v388
    %v390 = vmul.f32 %v340, %v345
    %v391 = vperm.slane %v390, 0
    %v392 = vsel %vm161, %v391, 0.0
    %v393 = vadd.f32 %v389, %v392
    %v394 = vand.u32 2147483647, %v344
    %v395 = vmul.f32 %v340, %v394
    %v396 = vperm.slane %v395, 0
    %v397 = vsel %vm169, %v396, 0.0
    %v398 = vadd.f32 %v393, %v397
    %v399 = vperm.slane %v348, 0
    %v400 = vsel %vm175, %v399, 0.0
    %v401 = vadd.f32 %v398, %v400
    %v402 = vmul.f32 %v348, %v345
    %v403 = vperm.slane %v402, 0
    %v404 = vsel %vm182, %v403, 0.0
    %v405 = vadd.f32 %v401, %v404
    %406 = vmatpush.xpose.msra.mxu0 0.0
    %407 = vmatpush.xpose.msra.mxu0 0.0
    %408 = vmatpush.xpose.msra.mxu0 0.0
    %409 = vmatpush.xpose.msra.mxu0 0.0
    %410 = vmatpush.xpose.msra.mxu0 0.0
    %411 = vmatpush.xpose.msra.mxu0 0.0
    %412 = vmatpush.xpose.msra.mxu0 0.0
    %413 = vmatpush.xpose.msra.mxu0 0.0
    %414 = vmatpush.xpose.msra.mxu0 0.0
    %415 = vmatpush.xpose.msra.mxu0 0.0
    %416 = vmatpush.xpose.msra.mxu0 0.0
    %417 = vmatpush.xpose.msra.mxu0 0.0
    %418 = vmatpush.xpose.msra.mxu0 %v368
    %419 = vmatpush.xpose.msra.mxu0 %v367
    %420 = vmatpush.xpose.msra.mxu0 %v366
    %421 = vmatpush.xpose.msra.mxu0 %v365
    %422 = vmatmul.f32.gmra.mxu0 %v405
    %v423 = vpop.f32.mrf.mxu0
    %v424 = vadd.f32 0.0, %v423
    %425 = vdwg.mxu0
    %v426 = vadd.f32 %v294, %v424
    %427 = vmatpush.xpose.msra.mxu0 0.0
    %428 = vmatpush.xpose.msra.mxu0 0.0
    %429 = vmatpush.xpose.msra.mxu0 0.0
    %430 = vmatpush.xpose.msra.mxu0 0.0
    %431 = vmatpush.xpose.msra.mxu0 0.0
    %432 = vmatpush.xpose.msra.mxu0 0.0
    %433 = vmatpush.xpose.msra.mxu0 0.0
    %434 = vmatpush.xpose.msra.mxu0 0.0
    %435 = vmatpush.xpose.msra.mxu0 0.0
    %436 = vmatpush.xpose.msra.mxu0 0.0
    %437 = vmatpush.xpose.msra.mxu0 0.0
    %438 = vmatpush.xpose.msra.mxu0 0.0
    %439 = vmatpush.xpose.msra.mxu0 %v377
    %440 = vmatpush.xpose.msra.mxu0 %v376
    %441 = vmatpush.xpose.msra.mxu0 %v375
    %442 = vmatpush.xpose.msra.mxu0 %v374
    %443 = vmatmul.f32.gmra.mxu0 %v405
    %v444 = vpop.f32.mrf.mxu0
    %v445 = vadd.f32 0.0, %v444
    %446 = vdwg.mxu0
    %v447 = vadd.f32 %v334, %v445
    %v448 = vld [vmem:[%s1 + $0x3] sm:$0x1]
    %v449 = vld [vmem:[%s2 + $0x3] sm:$0x1]
    %v450 = vld [vmem:[%s3 + $0x3] sm:$0x1]
    %vm451 = vcmp.eq.f32.partialorder %v448, 1.0
    %v452 = vsel %vm451, 1.0, 0.0
    %vm453 = vcmp.eq.f32.partialorder %v448, 0.0
    %v454 = vsel %vm453, 1.0, 0.0
    %v455 = vmul.f32 %v454, %v449
    %v456 = vsub.f32 %v449, %v450
    %v457 = vmul.f32 %v456, %v456
    %vm458 = vcmp.lt.f32.partialorder %v450, %v449
    %v459 = vsel %vm458, 1.0, 0.0
    %v460 = vmul.f32 %v454, %v459
    %v461 = vsub.f32 %v449, %v49
    %v462 = vmul.f32 %v461, %v75
    %v463 = vceil.f32 %v462
    %v464 = vmax.f32 %v463, 1.0
    %v465 = vmin.f32 %v464, 30.0
    %v466 = vsub.f32 %v465, 1.0
    %v467 = vcvt.f32.s32.to.zero.pseudo %v466
    %v468 = vfloor.f32 %v462
    %v469 = vmax.f32 %v468, 0.0
    %v470 = vmin.f32 %v469, 29.0
    %v471 = vcvt.f32.s32.to.zero.pseudo %v470
    %v472 = vperm.slane %v471, 0
    %vm473 = vcmp.eq.s32.totalorder %v88, %v472
    %vm474 = vcmp.eq.s32.totalorder %v89, %v472
    %vm475 = vcmp.eq.s32.totalorder %v90, %v472
    %vm476 = vcmp.eq.s32.totalorder %v91, %v472
    %v477 = vsel %vm473, 1.0, 0.0
    %v478 = vsel %vm474, 1.0, 0.0
    %v479 = vsel %vm475, 1.0, 0.0
    %v480 = vsel %vm476, 1.0, 0.0
    %v481 = vperm.slane %v467, 0
    %vm482 = vcmp.eq.s32.totalorder %v88, %v481
    %vm483 = vcmp.eq.s32.totalorder %v89, %v481
    %vm484 = vcmp.eq.s32.totalorder %v90, %v481
    %vm485 = vcmp.eq.s32.totalorder %v91, %v481
    %v486 = vsel %vm482, 1.0, 0.0
    %v487 = vsel %vm483, 1.0, 0.0
    %v488 = vsel %vm484, 1.0, 0.0
    %v489 = vsel %vm485, 1.0, 0.0
    %v490 = vperm.slane %v454, 0
    %v491 = vsel %vm136, %v490, 0.0
    %v492 = vperm.slane %v455, 0
    %v493 = vsel %vm141, %v492, 0.0
    %v494 = vadd.f32 %v491, %v493
    %v495 = vperm.slane %v452, 0
    %v496 = vsel %vm147, %v495, 0.0
    %v497 = vadd.f32 %v494, %v496
    %v498 = vmul.f32 %v452, %v449
    %v499 = vperm.slane %v498, 0
    %v500 = vsel %vm154, %v499, 0.0
    %v501 = vadd.f32 %v497, %v500
    %v502 = vmul.f32 %v452, %v457
    %v503 = vperm.slane %v502, 0
    %v504 = vsel %vm161, %v503, 0.0
    %v505 = vadd.f32 %v501, %v504
    %v506 = vand.u32 2147483647, %v456
    %v507 = vmul.f32 %v452, %v506
    %v508 = vperm.slane %v507, 0
    %v509 = vsel %vm169, %v508, 0.0
    %v510 = vadd.f32 %v505, %v509
    %v511 = vperm.slane %v460, 0
    %v512 = vsel %vm175, %v511, 0.0
    %v513 = vadd.f32 %v510, %v512
    %v514 = vmul.f32 %v460, %v457
    %v515 = vperm.slane %v514, 0
    %v516 = vsel %vm182, %v515, 0.0
    %v517 = vadd.f32 %v513, %v516
    %518 = vmatpush.xpose.msra.mxu0 0.0
    %519 = vmatpush.xpose.msra.mxu0 0.0
    %520 = vmatpush.xpose.msra.mxu0 0.0
    %521 = vmatpush.xpose.msra.mxu0 0.0
    %522 = vmatpush.xpose.msra.mxu0 0.0
    %523 = vmatpush.xpose.msra.mxu0 0.0
    %524 = vmatpush.xpose.msra.mxu0 0.0
    %525 = vmatpush.xpose.msra.mxu0 0.0
    %526 = vmatpush.xpose.msra.mxu0 0.0
    %527 = vmatpush.xpose.msra.mxu0 0.0
    %528 = vmatpush.xpose.msra.mxu0 0.0
    %529 = vmatpush.xpose.msra.mxu0 0.0
    %530 = vmatpush.xpose.msra.mxu0 %v480
    %531 = vmatpush.xpose.msra.mxu0 %v479
    %532 = vmatpush.xpose.msra.mxu0 %v478
    %533 = vmatpush.xpose.msra.mxu0 %v477
    %534 = vmatmul.f32.gmra.mxu0 %v517
    %v535 = vpop.f32.mrf.mxu0
    %v536 = vadd.f32 0.0, %v535
    %537 = vdwg.mxu0
    %v538 = vadd.f32 %v426, %v536
    %539 = vmatpush.xpose.msra.mxu0 0.0
    %540 = vmatpush.xpose.msra.mxu0 0.0
    %541 = vmatpush.xpose.msra.mxu0 0.0
    %542 = vmatpush.xpose.msra.mxu0 0.0
    %543 = vmatpush.xpose.msra.mxu0 0.0
    %544 = vmatpush.xpose.msra.mxu0 0.0
    %545 = vmatpush.xpose.msra.mxu0 0.0
    %546 = vmatpush.xpose.msra.mxu0 0.0
    %547 = vmatpush.xpose.msra.mxu0 0.0
    %548 = vmatpush.xpose.msra.mxu0 0.0
    %549 = vmatpush.xpose.msra.mxu0 0.0
    %550 = vmatpush.xpose.msra.mxu0 0.0
    %551 = vmatpush.xpose.msra.mxu0 %v489
    %552 = vmatpush.xpose.msra.mxu0 %v488
    %553 = vmatpush.xpose.msra.mxu0 %v487
    %554 = vmatpush.xpose.msra.mxu0 %v486
    %555 = vmatmul.f32.gmra.mxu0 %v517
    %v556 = vpop.f32.mrf.mxu0
    %v557 = vadd.f32 0.0, %v556
    %558 = vdwg.mxu0
    %v559 = vadd.f32 %v447, %v557
    %v560 = vld [vmem:[%s1 + $0x4] sm:$0x1]
    %v561 = vld [vmem:[%s2 + $0x4] sm:$0x1]
    %v562 = vld [vmem:[%s3 + $0x4] sm:$0x1]
    %vm563 = vcmp.eq.f32.partialorder %v560, 1.0
    %v564 = vsel %vm563, 1.0, 0.0
    %vm565 = vcmp.eq.f32.partialorder %v560, 0.0
    %v566 = vsel %vm565, 1.0, 0.0
    %v567 = vmul.f32 %v566, %v561
    %v568 = vsub.f32 %v561, %v562
    %v569 = vmul.f32 %v568, %v568
    %vm570 = vcmp.lt.f32.partialorder %v562, %v561
    %v571 = vsel %vm570, 1.0, 0.0
    %v572 = vmul.f32 %v566, %v571
    %v573 = vsub.f32 %v561, %v49
    %v574 = vmul.f32 %v573, %v75
    %v575 = vceil.f32 %v574
    %v576 = vmax.f32 %v575, 1.0
    %v577 = vmin.f32 %v576, 30.0
    %v578 = vsub.f32 %v577, 1.0
    %v579 = vcvt.f32.s32.to.zero.pseudo %v578
    %v580 = vfloor.f32 %v574
    %v581 = vmax.f32 %v580, 0.0
    %v582 = vmin.f32 %v581, 29.0
    %v583 = vcvt.f32.s32.to.zero.pseudo %v582
    %v584 = vperm.slane %v583, 0
    %vm585 = vcmp.eq.s32.totalorder %v88, %v584
    %vm586 = vcmp.eq.s32.totalorder %v89, %v584
    %vm587 = vcmp.eq.s32.totalorder %v90, %v584
    %vm588 = vcmp.eq.s32.totalorder %v91, %v584
    %v589 = vsel %vm585, 1.0, 0.0
    %v590 = vsel %vm586, 1.0, 0.0
    %v591 = vsel %vm587, 1.0, 0.0
    %v592 = vsel %vm588, 1.0, 0.0
    %v593 = vperm.slane %v579, 0
    %vm594 = vcmp.eq.s32.totalorder %v88, %v593
    %vm595 = vcmp.eq.s32.totalorder %v89, %v593
    %vm596 = vcmp.eq.s32.totalorder %v90, %v593
    %vm597 = vcmp.eq.s32.totalorder %v91, %v593
    %v598 = vsel %vm594, 1.0, 0.0
    %v599 = vsel %vm595, 1.0, 0.0
    %v600 = vsel %vm596, 1.0, 0.0
    %v601 = vsel %vm597, 1.0, 0.0
    %v602 = vperm.slane %v566, 0
    %v603 = vsel %vm136, %v602, 0.0
    %v604 = vperm.slane %v567, 0
    %v605 = vsel %vm141, %v604, 0.0
    %v606 = vadd.f32 %v603, %v605
    %v607 = vperm.slane %v564, 0
    %v608 = vsel %vm147, %v607, 0.0
    %v609 = vadd.f32 %v606, %v608
    %v610 = vmul.f32 %v564, %v561
    %v611 = vperm.slane %v610, 0
    %v612 = vsel %vm154, %v611, 0.0
    %v613 = vadd.f32 %v609, %v612
    %v614 = vmul.f32 %v564, %v569
    %v615 = vperm.slane %v614, 0
    %v616 = vsel %vm161, %v615, 0.0
    %v617 = vadd.f32 %v613, %v616
    %v618 = vand.u32 2147483647, %v568
    %v619 = vmul.f32 %v564, %v618
    %v620 = vperm.slane %v619, 0
    %v621 = vsel %vm169, %v620, 0.0
    %v622 = vadd.f32 %v617, %v621
    %v623 = vperm.slane %v572, 0
    %v624 = vsel %vm175, %v623, 0.0
    %v625 = vadd.f32 %v622, %v624
    %v626 = vmul.f32 %v572, %v569
    %v627 = vperm.slane %v626, 0
    %v628 = vsel %vm182, %v627, 0.0
    %v629 = vadd.f32 %v625, %v628
    %630 = vmatpush.xpose.msra.mxu0 0.0
    %631 = vmatpush.xpose.msra.mxu0 0.0
    %632 = vmatpush.xpose.msra.mxu0 0.0
    %633 = vmatpush.xpose.msra.mxu0 0.0
    %634 = vmatpush.xpose.msra.mxu0 0.0
    %635 = vmatpush.xpose.msra.mxu0 0.0
    %636 = vmatpush.xpose.msra.mxu0 0.0
    %637 = vmatpush.xpose.msra.mxu0 0.0
    %638 = vmatpush.xpose.msra.mxu0 0.0
    %639 = vmatpush.xpose.msra.mxu0 0.0
    %640 = vmatpush.xpose.msra.mxu0 0.0
    %641 = vmatpush.xpose.msra.mxu0 0.0
    %642 = vmatpush.xpose.msra.mxu0 %v592
    %643 = vmatpush.xpose.msra.mxu0 %v591
    %644 = vmatpush.xpose.msra.mxu0 %v590
    %645 = vmatpush.xpose.msra.mxu0 %v589
    %646 = vmatmul.f32.gmra.mxu0 %v629
    %v647 = vpop.f32.mrf.mxu0
    %v648 = vadd.f32 0.0, %v647
    %649 = vdwg.mxu0
    %v650 = vadd.f32 %v538, %v648
    %651 = vmatpush.xpose.msra.mxu0 0.0
    %652 = vmatpush.xpose.msra.mxu0 0.0
    %653 = vmatpush.xpose.msra.mxu0 0.0
    %654 = vmatpush.xpose.msra.mxu0 0.0
    %655 = vmatpush.xpose.msra.mxu0 0.0
    %656 = vmatpush.xpose.msra.mxu0 0.0
    %657 = vmatpush.xpose.msra.mxu0 0.0
    %658 = vmatpush.xpose.msra.mxu0 0.0
    %659 = vmatpush.xpose.msra.mxu0 0.0
    %660 = vmatpush.xpose.msra.mxu0 0.0
    %661 = vmatpush.xpose.msra.mxu0 0.0
    %662 = vmatpush.xpose.msra.mxu0 0.0
    %663 = vmatpush.xpose.msra.mxu0 %v601
    %664 = vmatpush.xpose.msra.mxu0 %v600
    %665 = vmatpush.xpose.msra.mxu0 %v599
    %666 = vmatpush.xpose.msra.mxu0 %v598
    %667 = vmatmul.f32.gmra.mxu0 %v629
    %v668 = vpop.f32.mrf.mxu0
    %v669 = vadd.f32 0.0, %v668
    %670 = vdwg.mxu0
    %v671 = vadd.f32 %v559, %v669
    %v672 = vld [vmem:[%s1 + $0x5] sm:$0x1]
    %v673 = vld [vmem:[%s2 + $0x5] sm:$0x1]
    %v674 = vld [vmem:[%s3 + $0x5] sm:$0x1]
    %vm675 = vcmp.eq.f32.partialorder %v672, 1.0
    %v676 = vsel %vm675, 1.0, 0.0
    %vm677 = vcmp.eq.f32.partialorder %v672, 0.0
    %v678 = vsel %vm677, 1.0, 0.0
    %v679 = vmul.f32 %v678, %v673
    %v680 = vsub.f32 %v673, %v674
    %v681 = vmul.f32 %v680, %v680
    %vm682 = vcmp.lt.f32.partialorder %v674, %v673
    %v683 = vsel %vm682, 1.0, 0.0
    %v684 = vmul.f32 %v678, %v683
    %v685 = vsub.f32 %v673, %v49
    %v686 = vmul.f32 %v685, %v75
    %v687 = vceil.f32 %v686
    %v688 = vmax.f32 %v687, 1.0
    %v689 = vmin.f32 %v688, 30.0
    %v690 = vsub.f32 %v689, 1.0
    %v691 = vcvt.f32.s32.to.zero.pseudo %v690
    %v692 = vfloor.f32 %v686
    %v693 = vmax.f32 %v692, 0.0
    %v694 = vmin.f32 %v693, 29.0
    %v695 = vcvt.f32.s32.to.zero.pseudo %v694
    %v696 = vperm.slane %v695, 0
    %vm697 = vcmp.eq.s32.totalorder %v88, %v696
    %vm698 = vcmp.eq.s32.totalorder %v89, %v696
    %vm699 = vcmp.eq.s32.totalorder %v90, %v696
    %vm700 = vcmp.eq.s32.totalorder %v91, %v696
    %v701 = vsel %vm697, 1.0, 0.0
    %v702 = vsel %vm698, 1.0, 0.0
    %v703 = vsel %vm699, 1.0, 0.0
    %v704 = vsel %vm700, 1.0, 0.0
    %v705 = vperm.slane %v691, 0
    %vm706 = vcmp.eq.s32.totalorder %v88, %v705
    %vm707 = vcmp.eq.s32.totalorder %v89, %v705
    %vm708 = vcmp.eq.s32.totalorder %v90, %v705
    %vm709 = vcmp.eq.s32.totalorder %v91, %v705
    %v710 = vsel %vm706, 1.0, 0.0
    %v711 = vsel %vm707, 1.0, 0.0
    %v712 = vsel %vm708, 1.0, 0.0
    %v713 = vsel %vm709, 1.0, 0.0
    %v714 = vperm.slane %v678, 0
    %v715 = vsel %vm136, %v714, 0.0
    %v716 = vperm.slane %v679, 0
    %v717 = vsel %vm141, %v716, 0.0
    %v718 = vadd.f32 %v715, %v717
    %v719 = vperm.slane %v676, 0
    %v720 = vsel %vm147, %v719, 0.0
    %v721 = vadd.f32 %v718, %v720
    %v722 = vmul.f32 %v676, %v673
    %v723 = vperm.slane %v722, 0
    %v724 = vsel %vm154, %v723, 0.0
    %v725 = vadd.f32 %v721, %v724
    %v726 = vmul.f32 %v676, %v681
    %v727 = vperm.slane %v726, 0
    %v728 = vsel %vm161, %v727, 0.0
    %v729 = vadd.f32 %v725, %v728
    %v730 = vand.u32 2147483647, %v680
    %v731 = vmul.f32 %v676, %v730
    %v732 = vperm.slane %v731, 0
    %v733 = vsel %vm169, %v732, 0.0
    %v734 = vadd.f32 %v729, %v733
    %v735 = vperm.slane %v684, 0
    %v736 = vsel %vm175, %v735, 0.0
    %v737 = vadd.f32 %v734, %v736
    %v738 = vmul.f32 %v684, %v681
    %v739 = vperm.slane %v738, 0
    %v740 = vsel %vm182, %v739, 0.0
    %v741 = vadd.f32 %v737, %v740
    %742 = vmatpush.xpose.msra.mxu0 0.0
    %743 = vmatpush.xpose.msra.mxu0 0.0
    %744 = vmatpush.xpose.msra.mxu0 0.0
    %745 = vmatpush.xpose.msra.mxu0 0.0
    %746 = vmatpush.xpose.msra.mxu0 0.0
    %747 = vmatpush.xpose.msra.mxu0 0.0
    %748 = vmatpush.xpose.msra.mxu0 0.0
    %749 = vmatpush.xpose.msra.mxu0 0.0
    %750 = vmatpush.xpose.msra.mxu0 0.0
    %751 = vmatpush.xpose.msra.mxu0 0.0
    %752 = vmatpush.xpose.msra.mxu0 0.0
    %753 = vmatpush.xpose.msra.mxu0 0.0
    %754 = vmatpush.xpose.msra.mxu0 %v704
    %755 = vmatpush.xpose.msra.mxu0 %v703
    %756 = vmatpush.xpose.msra.mxu0 %v702
    %757 = vmatpush.xpose.msra.mxu0 %v701
    %758 = vmatmul.f32.gmra.mxu0 %v741
    %v759 = vpop.f32.mrf.mxu0
    %v760 = vadd.f32 0.0, %v759
    %761 = vdwg.mxu0
    %v762 = vadd.f32 %v650, %v760
    %763 = vmatpush.xpose.msra.mxu0 0.0
    %764 = vmatpush.xpose.msra.mxu0 0.0
    %765 = vmatpush.xpose.msra.mxu0 0.0
    %766 = vmatpush.xpose.msra.mxu0 0.0
    %767 = vmatpush.xpose.msra.mxu0 0.0
    %768 = vmatpush.xpose.msra.mxu0 0.0
    %769 = vmatpush.xpose.msra.mxu0 0.0
    %770 = vmatpush.xpose.msra.mxu0 0.0
    %771 = vmatpush.xpose.msra.mxu0 0.0
    %772 = vmatpush.xpose.msra.mxu0 0.0
    %773 = vmatpush.xpose.msra.mxu0 0.0
    %774 = vmatpush.xpose.msra.mxu0 0.0
    %775 = vmatpush.xpose.msra.mxu0 %v713
    %776 = vmatpush.xpose.msra.mxu0 %v712
    %777 = vmatpush.xpose.msra.mxu0 %v711
    %778 = vmatpush.xpose.msra.mxu0 %v710
    %779 = vmatmul.f32.gmra.mxu0 %v741
    %v780 = vpop.f32.mrf.mxu0
    %v781 = vadd.f32 0.0, %v780
    %782 = vdwg.mxu0
    %v783 = vadd.f32 %v671, %v781
    %v784 = vld [vmem:[%s1 + $0x6] sm:$0x1]
    %v785 = vld [vmem:[%s2 + $0x6] sm:$0x1]
    %v786 = vld [vmem:[%s3 + $0x6] sm:$0x1]
    %vm787 = vcmp.eq.f32.partialorder %v784, 1.0
    %v788 = vsel %vm787, 1.0, 0.0
    %vm789 = vcmp.eq.f32.partialorder %v784, 0.0
    %v790 = vsel %vm789, 1.0, 0.0
    %v791 = vmul.f32 %v790, %v785
    %v792 = vsub.f32 %v785, %v786
    %v793 = vmul.f32 %v792, %v792
    %vm794 = vcmp.lt.f32.partialorder %v786, %v785
    %v795 = vsel %vm794, 1.0, 0.0
    %v796 = vmul.f32 %v790, %v795
    %v797 = vsub.f32 %v785, %v49
    %v798 = vmul.f32 %v797, %v75
    %v799 = vceil.f32 %v798
    %v800 = vmax.f32 %v799, 1.0
    %v801 = vmin.f32 %v800, 30.0
    %v802 = vsub.f32 %v801, 1.0
    %v803 = vcvt.f32.s32.to.zero.pseudo %v802
    %v804 = vfloor.f32 %v798
    %v805 = vmax.f32 %v804, 0.0
    %v806 = vmin.f32 %v805, 29.0
    %v807 = vcvt.f32.s32.to.zero.pseudo %v806
    %v808 = vperm.slane %v807, 0
    %vm809 = vcmp.eq.s32.totalorder %v88, %v808
    %vm810 = vcmp.eq.s32.totalorder %v89, %v808
    %vm811 = vcmp.eq.s32.totalorder %v90, %v808
    %vm812 = vcmp.eq.s32.totalorder %v91, %v808
    %v813 = vsel %vm809, 1.0, 0.0
    %v814 = vsel %vm810, 1.0, 0.0
    %v815 = vsel %vm811, 1.0, 0.0
    %v816 = vsel %vm812, 1.0, 0.0
    %v817 = vperm.slane %v803, 0
    %vm818 = vcmp.eq.s32.totalorder %v88, %v817
    %vm819 = vcmp.eq.s32.totalorder %v89, %v817
    %vm820 = vcmp.eq.s32.totalorder %v90, %v817
    %vm821 = vcmp.eq.s32.totalorder %v91, %v817
    %v822 = vsel %vm818, 1.0, 0.0
    %v823 = vsel %vm819, 1.0, 0.0
    %v824 = vsel %vm820, 1.0, 0.0
    %v825 = vsel %vm821, 1.0, 0.0
    %v826 = vperm.slane %v790, 0
    %v827 = vsel %vm136, %v826, 0.0
    %v828 = vperm.slane %v791, 0
    %v829 = vsel %vm141, %v828, 0.0
    %v830 = vadd.f32 %v827, %v829
    %v831 = vperm.slane %v788, 0
    %v832 = vsel %vm147, %v831, 0.0
    %v833 = vadd.f32 %v830, %v832
    %v834 = vmul.f32 %v788, %v785
    %v835 = vperm.slane %v834, 0
    %v836 = vsel %vm154, %v835, 0.0
    %v837 = vadd.f32 %v833, %v836
    %v838 = vmul.f32 %v788, %v793
    %v839 = vperm.slane %v838, 0
    %v840 = vsel %vm161, %v839, 0.0
    %v841 = vadd.f32 %v837, %v840
    %v842 = vand.u32 2147483647, %v792
    %v843 = vmul.f32 %v788, %v842
    %v844 = vperm.slane %v843, 0
    %v845 = vsel %vm169, %v844, 0.0
    %v846 = vadd.f32 %v841, %v845
    %v847 = vperm.slane %v796, 0
    %v848 = vsel %vm175, %v847, 0.0
    %v849 = vadd.f32 %v846, %v848
    %v850 = vmul.f32 %v796, %v793
    %v851 = vperm.slane %v850, 0
    %v852 = vsel %vm182, %v851, 0.0
    %v853 = vadd.f32 %v849, %v852
    %854 = vmatpush.xpose.msra.mxu0 0.0
    %855 = vmatpush.xpose.msra.mxu0 0.0
    %856 = vmatpush.xpose.msra.mxu0 0.0
    %857 = vmatpush.xpose.msra.mxu0 0.0
    %858 = vmatpush.xpose.msra.mxu0 0.0
    %859 = vmatpush.xpose.msra.mxu0 0.0
    %860 = vmatpush.xpose.msra.mxu0 0.0
    %861 = vmatpush.xpose.msra.mxu0 0.0
    %862 = vmatpush.xpose.msra.mxu0 0.0
    %863 = vmatpush.xpose.msra.mxu0 0.0
    %864 = vmatpush.xpose.msra.mxu0 0.0
    %865 = vmatpush.xpose.msra.mxu0 0.0
    %866 = vmatpush.xpose.msra.mxu0 %v816
    %867 = vmatpush.xpose.msra.mxu0 %v815
    %868 = vmatpush.xpose.msra.mxu0 %v814
    %869 = vmatpush.xpose.msra.mxu0 %v813
    %870 = vmatmul.f32.gmra.mxu0 %v853
    %v871 = vpop.f32.mrf.mxu0
    %v872 = vadd.f32 0.0, %v871
    %873 = vdwg.mxu0
    %v874 = vadd.f32 %v762, %v872
    %875 = vmatpush.xpose.msra.mxu0 0.0
    %876 = vmatpush.xpose.msra.mxu0 0.0
    %877 = vmatpush.xpose.msra.mxu0 0.0
    %878 = vmatpush.xpose.msra.mxu0 0.0
    %879 = vmatpush.xpose.msra.mxu0 0.0
    %880 = vmatpush.xpose.msra.mxu0 0.0
    %881 = vmatpush.xpose.msra.mxu0 0.0
    %882 = vmatpush.xpose.msra.mxu0 0.0
    %883 = vmatpush.xpose.msra.mxu0 0.0
    %884 = vmatpush.xpose.msra.mxu0 0.0
    %885 = vmatpush.xpose.msra.mxu0 0.0
    %886 = vmatpush.xpose.msra.mxu0 0.0
    %887 = vmatpush.xpose.msra.mxu0 %v825
    %888 = vmatpush.xpose.msra.mxu0 %v824
    %889 = vmatpush.xpose.msra.mxu0 %v823
    %890 = vmatpush.xpose.msra.mxu0 %v822
    %891 = vmatmul.f32.gmra.mxu0 %v853
    %v892 = vpop.f32.mrf.mxu0
    %v893 = vadd.f32 0.0, %v892
    %894 = vdwg.mxu0
    %v895 = vadd.f32 %v783, %v893
    %v896 = vld [vmem:[%s1 + $0x7] sm:$0x1]
    %v897 = vld [vmem:[%s2 + $0x7] sm:$0x1]
    %v898 = vld [vmem:[%s3 + $0x7] sm:$0x1]
    %vm899 = vcmp.eq.f32.partialorder %v896, 1.0
    %v900 = vsel %vm899, 1.0, 0.0
    %vm901 = vcmp.eq.f32.partialorder %v896, 0.0
    %v902 = vsel %vm901, 1.0, 0.0
    %v903 = vmul.f32 %v902, %v897
    %v904 = vsub.f32 %v897, %v898
    %v905 = vmul.f32 %v904, %v904
    %vm906 = vcmp.lt.f32.partialorder %v898, %v897
    %v907 = vsel %vm906, 1.0, 0.0
    %v908 = vmul.f32 %v902, %v907
    %v909 = vsub.f32 %v897, %v49
    %v910 = vmul.f32 %v909, %v75
    %v911 = vceil.f32 %v910
    %v912 = vmax.f32 %v911, 1.0
    %v913 = vmin.f32 %v912, 30.0
    %v914 = vsub.f32 %v913, 1.0
    %v915 = vcvt.f32.s32.to.zero.pseudo %v914
    %v916 = vfloor.f32 %v910
    %v917 = vmax.f32 %v916, 0.0
    %v918 = vmin.f32 %v917, 29.0
    %v919 = vcvt.f32.s32.to.zero.pseudo %v918
    %v920 = vperm.slane %v919, 0
    %vm921 = vcmp.eq.s32.totalorder %v88, %v920
    %vm922 = vcmp.eq.s32.totalorder %v89, %v920
    %vm923 = vcmp.eq.s32.totalorder %v90, %v920
    %vm924 = vcmp.eq.s32.totalorder %v91, %v920
    %v925 = vsel %vm921, 1.0, 0.0
    %v926 = vsel %vm922, 1.0, 0.0
    %v927 = vsel %vm923, 1.0, 0.0
    %v928 = vsel %vm924, 1.0, 0.0
    %v929 = vperm.slane %v915, 0
    %vm930 = vcmp.eq.s32.totalorder %v88, %v929
    %vm931 = vcmp.eq.s32.totalorder %v89, %v929
    %vm932 = vcmp.eq.s32.totalorder %v90, %v929
    %vm933 = vcmp.eq.s32.totalorder %v91, %v929
    %v934 = vsel %vm930, 1.0, 0.0
    %v935 = vsel %vm931, 1.0, 0.0
    %v936 = vsel %vm932, 1.0, 0.0
    %v937 = vsel %vm933, 1.0, 0.0
    %v938 = vperm.slane %v902, 0
    %v939 = vsel %vm136, %v938, 0.0
    %v940 = vperm.slane %v903, 0
    %v941 = vsel %vm141, %v940, 0.0
    %v942 = vadd.f32 %v939, %v941
    %v943 = vperm.slane %v900, 0
    %v944 = vsel %vm147, %v943, 0.0
    %v945 = vadd.f32 %v942, %v944
    %v946 = vmul.f32 %v900, %v897
    %v947 = vperm.slane %v946, 0
    %v948 = vsel %vm154, %v947, 0.0
    %v949 = vadd.f32 %v945, %v948
    %v950 = vmul.f32 %v900, %v905
    %v951 = vperm.slane %v950, 0
    %v952 = vsel %vm161, %v951, 0.0
    %v953 = vadd.f32 %v949, %v952
    %v954 = vand.u32 2147483647, %v904
    %v955 = vmul.f32 %v900, %v954
    %v956 = vperm.slane %v955, 0
    %v957 = vsel %vm169, %v956, 0.0
    %v958 = vadd.f32 %v953, %v957
    %v959 = vperm.slane %v908, 0
    %v960 = vsel %vm175, %v959, 0.0
    %v961 = vadd.f32 %v958, %v960
    %v962 = vmul.f32 %v908, %v905
    %v963 = vperm.slane %v962, 0
    %v964 = vsel %vm182, %v963, 0.0
    %v965 = vadd.f32 %v961, %v964
    %966 = vmatpush.xpose.msra.mxu0 0.0
    %967 = vmatpush.xpose.msra.mxu0 0.0
    %968 = vmatpush.xpose.msra.mxu0 0.0
    %969 = vmatpush.xpose.msra.mxu0 0.0
    %970 = vmatpush.xpose.msra.mxu0 0.0
    %971 = vmatpush.xpose.msra.mxu0 0.0
    %972 = vmatpush.xpose.msra.mxu0 0.0
    %973 = vmatpush.xpose.msra.mxu0 0.0
    %974 = vmatpush.xpose.msra.mxu0 0.0
    %975 = vmatpush.xpose.msra.mxu0 0.0
    %976 = vmatpush.xpose.msra.mxu0 0.0
    %977 = vmatpush.xpose.msra.mxu0 0.0
    %978 = vmatpush.xpose.msra.mxu0 %v928
    %979 = vmatpush.xpose.msra.mxu0 %v927
    %980 = vmatpush.xpose.msra.mxu0 %v926
    %981 = vmatpush.xpose.msra.mxu0 %v925
    %982 = vmatmul.f32.gmra.mxu0 %v965
    %v983 = vpop.f32.mrf.mxu0
    %v984 = vadd.f32 0.0, %v983
    %985 = vdwg.mxu0
    %v986 = vadd.f32 %v874, %v984
    %987 = vmatpush.xpose.msra.mxu0 0.0
    %988 = vmatpush.xpose.msra.mxu0 0.0
    %989 = vmatpush.xpose.msra.mxu0 0.0
    %990 = vmatpush.xpose.msra.mxu0 0.0
    %991 = vmatpush.xpose.msra.mxu0 0.0
    %992 = vmatpush.xpose.msra.mxu0 0.0
    %993 = vmatpush.xpose.msra.mxu0 0.0
    %994 = vmatpush.xpose.msra.mxu0 0.0
    %995 = vmatpush.xpose.msra.mxu0 0.0
    %996 = vmatpush.xpose.msra.mxu0 0.0
    %997 = vmatpush.xpose.msra.mxu0 0.0
    %998 = vmatpush.xpose.msra.mxu0 0.0
    %999 = vmatpush.xpose.msra.mxu0 %v937
    %1000 = vmatpush.xpose.msra.mxu0 %v936
    %1001 = vmatpush.xpose.msra.mxu0 %v935
    %1002 = vmatpush.xpose.msra.mxu0 %v934
    %1003 = vmatmul.f32.gmra.mxu0 %v965
    %v1004 = vpop.f32.mrf.mxu0
    %v1005 = vadd.f32 0.0, %v1004
    %1006 = vdwg.mxu0
    %v1007 = vadd.f32 %v895, %v1005
    %vm1008 = vcmask 261120
    %v1009 = vsel %vm1008, %v986, 0.0
    %1010 = vadd.xlane.f32.xlu0 %v1009
    %v1011 = vpop.xlane.xlu0 %1010
    %v1013 = vrot.slane %v1007, 1
    %v1015 = vmul.f32 %v986, %v1013
    %vm1016 = vcmask 253952
    %v1017 = vsel %vm1016, %v1015, 0.0
    %1018 = vadd.xlane.f32.xlu0 %v1017
    %v1019 = vpop.xlane.xlu0 %1018
    %v1020 = vrot.slane %v1019, 4
    %v1021 = vadd.f32 %v1019, %v1020
    %v1022 = vrot.slane %v1021, 2
    %v1023 = vadd.f32 %v1021, %v1022
    %v1024 = vrot.slane %v1023, 1
    %v1025 = vadd.f32 %v1023, %v1024
    %s1026 = vtos %v1025
    %v1027 = vstv %s1026
    %vm1028 = vcmp.gt.f32.partialorder %v86, 0.0
    %v1029 = vsel %vm1028, %v86, 1.0
    %v1030 = vrcp.pop %v1029
    %v1031 = vmul.f32 %v1029, %v1030
    %v1032 = vsub.f32 1.0, %v1031
    %v1033 = vmul.f32 %v1030, %v1032
    %v1034 = vadd.f32 %v1030, %v1033
    %vm1035 = vweird.f32 %v1029
    %vm1036 = vweird.f32 %v1030
    %vm1037 = vmor %vm1035, %vm1036
    %v1038 = vsel %vm1037, %v1030, %v1034
    %v1039 = vand.u32 2147483647, %v1029
    %vm1040 = vcmp.eq.f32.partialorder %v1039, 8.507059e+37
    %v1041 = vand.u32 %v1029, 2147483648
    %v1042 = vor.u32 1.1754944e-38, %v1041
    %v1043 = vsel %vm1040, %v1042, %v1038
    %v1044 = vmul.f32 %v1027, %v1043
    %v1045 = vsel %vm1028, %v1044, 0.0
    %vm1046 = vcmp.eq.f32.partialorder %v1045, 0.0
    %v1047 = vsel %vm1046, 1.0, %v1045
    %v1048 = vrcp.pop %v1047
    %v1049 = vmul.f32 %v1047, %v1048
    %v1050 = vsub.f32 1.0, %v1049
    %v1051 = vmul.f32 %v1048, %v1050
    %v1052 = vadd.f32 %v1048, %v1051
    %vm1053 = vweird.f32 %v1047
    %vm1054 = vweird.f32 %v1048
    %vm1055 = vmor %vm1053, %vm1054
    %v1056 = vsel %vm1055, %v1048, %v1052
    %v1057 = vand.u32 2147483647, %v1047
    %vm1058 = vcmp.eq.f32.partialorder %v1057, 8.507059e+37
    %v1059 = vand.u32 %v1047, 2147483648
    %v1060 = vor.u32 1.1754944e-38, %v1059
    %v1061 = vsel %vm1058, %v1060, %v1056
    %v1062 = vmul.f32 1.0, %v1061
    %vm1063 = vcmp.eq.f32.partialorder %v1011, 0.0
    %v1064 = vsel %vm1046, 0.0, %v1062
    %v1065 = vsel %vm1063, 1e+20, %v1064
    %v1066 = vmax.f32 %v1011, 1.0
    %v1067 = vrcp.pop %v1066
    %v1068 = vmul.f32 %v1066, %v1067
    %v1069 = vsub.f32 1.0, %v1068
    %v1070 = vmul.f32 %v1067, %v1069
    %v1071 = vadd.f32 %v1067, %v1070
    %vm1072 = vweird.f32 %v1066
    %vm1073 = vweird.f32 %v1067
    %vm1074 = vmor %vm1072, %vm1073
    %v1075 = vsel %vm1074, %v1067, %v1071
    %v1076 = vand.u32 2147483647, %v1066
    %vm1077 = vcmp.eq.f32.partialorder %v1076, 8.507059e+37
    %v1078 = vand.u32 %v1066, 2147483648
    %v1079 = vor.u32 1.1754944e-38, %v1078
    %v1080 = vsel %vm1077, %v1079, %v1075
    %v1081 = vmul.f32 1.0, %v1080
    %v1083 = vrot.slane %v1081, 7
    %v1085 = vmul.f32 %v1011, %v1083
    %v1086 = vrot.slane %v1081, 6
    %v1088 = vmul.f32 %v1011, %v1086
    %v1089 = vrot.slane %v1081, 5
    %v1091 = vmul.f32 %v1011, %v1089
    %vm1092 = vcmp.gt.f32.partialorder %v1065, 0.0
    %v1093 = vsel %vm1092, %v1065, 1.0
    %v1095 = vrot.slane %v1093, 5
    %v1097 = vrcp.pop %v1095
    %v1098 = vmul.f32 %v1095, %v1097
    %v1099 = vsub.f32 1.0, %v1098
    %v1100 = vmul.f32 %v1097, %v1099
    %v1101 = vadd.f32 %v1097, %v1100
    %vm1102 = vweird.f32 %v1095
    %vm1103 = vweird.f32 %v1097
    %vm1104 = vmor %vm1102, %vm1103
    %v1105 = vsel %vm1104, %v1097, %v1101
    %v1106 = vand.u32 2147483647, %v1095
    %vm1107 = vcmp.eq.f32.partialorder %v1106, 8.507059e+37
    %v1108 = vand.u32 %v1095, 2147483648
    %v1109 = vor.u32 1.1754944e-38, %v1108
    %v1110 = vsel %vm1107, %v1109, %v1105
    %v1111 = vmul.f32 %v1085, %v1110
    %v1113 = vrot.slane %v1111, 3
    %v1115 = vsel %vm1092, %v1113, 0.0
    %vm1116 = vcmp.gt.f32.partialorder %v1011, 0.0
    %v1118 = vrot.slane %v1091, 1
    %v1120 = vadd.f32 %v1088, %v1118
    %v1122 = vrot.slane %v1115, 4
    %v1124 = vadd.f32 %v1120, %v1122
    %v1125 = vmul.f32 %v1124, 0.001
    %v1127 = vrot.slane %v1125, 2
    %v1129 = vsel %vm1116, %v1127, 0.0
    %v1131 = vrot.slane %v1066, 7
    %v1133 = vrcp.pop %v1131
    %v1134 = vmul.f32 %v1131, %v1133
    %v1135 = vsub.f32 1.0, %v1134
    %v1136 = vmul.f32 %v1133, %v1135
    %v1137 = vadd.f32 %v1133, %v1136
    %vm1138 = vweird.f32 %v1131
    %vm1139 = vweird.f32 %v1133
    %vm1140 = vmor %vm1138, %vm1139
    %v1141 = vsel %vm1140, %v1133, %v1137
    %v1142 = vand.u32 2147483647, %v1131
    %vm1143 = vcmp.eq.f32.partialorder %v1142, 8.507059e+37
    %v1144 = vand.u32 %v1131, 2147483648
    %v1145 = vor.u32 1.1754944e-38, %v1144
    %v1146 = vsel %vm1143, %v1145, %v1141
    %v1147 = vmul.f32 %v1011, %v1146
    %v1148 = vmul.f32 %v1147, 0.5
    %v1150 = vrot.slane %v1148, 1
    %v1152 = vsel %vm1116, %v1150, 0.0
    %v1154 = vrot.slane %v1152, 4
    %v1156 = vadd.f32 %v1129, %v1154
    %v1158 = vrot.slane %v1011, 6
    %v1160 = vsub.f32 %v1011, %v1158
    %v1161 = vstv %s19
    %v1162 = vsub.f32 %v1161, %v1160
    %vm1163 = vcmp.ne.f32.partialorder %v1162, 0.0
    %v1164 = vmul.f32 %v1156, %v1161
    %v1165 = vsel %vm1163, %v1162, 1.0
    %v1167 = vrot.slane %v1165, 6
    %v1169 = vrcp.pop %v1167
    %v1170 = vmul.f32 %v1167, %v1169
    %v1171 = vsub.f32 1.0, %v1170
    %v1172 = vmul.f32 %v1169, %v1171
    %v1173 = vadd.f32 %v1169, %v1172
    %vm1174 = vweird.f32 %v1167
    %vm1175 = vweird.f32 %v1169
    %vm1176 = vmor %vm1174, %vm1175
    %v1177 = vsel %vm1176, %v1169, %v1173
    %v1178 = vand.u32 2147483647, %v1167
    %vm1179 = vcmp.eq.f32.partialorder %v1178, 8.507059e+37
    %v1180 = vand.u32 %v1167, 2147483648
    %v1181 = vor.u32 1.1754944e-38, %v1180
    %v1182 = vsel %vm1179, %v1181, %v1177
    %v1183 = vmul.f32 %v1164, %v1182
    %v1185 = vrot.slane %v1183, 2
    %v1188 = vrot.slane %v1156, 2
    %v1190 = vsel %vm1163, %v1185, %v1188
    %v1192 = vrot.slane %v1129, 2
    %v1194 = vsel %vm1063, %v1192, %v1190
    %vm1195 = vcmask 0
    %1196 = vst.msk [vmem:[#allocation3] sm:$0x1] %vm1195, %v1194
    // Predicated region
    $region18: #{_ratio_loss_impl.1} parent=1 // pred_check
      _
    $region19: #{_ratio_loss_impl.1} parent=1 // pred_check_branch
      %1198 = sbr.rel (0) target = $region21
    $region20: #{_ratio_loss_impl.1} parent=1 // pred_region
      %1200 = vsyncadd [#allocation4], 0
      %s1202 = sshll.u32 [#allocation3], 4
      %s1203 = int_to_ptr.vmem [resolvable:$true] %s1202
      %s1204 = sshll.u32 %s4, 4
      %s1205 = int_to_ptr.hbm [resolvable:$true] %s1204
      %1207 = dma.vmem_to_hbm [thread:$0]  %s1203, 16, %s1205, [#allocation4]
    $region21: #{_ratio_loss_impl.1} parent=1 // pred_fallthru
      _
    // Predicated region
    $region22: #{_ratio_loss_impl.1} parent=1 // pred_check
      _
    $region23: #{_ratio_loss_impl.1} parent=1 // pred_check_branch
      %1209 = sbr.rel (0) target = $region25
    $region24: #{_ratio_loss_impl.1} parent=1 // pred_region
      %1211 = dma.done [#allocation4], 16
    $region25: #{_ratio_loss_impl.1} parent=1 // pred_fallthru
      _
    %1212 = vsyncpa [#allocation4], 1

</llo_original>
